<compile_context>
chip_gen: v7x
topology: tpu7x:2x2x1
jax: 0.10.0
libtpu: 0.0.40
codegen_flags: <defaults>
</compile_context>

<pallas_src>
import math

import jax
import jax.numpy as jnp
from jax import lax
from jax.experimental import pallas as pl
from jax.experimental.pallas import tpu as pltpu

NUM_GROUPS = 8
EPS = 1e-5


# ----------------------------- in-kernel helpers -----------------------------

def _mm(a, w, dt):
    """MXU matmul with f32 accumulation.  Weights are host pre-cast to `dt`, so
    the astype is a no-op on the weight path (no per-step VPU cast)."""
    return jnp.dot(a.astype(dt), w.astype(dt), preferred_element_type=jnp.float32)


def _mm_nt(a, b, dt):
    """a @ b.T on the MXU (contract last dims) with f32 accumulation."""
    return lax.dot_general(a.astype(dt), b.astype(dt),
                           (((1,), (1,)), ((), ())),
                           preferred_element_type=jnp.float32)


def _group_norm(x, gamma, beta, M, Mt):
    """GroupNorm over an (S, C) token block.

    Per-(batch, group) statistics over (S, C//G).  `M` is the one-hot
    channel->group matrix with 1/(S*C//G) folded in on the host; `Mt` scatters
    group stats back to channels.  Centered two-pass variance (no
    E[x^2]-E[x]^2 cancellation).  Stats stay in f32 regardless of matmul dtype.
    """
    s1 = jnp.sum(x, axis=0, keepdims=True)                              # (1, C)
    mean_c = jnp.dot(jnp.dot(s1, M, preferred_element_type=jnp.float32),
                     Mt, preferred_element_type=jnp.float32)            # (1, C)
    xc = x - mean_c
    s2 = jnp.sum(xc * xc, axis=0, keepdims=True)                        # (1, C)
    var_c = jnp.dot(jnp.dot(s2, M, preferred_element_type=jnp.float32),
                    Mt, preferred_element_type=jnp.float32)             # (1, C)
    return xc * lax.rsqrt(var_c + EPS) * gamma + beta


def _softmax_last(s):
    # Exact normalization (matches the PyTorch reference softmax; no approx recip).
    p = jnp.exp(s - jnp.max(s, axis=-1, keepdims=True))
    return p * (1.0 / jnp.sum(p, axis=-1, keepdims=True))


def _attention(h, kv, wq, bq, wk, bk, wv, bv, wo, bo, mask_bias, dt):
    """Single-head attention; 1/sqrt(C) is pre-folded into wq/bq on the host and
    the additive mask bias is precomputed, so the score path is matmul + add."""
    q = _mm(h, wq, dt) + bq
    k = _mm(kv, wk, dt) + bk
    v = _mm(kv, wv, dt) + bv
    s = _mm_nt(q, k, dt)                                                # (S, Skv)
    if mask_bias is not None:
        s = s + mask_bias                                               # 0 / -1e9
    p = _softmax_last(s)
    a = _mm(p, v, dt)
    return _mm(a, wo, dt) + bo


# --------------------------------- fused kernel -------------------------------

def _make_fused_kernel(with_cross, mm_dtype):
    dt = mm_dtype

    if with_cross:
        def kernel(x_ref, ctx_ref, mb_ref, M_ref, Mt_ref,
                   sa_g, sa_b, sa_wq, sa_bq, sa_wk, sa_bk, sa_wv, sa_bv, sa_wo, sa_bo,
                   mlp_g, mlp_b, w1, b1, w2, b2,
                   ca_g, ca_b, ca_wq, ca_bq, ca_wk, ca_bk, ca_wv, ca_bv, ca_wo, ca_bo,
                   o_ref):
            M, Mt = M_ref[...], Mt_ref[...]
            x = x_ref[0]                                    # (S, C) token-major, no transpose

            # --- stage 1: spatial self-attention (+ residual) ---
            h = _group_norm(x, sa_g[...], sa_b[...], M, Mt)
            x = x + _attention(h, h, sa_wq[...], sa_bq[...], sa_wk[...], sa_bk[...],
                               sa_wv[...], sa_bv[...], sa_wo[...], sa_bo[...],
                               None, dt)

            # --- stage 2: MLP (+ residual); Dropout is identity in eval mode ---
            h = _group_norm(x, mlp_g[...], mlp_b[...], M, Mt)
            h = _mm(h, w1[...], dt) + b1[...]
            h = h * jax.nn.sigmoid(h)                       # SiLU
            x = x + _mm(h, w2[...], dt) + b2[...]

            # --- stage 3: spatial cross-attention (+ residual) ---
            h = _group_norm(x, ca_g[...], ca_b[...], M, Mt)
            x = x + _attention(h, ctx_ref[0], ca_wq[...], ca_bq[...],
                               ca_wk[...], ca_bk[...], ca_wv[...], ca_bv[...],
                               ca_wo[...], ca_bo[...], mb_ref[0], dt)

            o_ref[0] = x                                    # lane-dense (S, C) store
        return kernel

    def kernel(x_ref, M_ref, Mt_ref,
               sa_g, sa_b, sa_wq, sa_bq, sa_wk, sa_bk, sa_wv, sa_bv, sa_wo, sa_bo,
               mlp_g, mlp_b, w1, b1, w2, b2,
               o_ref):
        M, Mt = M_ref[...], Mt_ref[...]
        x = x_ref[0]
        h = _group_norm(x, sa_g[...], sa_b[...], M, Mt)
        x = x + _attention(h, h, sa_wq[...], sa_bq[...], sa_wk[...], sa_bk[...],
                           sa_wv[...], sa_bv[...], sa_wo[...], sa_bo[...], None, dt)
        h = _group_norm(x, mlp_g[...], mlp_b[...], M, Mt)
        h = _mm(h, w1[...], dt) + b1[...]
        h = h * jax.nn.sigmoid(h)
        x = x + _mm(h, w2[...], dt) + b2[...]
        o_ref[0] = x
    return kernel


# ----------------------------------- wrapper ----------------------------------

def _rep_spec(shape):
    """Grid-invariant (replicated) full-array block; same block index every step,
    so Pallas only DMAs it once."""
    zeros = (0,) * len(shape)
    return pl.BlockSpec(shape, lambda b: zeros)


def _cost_estimate(B, S, C, with_cross, L, Dc, operands, out_nbytes):
    flops = 4 * 2 * S * C * C + 2 * 2 * S * S * C          # self-attn: qkvo + scores + pv
    flops += 2 * 2 * S * C * (4 * C)                        # MLP
    trans = S * S + S * 4 * C                               # softmax exp + SiLU sigmoid
    if with_cross:
        flops += 2 * 2 * S * C * C + 2 * 2 * L * Dc * C + 2 * 2 * S * L * C
        trans += S * L
    nbytes = out_nbytes + sum(int(a.size) * a.dtype.itemsize for a in operands)
    return pl.CostEstimate(flops=int(B * flops), transcendentals=int(B * trans),
                           bytes_accessed=int(nbytes))


def basic_spatial_transformer_block(x_nchw, context, mask, params,
                                    matmul_dtype=jnp.float32):
    """SelfAttention -> MLP -> [CrossAttention], NCHW in/out, one fused pallas_call.

    The kernel works on token-major (1, S, C) blocks; the NCHW <-> token-major
    permute happens once in the XLA wrapper.  Pass `matmul_dtype=jnp.bfloat16`
    together with params from `prepare_params(..., matmul_dtype=jnp.bfloat16)`
    for the v6e/v7x bf16-MXU fast path (f32 accumulation); the default f32
    preserves reference numerics exactly.
    """
    B, C, H, W = x_nchw.shape
    S = H * W
    x_tok = jnp.transpose(x_nchw.reshape(B, C, S), (0, 2, 1))        # (B, S, C)

    # GroupNorm one-hot group matrices with 1/count folded in (host constants).
    G = NUM_GROUPS
    ch = jnp.arange(C, dtype=jnp.int32) // (C // G)
    onehot = (ch[:, None] == jnp.arange(G, dtype=jnp.int32)[None, :]).astype(jnp.float32)
    M = onehot * (1.0 / (S * (C // G)))                               # (C, G)
    Mt = onehot.T                                                     # (G, C)

    sa, mlp = params["sa"], params["mlp"]
    sa_ws = [sa["gamma"], sa["beta"], sa["wq"], sa["bq"], sa["wk"], sa["bk"],
             sa["wv"], sa["bv"], sa["wo"], sa["bo"]]
    mlp_ws = [mlp["gamma"], mlp["beta"], mlp["w1"], mlp["b1"], mlp["w2"], mlp["b2"]]

    with_cross = (context is not None) and ("ca" in params)
    kernel = _make_fused_kernel(with_cross, matmul_dtype)

    x_spec = pl.BlockSpec((1, S, C), lambda b: (b, 0, 0))
    out_shape = jax.ShapeDtypeStruct((B, S, C), jnp.float32)
    compiler_params = pltpu.CompilerParams(
        dimension_semantics=("parallel",),
        vmem_limit_bytes=64 * 1024 * 1024,   # explicit (v5e default is only 16 MiB)
    )

    if with_cross:
        _, L, Dc = context.shape
        if mask is None:
            mask = jnp.ones((B, 1, L), jnp.float32)
        # Additive mask bias precomputed on the host (0 keep / -1e9 drop).
        mask_bias = (1.0 - mask.astype(jnp.float32)) * (-1e9)
        ca = params["ca"]
        ca_ws = [ca["gamma"], ca["beta"], ca["wq"], ca["bq"], ca["wk"], ca["bk"],
                 ca["wv"], ca["bv"], ca["wo"], ca["bo"]]
        consts = [M, Mt] + sa_ws + mlp_ws + ca_ws
        operands = [x_tok, context, mask_bias] + consts
        in_specs = ([x_spec,
                     pl.BlockSpec((1, L, Dc), lambda b: (b, 0, 0)),
                     pl.BlockSpec((1, 1, L), lambda b: (b, 0, 0))]
                    + [_rep_spec(w.shape) for w in consts])
        out = pl.pallas_call(
            kernel, out_shape=out_shape, grid=(B,),
            in_specs=in_specs, out_specs=x_spec,
            compiler_params=compiler_params,
            cost_estimate=_cost_estimate(B, S, C, True, L, Dc, operands, B * S * C * 4),
        )(*operands)
    else:
        consts = [M, Mt] + sa_ws + mlp_ws
        operands = [x_tok] + consts
        in_specs = [x_spec] + [_rep_spec(w.shape) for w in consts]
        out = pl.pallas_call(
            kernel, out_shape=out_shape, grid=(B,),
            in_specs=in_specs, out_specs=x_spec,
            compiler_params=compiler_params,
            cost_estimate=_cost_estimate(B, S, C, False, 0, 0, operands, B * S * C * 4),
        )(*operands)

    return jnp.transpose(out, (0, 2, 1)).reshape(B, C, H, W)


# ------------------------------ param init / prep -----------------------------

def _linear(key, fin, fout, scale=0.05):
    kw, kb = jax.random.split(key)
    w = scale * jax.random.normal(kw, (fin, fout), jnp.float32)   # (in, out)
    b = scale * jax.random.normal(kb, (1, fout), jnp.float32)
    return w, b


def init_params(key, C, Dctx):
    ks = jax.random.split(key, 10)
    g1 = jnp.ones((1, C), jnp.float32)
    b0 = jnp.zeros((1, C), jnp.float32)

    sa = {"gamma": g1, "beta": b0}
    for i, n in enumerate("qkvo"):
        w, b = _linear(ks[i], C, C)
        sa["w" + n], sa["b" + n] = w, b

    w1, b1 = _linear(ks[4], C, 4 * C)
    w2, b2 = _linear(ks[5], 4 * C, C)
    mlp = {"gamma": g1, "beta": b0, "w1": w1, "b1": b1, "w2": w2, "b2": b2}

    ca = {"gamma": g1, "beta": b0}
    ca["wq"], ca["bq"] = _linear(ks[6], C, C)
    ca["wk"], ca["bk"] = _linear(ks[7], Dctx, C)
    ca["wv"], ca["bv"] = _linear(ks[8], Dctx, C)
    ca["wo"], ca["bo"] = _linear(ks[9], C, C)

    return {"sa": sa, "mlp": mlp, "ca": ca}


_MATMUL_WEIGHTS = ("wq", "wk", "wv", "wo", "w1", "w2")


def prepare_params(params, matmul_dtype=jnp.float32):
    """One-time host-side prep: fold 1/sqrt(C) into wq/bq so the kernel never
    scales the score matrix, and pre-cast matmul weights to `matmul_dtype`
    (halves weight DMA bytes on the bf16 path; no per-step VPU casts)."""
    new = {}
    for blk, p in params.items():
        q = dict(p)
        if blk in ("sa", "ca"):
            scale = 1.0 / math.sqrt(q["wq"].shape[1])
            q["wq"] = q["wq"] * scale
            q["bq"] = q["bq"] * scale
        for name in _MATMUL_WEIGHTS:
            if name in q:
                q[name] = q[name].astype(matmul_dtype)
        new[blk] = q
    return new


# ----------------------------------- main --------------------------------------

if __name__ == "__main__":
    # Small but lane-dense test shapes: C=128 keeps the (S, C) kernel I/O blocks
    # lane-aligned (unmasked vector stores); spatial 8x8 -> S=64 tokens.
    B, C, H, W = 2, 128, 8, 8
    Dctx, L = 32, 8

    key = jax.random.PRNGKey(0)
    kx, kc, kp = jax.random.split(key, 3)

    x = jax.random.normal(kx, (B, C, H, W), jnp.float32)            # NCHW, like PyTorch
    context = jax.random.normal(kc, (B, L, Dctx), jnp.float32)
    mask = jnp.ones((B, 1, L), jnp.float32).at[:, :, -2:].set(0.0)  # mask last 2 ctx tokens

    params = prepare_params(init_params(kp, C, Dctx), matmul_dtype=jnp.float32)

    fwd = jax.jit(basic_spatial_transformer_block)
    y = fwd(x, context, mask, params)
    y = jax.block_until_ready(y)
    assert y.shape == (B, C, H, W) and bool(jnp.all(jnp.isfinite(y)))
    print("KERNEL_OK")
</pallas_src>

<mosaic_0001>
module attributes {stable_mosaic.version = 11 : i64} {
  func.func @kernel(%arg0: i32, %arg1: memref<1x64x128xf32, #tpu.memory_space<vmem>>, %arg2: memref<1x8x32xf32, #tpu.memory_space<vmem>>, %arg3: memref<1x1x8xf32, #tpu.memory_space<vmem>>, %arg4: memref<128x8xf32, #tpu.memory_space<vmem>>, %arg5: memref<8x128xf32, #tpu.memory_space<vmem>>, %arg6: memref<1x128xf32, #tpu.memory_space<vmem>>, %arg7: memref<1x128xf32, #tpu.memory_space<vmem>>, %arg8: memref<128x128xf32, #tpu.memory_space<vmem>>, %arg9: memref<1x128xf32, #tpu.memory_space<vmem>>, %arg10: memref<128x128xf32, #tpu.memory_space<vmem>>, %arg11: memref<1x128xf32, #tpu.memory_space<vmem>>, %arg12: memref<128x128xf32, #tpu.memory_space<vmem>>, %arg13: memref<1x128xf32, #tpu.memory_space<vmem>>, %arg14: memref<128x128xf32, #tpu.memory_space<vmem>>, %arg15: memref<1x128xf32, #tpu.memory_space<vmem>>, %arg16: memref<1x128xf32, #tpu.memory_space<vmem>>, %arg17: memref<1x128xf32, #tpu.memory_space<vmem>>, %arg18: memref<128x512xf32, #tpu.memory_space<vmem>>, %arg19: memref<1x512xf32, #tpu.memory_space<vmem>>, %arg20: memref<512x128xf32, #tpu.memory_space<vmem>>, %arg21: memref<1x128xf32, #tpu.memory_space<vmem>>, %arg22: memref<1x128xf32, #tpu.memory_space<vmem>>, %arg23: memref<1x128xf32, #tpu.memory_space<vmem>>, %arg24: memref<128x128xf32, #tpu.memory_space<vmem>>, %arg25: memref<1x128xf32, #tpu.memory_space<vmem>>, %arg26: memref<32x128xf32, #tpu.memory_space<vmem>>, %arg27: memref<1x128xf32, #tpu.memory_space<vmem>>, %arg28: memref<32x128xf32, #tpu.memory_space<vmem>>, %arg29: memref<1x128xf32, #tpu.memory_space<vmem>>, %arg30: memref<128x128xf32, #tpu.memory_space<vmem>>, %arg31: memref<1x128xf32, #tpu.memory_space<vmem>>, %arg32: memref<1x64x128xf32, #tpu.memory_space<vmem>>) attributes {dimension_semantics = [#tpu.dimension_semantics<parallel>], iteration_bounds = array<i64: 2>, scalar_prefetch = 0 : i64, scratch_operands = 0 : i64, tpu.core_type = #tpu.core_type<tc>, window_params = [{transform_indices = @transform_0, window_bounds = array<i64: 1, 64, 128>}, {transform_indices = @transform_1, window_bounds = array<i64: 1, 8, 32>}, {transform_indices = @transform_2, window_bounds = array<i64: 1, 1, 8>}, {pipeline_mode = #tpu.pipeline_mode<synchronous>, transform_indices = @transform_3, window_bounds = array<i64: 128, 8>}, {pipeline_mode = #tpu.pipeline_mode<synchronous>, transform_indices = @transform_4, window_bounds = array<i64: 8, 128>}, {pipeline_mode = #tpu.pipeline_mode<synchronous>, transform_indices = @transform_5, window_bounds = array<i64: 1, 128>}, {pipeline_mode = #tpu.pipeline_mode<synchronous>, transform_indices = @transform_6, window_bounds = array<i64: 1, 128>}, {pipeline_mode = #tpu.pipeline_mode<synchronous>, transform_indices = @transform_7, window_bounds = array<i64: 128, 128>}, {pipeline_mode = #tpu.pipeline_mode<synchronous>, transform_indices = @transform_8, window_bounds = array<i64: 1, 128>}, {pipeline_mode = #tpu.pipeline_mode<synchronous>, transform_indices = @transform_9, window_bounds = array<i64: 128, 128>}, {pipeline_mode = #tpu.pipeline_mode<synchronous>, transform_indices = @transform_10, window_bounds = array<i64: 1, 128>}, {pipeline_mode = #tpu.pipeline_mode<synchronous>, transform_indices = @transform_11, window_bounds = array<i64: 128, 128>}, {pipeline_mode = #tpu.pipeline_mode<synchronous>, transform_indices = @transform_12, window_bounds = array<i64: 1, 128>}, {pipeline_mode = #tpu.pipeline_mode<synchronous>, transform_indices = @transform_13, window_bounds = array<i64: 128, 128>}, {pipeline_mode = #tpu.pipeline_mode<synchronous>, transform_indices = @transform_14, window_bounds = array<i64: 1, 128>}, {pipeline_mode = #tpu.pipeline_mode<synchronous>, transform_indices = @transform_15, window_bounds = array<i64: 1, 128>}, {pipeline_mode = #tpu.pipeline_mode<synchronous>, transform_indices = @transform_16, window_bounds = array<i64: 1, 128>}, {pipeline_mode = #tpu.pipeline_mode<synchronous>, transform_indices = @transform_17, window_bounds = array<i64: 128, 512>}, {pipeline_mode = #tpu.pipeline_mode<synchronous>, transform_indices = @transform_18, window_bounds = array<i64: 1, 512>}, {pipeline_mode = #tpu.pipeline_mode<synchronous>, transform_indices = @transform_19, window_bounds = array<i64: 512, 128>}, {pipeline_mode = #tpu.pipeline_mode<synchronous>, transform_indices = @transform_20, window_bounds = array<i64: 1, 128>}, {pipeline_mode = #tpu.pipeline_mode<synchronous>, transform_indices = @transform_21, window_bounds = array<i64: 1, 128>}, {pipeline_mode = #tpu.pipeline_mode<synchronous>, transform_indices = @transform_22, window_bounds = array<i64: 1, 128>}, {pipeline_mode = #tpu.pipeline_mode<synchronous>, transform_indices = @transform_23, window_bounds = array<i64: 128, 128>}, {pipeline_mode = #tpu.pipeline_mode<synchronous>, transform_indices = @transform_24, window_bounds = array<i64: 1, 128>}, {pipeline_mode = #tpu.pipeline_mode<synchronous>, transform_indices = @transform_25, window_bounds = array<i64: 32, 128>}, {pipeline_mode = #tpu.pipeline_mode<synchronous>, transform_indices = @transform_26, window_bounds = array<i64: 1, 128>}, {pipeline_mode = #tpu.pipeline_mode<synchronous>, transform_indices = @transform_27, window_bounds = array<i64: 32, 128>}, {pipeline_mode = #tpu.pipeline_mode<synchronous>, transform_indices = @transform_28, window_bounds = array<i64: 1, 128>}, {pipeline_mode = #tpu.pipeline_mode<synchronous>, transform_indices = @transform_29, window_bounds = array<i64: 128, 128>}, {pipeline_mode = #tpu.pipeline_mode<synchronous>, transform_indices = @transform_30, window_bounds = array<i64: 1, 128>}, {transform_indices = @transform_31, window_bounds = array<i64: 1, 64, 128>}]} {
    %c0 = arith.constant 0 : index
    %c0_0 = arith.constant 0 : index
    %0 = vector.load %arg4[%c0, %c0_0] : memref<128x8xf32, #tpu.memory_space<vmem>>, vector<128x8xf32>
    %c0_1 = arith.constant 0 : index
    %c0_2 = arith.constant 0 : index
    %1 = vector.load %arg5[%c0_1, %c0_2] : memref<8x128xf32, #tpu.memory_space<vmem>>, vector<8x128xf32>
    %c0_3 = arith.constant 0 : index
    %c0_4 = arith.constant 0 : index
    %c0_5 = arith.constant 0 : index
    %2 = vector.load %arg1[%c0_3, %c0_4, %c0_5] : memref<1x64x128xf32, #tpu.memory_space<vmem>>, vector<1x64x128xf32>
    %3 = vector.shape_cast %2 : vector<1x64x128xf32> to vector<64x128xf32>
    %c0_6 = arith.constant 0 : index
    %c0_7 = arith.constant 0 : index
    %4 = vector.load %arg6[%c0_6, %c0_7] : memref<1x128xf32, #tpu.memory_space<vmem>>, vector<1x128xf32>
    %c0_8 = arith.constant 0 : index
    %c0_9 = arith.constant 0 : index
    %5 = vector.load %arg7[%c0_8, %c0_9] : memref<1x128xf32, #tpu.memory_space<vmem>>, vector<1x128xf32>
    %cst = arith.constant dense<0.000000e+00> : vector<128xf32>
    %6 = vector.multi_reduction <add>, %3, %cst [0] : vector<64x128xf32> to vector<128xf32>
    %7 = vector.shape_cast %6 : vector<128xf32> to vector<1x128xf32>
    %cst_10 = arith.constant dense<0.000000e+00> : vector<1x8xf32>
    %8 = tpu.matmul %7, %0, %cst_10 {dimension_numbers = #tpu.dot_dimension_numbers<[1], [0], [0], [1], [0, 0, 1, 1], [], []>} : vector<1x128xf32>, vector<128x8xf32>, vector<1x8xf32> -> vector<1x8xf32>
    %cst_11 = arith.constant dense<0.000000e+00> : vector<1x128xf32>
    %9 = tpu.matmul %8, %1, %cst_11 {dimension_numbers = #tpu.dot_dimension_numbers<[1], [0], [0], [1], [0, 0, 1, 1], [], []>} : vector<1x8xf32>, vector<8x128xf32>, vector<1x128xf32> -> vector<1x128xf32>
    %10 = vector.broadcast %9 : vector<1x128xf32> to vector<64x128xf32>
    %11 = arith.subf %3, %10 : vector<64x128xf32>
    %12 = arith.mulf %11, %11 : vector<64x128xf32>
    %cst_12 = arith.constant dense<0.000000e+00> : vector<128xf32>
    %13 = vector.multi_reduction <add>, %12, %cst_12 [0] : vector<64x128xf32> to vector<128xf32>
    %14 = vector.shape_cast %13 : vector<128xf32> to vector<1x128xf32>
    %cst_13 = arith.constant dense<0.000000e+00> : vector<1x8xf32>
    %15 = tpu.matmul %14, %0, %cst_13 {dimension_numbers = #tpu.dot_dimension_numbers<[1], [0], [0], [1], [0, 0, 1, 1], [], []>} : vector<1x128xf32>, vector<128x8xf32>, vector<1x8xf32> -> vector<1x8xf32>
    %cst_14 = arith.constant dense<0.000000e+00> : vector<1x128xf32>
    %16 = tpu.matmul %15, %1, %cst_14 {dimension_numbers = #tpu.dot_dimension_numbers<[1], [0], [0], [1], [0, 0, 1, 1], [], []>} : vector<1x8xf32>, vector<8x128xf32>, vector<1x128xf32> -> vector<1x128xf32>
    %cst_15 = arith.constant 9.99999974E-6 : f32
    %17 = vector.broadcast %cst_15 : f32 to vector<1x128xf32>
    %18 = arith.addf %16, %17 : vector<1x128xf32>
    %19 = math.rsqrt %18 : vector<1x128xf32>
    %20 = vector.broadcast %19 : vector<1x128xf32> to vector<64x128xf32>
    %21 = arith.mulf %11, %20 : vector<64x128xf32>
    %22 = vector.broadcast %4 : vector<1x128xf32> to vector<64x128xf32>
    %23 = arith.mulf %21, %22 : vector<64x128xf32>
    %24 = vector.broadcast %5 : vector<1x128xf32> to vector<64x128xf32>
    %25 = arith.addf %23, %24 : vector<64x128xf32>
    %c0_16 = arith.constant 0 : index
    %c0_17 = arith.constant 0 : index
    %26 = vector.load %arg8[%c0_16, %c0_17] : memref<128x128xf32, #tpu.memory_space<vmem>>, vector<128x128xf32>
    %c0_18 = arith.constant 0 : index
    %c0_19 = arith.constant 0 : index
    %27 = vector.load %arg9[%c0_18, %c0_19] : memref<1x128xf32, #tpu.memory_space<vmem>>, vector<1x128xf32>
    %c0_20 = arith.constant 0 : index
    %c0_21 = arith.constant 0 : index
    %28 = vector.load %arg10[%c0_20, %c0_21] : memref<128x128xf32, #tpu.memory_space<vmem>>, vector<128x128xf32>
    %c0_22 = arith.constant 0 : index
    %c0_23 = arith.constant 0 : index
    %29 = vector.load %arg11[%c0_22, %c0_23] : memref<1x128xf32, #tpu.memory_space<vmem>>, vector<1x128xf32>
    %c0_24 = arith.constant 0 : index
    %c0_25 = arith.constant 0 : index
    %30 = vector.load %arg12[%c0_24, %c0_25] : memref<128x128xf32, #tpu.memory_space<vmem>>, vector<128x128xf32>
    %c0_26 = arith.constant 0 : index
    %c0_27 = arith.constant 0 : index
    %31 = vector.load %arg13[%c0_26, %c0_27] : memref<1x128xf32, #tpu.memory_space<vmem>>, vector<1x128xf32>
    %c0_28 = arith.constant 0 : index
    %c0_29 = arith.constant 0 : index
    %32 = vector.load %arg14[%c0_28, %c0_29] : memref<128x128xf32, #tpu.memory_space<vmem>>, vector<128x128xf32>
    %c0_30 = arith.constant 0 : index
    %c0_31 = arith.constant 0 : index
    %33 = vector.load %arg15[%c0_30, %c0_31] : memref<1x128xf32, #tpu.memory_space<vmem>>, vector<1x128xf32>
    %cst_32 = arith.constant dense<0.000000e+00> : vector<64x128xf32>
    %34 = tpu.matmul %25, %26, %cst_32 {dimension_numbers = #tpu.dot_dimension_numbers<[1], [0], [0], [1], [0, 0, 1, 1], [], []>} : vector<64x128xf32>, vector<128x128xf32>, vector<64x128xf32> -> vector<64x128xf32>
    %35 = vector.broadcast %27 : vector<1x128xf32> to vector<64x128xf32>
    %36 = arith.addf %34, %35 : vector<64x128xf32>
    %cst_33 = arith.constant dense<0.000000e+00> : vector<64x128xf32>
    %37 = tpu.matmul %25, %28, %cst_33 {dimension_numbers = #tpu.dot_dimension_numbers<[1], [0], [0], [1], [0, 0, 1, 1], [], []>} : vector<64x128xf32>, vector<128x128xf32>, vector<64x128xf32> -> vector<64x128xf32>
    %38 = vector.broadcast %29 : vector<1x128xf32> to vector<64x128xf32>
    %39 = arith.addf %37, %38 : vector<64x128xf32>
    %cst_34 = arith.constant dense<0.000000e+00> : vector<64x128xf32>
    %40 = tpu.matmul %25, %30, %cst_34 {dimension_numbers = #tpu.dot_dimension_numbers<[1], [0], [0], [1], [0, 0, 1, 1], [], []>} : vector<64x128xf32>, vector<128x128xf32>, vector<64x128xf32> -> vector<64x128xf32>
    %41 = vector.broadcast %31 : vector<1x128xf32> to vector<64x128xf32>
    %42 = arith.addf %40, %41 : vector<64x128xf32>
    %cst_35 = arith.constant dense<0.000000e+00> : vector<64x64xf32>
    %43 = tpu.matmul %36, %39, %cst_35 {dimension_numbers = #tpu.dot_dimension_numbers<[1], [1], [0], [0], [0, 0, 1, 0], [], []>} : vector<64x128xf32>, vector<64x128xf32>, vector<64x64xf32> -> vector<64x64xf32>
    %cst_36 = arith.constant dense<0xFF800000> : vector<64xf32>
    %44 = vector.multi_reduction <maximumf>, %43, %cst_36 [1] : vector<64x64xf32> to vector<64xf32>
    %45 = vector.shape_cast %44 : vector<64xf32> to vector<64x1xf32>
    %46 = vector.broadcast %45 : vector<64x1xf32> to vector<64x64xf32>
    %47 = arith.subf %43, %46 : vector<64x64xf32>
    %48 = math.exp %47 : vector<64x64xf32>
    %cst_37 = arith.constant dense<0.000000e+00> : vector<64xf32>
    %49 = vector.multi_reduction <add>, %48, %cst_37 [1] : vector<64x64xf32> to vector<64xf32>
    %50 = vector.shape_cast %49 : vector<64xf32> to vector<64x1xf32>
    %cst_38 = arith.constant 1.000000e+00 : f32
    %51 = vector.broadcast %cst_38 : f32 to vector<64x1xf32>
    %52 = arith.divf %51, %50 : vector<64x1xf32>
    %53 = vector.broadcast %52 : vector<64x1xf32> to vector<64x64xf32>
    %54 = arith.mulf %48, %53 : vector<64x64xf32>
    %cst_39 = arith.constant dense<0.000000e+00> : vector<64x128xf32>
    %55 = tpu.matmul %54, %42, %cst_39 {dimension_numbers = #tpu.dot_dimension_numbers<[1], [0], [0], [1], [0, 0, 1, 1], [], []>} : vector<64x64xf32>, vector<64x128xf32>, vector<64x128xf32> -> vector<64x128xf32>
    %cst_40 = arith.constant dense<0.000000e+00> : vector<64x128xf32>
    %56 = tpu.matmul %55, %32, %cst_40 {dimension_numbers = #tpu.dot_dimension_numbers<[1], [0], [0], [1], [0, 0, 1, 1], [], []>} : vector<64x128xf32>, vector<128x128xf32>, vector<64x128xf32> -> vector<64x128xf32>
    %57 = vector.broadcast %33 : vector<1x128xf32> to vector<64x128xf32>
    %58 = arith.addf %56, %57 : vector<64x128xf32>
    %59 = arith.addf %3, %58 : vector<64x128xf32>
    %c0_41 = arith.constant 0 : index
    %c0_42 = arith.constant 0 : index
    %60 = vector.load %arg16[%c0_41, %c0_42] : memref<1x128xf32, #tpu.memory_space<vmem>>, vector<1x128xf32>
    %c0_43 = arith.constant 0 : index
    %c0_44 = arith.constant 0 : index
    %61 = vector.load %arg17[%c0_43, %c0_44] : memref<1x128xf32, #tpu.memory_space<vmem>>, vector<1x128xf32>
    %cst_45 = arith.constant dense<0.000000e+00> : vector<128xf32>
    %62 = vector.multi_reduction <add>, %59, %cst_45 [0] : vector<64x128xf32> to vector<128xf32>
    %63 = vector.shape_cast %62 : vector<128xf32> to vector<1x128xf32>
    %cst_46 = arith.constant dense<0.000000e+00> : vector<1x8xf32>
    %64 = tpu.matmul %63, %0, %cst_46 {dimension_numbers = #tpu.dot_dimension_numbers<[1], [0], [0], [1], [0, 0, 1, 1], [], []>} : vector<1x128xf32>, vector<128x8xf32>, vector<1x8xf32> -> vector<1x8xf32>
    %cst_47 = arith.constant dense<0.000000e+00> : vector<1x128xf32>
    %65 = tpu.matmul %64, %1, %cst_47 {dimension_numbers = #tpu.dot_dimension_numbers<[1], [0], [0], [1], [0, 0, 1, 1], [], []>} : vector<1x8xf32>, vector<8x128xf32>, vector<1x128xf32> -> vector<1x128xf32>
    %66 = vector.broadcast %65 : vector<1x128xf32> to vector<64x128xf32>
    %67 = arith.subf %59, %66 : vector<64x128xf32>
    %68 = arith.mulf %67, %67 : vector<64x128xf32>
    %cst_48 = arith.constant dense<0.000000e+00> : vector<128xf32>
    %69 = vector.multi_reduction <add>, %68, %cst_48 [0] : vector<64x128xf32> to vector<128xf32>
    %70 = vector.shape_cast %69 : vector<128xf32> to vector<1x128xf32>
    %cst_49 = arith.constant dense<0.000000e+00> : vector<1x8xf32>
    %71 = tpu.matmul %70, %0, %cst_49 {dimension_numbers = #tpu.dot_dimension_numbers<[1], [0], [0], [1], [0, 0, 1, 1], [], []>} : vector<1x128xf32>, vector<128x8xf32>, vector<1x8xf32> -> vector<1x8xf32>
    %cst_50 = arith.constant dense<0.000000e+00> : vector<1x128xf32>
    %72 = tpu.matmul %71, %1, %cst_50 {dimension_numbers = #tpu.dot_dimension_numbers<[1], [0], [0], [1], [0, 0, 1, 1], [], []>} : vector<1x8xf32>, vector<8x128xf32>, vector<1x128xf32> -> vector<1x128xf32>
    %cst_51 = arith.constant 9.99999974E-6 : f32
    %73 = vector.broadcast %cst_51 : f32 to vector<1x128xf32>
    %74 = arith.addf %72, %73 : vector<1x128xf32>
    %75 = math.rsqrt %74 : vector<1x128xf32>
    %76 = vector.broadcast %75 : vector<1x128xf32> to vector<64x128xf32>
    %77 = arith.mulf %67, %76 : vector<64x128xf32>
    %78 = vector.broadcast %60 : vector<1x128xf32> to vector<64x128xf32>
    %79 = arith.mulf %77, %78 : vector<64x128xf32>
    %80 = vector.broadcast %61 : vector<1x128xf32> to vector<64x128xf32>
    %81 = arith.addf %79, %80 : vector<64x128xf32>
    %c0_52 = arith.constant 0 : index
    %c0_53 = arith.constant 0 : index
    %82 = vector.load %arg18[%c0_52, %c0_53] : memref<128x512xf32, #tpu.memory_space<vmem>>, vector<128x512xf32>
    %cst_54 = arith.constant dense<0.000000e+00> : vector<64x512xf32>
    %83 = tpu.matmul %81, %82, %cst_54 {dimension_numbers = #tpu.dot_dimension_numbers<[1], [0], [0], [1], [0, 0, 1, 1], [], []>} : vector<64x128xf32>, vector<128x512xf32>, vector<64x512xf32> -> vector<64x512xf32>
    %c0_55 = arith.constant 0 : index
    %c0_56 = arith.constant 0 : index
    %84 = vector.load %arg19[%c0_55, %c0_56] : memref<1x512xf32, #tpu.memory_space<vmem>>, vector<1x512xf32>
    %85 = vector.broadcast %84 : vector<1x512xf32> to vector<64x512xf32>
    %86 = arith.addf %83, %85 : vector<64x512xf32>
    %87 = arith.negf %86 : vector<64x512xf32>
    %88 = math.exp %87 : vector<64x512xf32>
    %cst_57 = arith.constant 1.000000e+00 : f32
    %89 = vector.broadcast %cst_57 : f32 to vector<64x512xf32>
    %90 = arith.addf %89, %88 : vector<64x512xf32>
    %91 = arith.divf %89, %90 : vector<64x512xf32>
    %92 = arith.mulf %86, %91 : vector<64x512xf32>
    %c0_58 = arith.constant 0 : index
    %c0_59 = arith.constant 0 : index
    %93 = vector.load %arg20[%c0_58, %c0_59] : memref<512x128xf32, #tpu.memory_space<vmem>>, vector<512x128xf32>
    %cst_60 = arith.constant dense<0.000000e+00> : vector<64x128xf32>
    %94 = tpu.matmul %92, %93, %cst_60 {dimension_numbers = #tpu.dot_dimension_numbers<[1], [0], [0], [1], [0, 0, 1, 1], [], []>} : vector<64x512xf32>, vector<512x128xf32>, vector<64x128xf32> -> vector<64x128xf32>
    %95 = arith.addf %59, %94 : vector<64x128xf32>
    %c0_61 = arith.constant 0 : index
    %c0_62 = arith.constant 0 : index
    %96 = vector.load %arg21[%c0_61, %c0_62] : memref<1x128xf32, #tpu.memory_space<vmem>>, vector<1x128xf32>
    %97 = vector.broadcast %96 : vector<1x128xf32> to vector<64x128xf32>
    %98 = arith.addf %95, %97 : vector<64x128xf32>
    %c0_63 = arith.constant 0 : index
    %c0_64 = arith.constant 0 : index
    %99 = vector.load %arg22[%c0_63, %c0_64] : memref<1x128xf32, #tpu.memory_space<vmem>>, vector<1x128xf32>
    %c0_65 = arith.constant 0 : index
    %c0_66 = arith.constant 0 : index
    %100 = vector.load %arg23[%c0_65, %c0_66] : memref<1x128xf32, #tpu.memory_space<vmem>>, vector<1x128xf32>
    %cst_67 = arith.constant dense<0.000000e+00> : vector<128xf32>
    %101 = vector.multi_reduction <add>, %98, %cst_67 [0] : vector<64x128xf32> to vector<128xf32>
    %102 = vector.shape_cast %101 : vector<128xf32> to vector<1x128xf32>
    %cst_68 = arith.constant dense<0.000000e+00> : vector<1x8xf32>
    %103 = tpu.matmul %102, %0, %cst_68 {dimension_numbers = #tpu.dot_dimension_numbers<[1], [0], [0], [1], [0, 0, 1, 1], [], []>} : vector<1x128xf32>, vector<128x8xf32>, vector<1x8xf32> -> vector<1x8xf32>
    %cst_69 = arith.constant dense<0.000000e+00> : vector<1x128xf32>
    %104 = tpu.matmul %103, %1, %cst_69 {dimension_numbers = #tpu.dot_dimension_numbers<[1], [0], [0], [1], [0, 0, 1, 1], [], []>} : vector<1x8xf32>, vector<8x128xf32>, vector<1x128xf32> -> vector<1x128xf32>
    %105 = vector.broadcast %104 : vector<1x128xf32> to vector<64x128xf32>
    %106 = arith.subf %98, %105 : vector<64x128xf32>
    %107 = arith.mulf %106, %106 : vector<64x128xf32>
    %cst_70 = arith.constant dense<0.000000e+00> : vector<128xf32>
    %108 = vector.multi_reduction <add>, %107, %cst_70 [0] : vector<64x128xf32> to vector<128xf32>
    %109 = vector.shape_cast %108 : vector<128xf32> to vector<1x128xf32>
    %cst_71 = arith.constant dense<0.000000e+00> : vector<1x8xf32>
    %110 = tpu.matmul %109, %0, %cst_71 {dimension_numbers = #tpu.dot_dimension_numbers<[1], [0], [0], [1], [0, 0, 1, 1], [], []>} : vector<1x128xf32>, vector<128x8xf32>, vector<1x8xf32> -> vector<1x8xf32>
    %cst_72 = arith.constant dense<0.000000e+00> : vector<1x128xf32>
    %111 = tpu.matmul %110, %1, %cst_72 {dimension_numbers = #tpu.dot_dimension_numbers<[1], [0], [0], [1], [0, 0, 1, 1], [], []>} : vector<1x8xf32>, vector<8x128xf32>, vector<1x128xf32> -> vector<1x128xf32>
    %cst_73 = arith.constant 9.99999974E-6 : f32
    %112 = vector.broadcast %cst_73 : f32 to vector<1x128xf32>
    %113 = arith.addf %111, %112 : vector<1x128xf32>
    %114 = math.rsqrt %113 : vector<1x128xf32>
    %115 = vector.broadcast %114 : vector<1x128xf32> to vector<64x128xf32>
    %116 = arith.mulf %106, %115 : vector<64x128xf32>
    %117 = vector.broadcast %99 : vector<1x128xf32> to vector<64x128xf32>
    %118 = arith.mulf %116, %117 : vector<64x128xf32>
    %119 = vector.broadcast %100 : vector<1x128xf32> to vector<64x128xf32>
    %120 = arith.addf %118, %119 : vector<64x128xf32>
    %c0_74 = arith.constant 0 : index
    %c0_75 = arith.constant 0 : index
    %c0_76 = arith.constant 0 : index
    %121 = vector.load %arg2[%c0_74, %c0_75, %c0_76] : memref<1x8x32xf32, #tpu.memory_space<vmem>>, vector<1x8x32xf32>
    %122 = vector.shape_cast %121 : vector<1x8x32xf32> to vector<8x32xf32>
    %c0_77 = arith.constant 0 : index
    %c0_78 = arith.constant 0 : index
    %123 = vector.load %arg24[%c0_77, %c0_78] : memref<128x128xf32, #tpu.memory_space<vmem>>, vector<128x128xf32>
    %c0_79 = arith.constant 0 : index
    %c0_80 = arith.constant 0 : index
    %124 = vector.load %arg25[%c0_79, %c0_80] : memref<1x128xf32, #tpu.memory_space<vmem>>, vector<1x128xf32>
    %c0_81 = arith.constant 0 : index
    %c0_82 = arith.constant 0 : index
    %125 = vector.load %arg26[%c0_81, %c0_82] : memref<32x128xf32, #tpu.memory_space<vmem>>, vector<32x128xf32>
    %c0_83 = arith.constant 0 : index
    %c0_84 = arith.constant 0 : index
    %126 = vector.load %arg27[%c0_83, %c0_84] : memref<1x128xf32, #tpu.memory_space<vmem>>, vector<1x128xf32>
    %c0_85 = arith.constant 0 : index
    %c0_86 = arith.constant 0 : index
    %127 = vector.load %arg28[%c0_85, %c0_86] : memref<32x128xf32, #tpu.memory_space<vmem>>, vector<32x128xf32>
    %c0_87 = arith.constant 0 : index
    %c0_88 = arith.constant 0 : index
    %128 = vector.load %arg29[%c0_87, %c0_88] : memref<1x128xf32, #tpu.memory_space<vmem>>, vector<1x128xf32>
    %c0_89 = arith.constant 0 : index
    %c0_90 = arith.constant 0 : index
    %129 = vector.load %arg30[%c0_89, %c0_90] : memref<128x128xf32, #tpu.memory_space<vmem>>, vector<128x128xf32>
    %c0_91 = arith.constant 0 : index
    %c0_92 = arith.constant 0 : index
    %130 = vector.load %arg31[%c0_91, %c0_92] : memref<1x128xf32, #tpu.memory_space<vmem>>, vector<1x128xf32>
    %c0_93 = arith.constant 0 : index
    %c0_94 = arith.constant 0 : index
    %c0_95 = arith.constant 0 : index
    %131 = vector.load %arg3[%c0_93, %c0_94, %c0_95] : memref<1x1x8xf32, #tpu.memory_space<vmem>>, vector<1x1x8xf32>
    %132 = vector.shape_cast %131 : vector<1x1x8xf32> to vector<1x8xf32>
    %cst_96 = arith.constant dense<0.000000e+00> : vector<64x128xf32>
    %133 = tpu.matmul %120, %123, %cst_96 {dimension_numbers = #tpu.dot_dimension_numbers<[1], [0], [0], [1], [0, 0, 1, 1], [], []>} : vector<64x128xf32>, vector<128x128xf32>, vector<64x128xf32> -> vector<64x128xf32>
    %134 = vector.broadcast %124 : vector<1x128xf32> to vector<64x128xf32>
    %135 = arith.addf %133, %134 : vector<64x128xf32>
    %cst_97 = arith.constant dense<0.000000e+00> : vector<8x128xf32>
    %136 = tpu.matmul %122, %125, %cst_97 {dimension_numbers = #tpu.dot_dimension_numbers<[1], [0], [0], [1], [0, 0, 1, 1], [], []>} : vector<8x32xf32>, vector<32x128xf32>, vector<8x128xf32> -> vector<8x128xf32>
    %137 = vector.broadcast %126 : vector<1x128xf32> to vector<8x128xf32>
    %138 = arith.addf %136, %137 : vector<8x128xf32>
    %cst_98 = arith.constant dense<0.000000e+00> : vector<8x128xf32>
    %139 = tpu.matmul %122, %127, %cst_98 {dimension_numbers = #tpu.dot_dimension_numbers<[1], [0], [0], [1], [0, 0, 1, 1], [], []>} : vector<8x32xf32>, vector<32x128xf32>, vector<8x128xf32> -> vector<8x128xf32>
    %140 = vector.broadcast %128 : vector<1x128xf32> to vector<8x128xf32>
    %141 = arith.addf %139, %140 : vector<8x128xf32>
    %cst_99 = arith.constant dense<0.000000e+00> : vector<64x8xf32>
    %142 = tpu.matmul %135, %138, %cst_99 {dimension_numbers = #tpu.dot_dimension_numbers<[1], [1], [0], [0], [0, 0, 1, 0], [], []>} : vector<64x128xf32>, vector<8x128xf32>, vector<64x8xf32> -> vector<64x8xf32>
    %143 = vector.broadcast %132 : vector<1x8xf32> to vector<64x8xf32>
    %144 = arith.addf %142, %143 : vector<64x8xf32>
    %cst_100 = arith.constant dense<0xFF800000> : vector<64xf32>
    %145 = vector.multi_reduction <maximumf>, %144, %cst_100 [1] : vector<64x8xf32> to vector<64xf32>
    %146 = vector.shape_cast %145 : vector<64xf32> to vector<64x1xf32>
    %147 = vector.broadcast %146 : vector<64x1xf32> to vector<64x8xf32>
    %148 = arith.subf %144, %147 : vector<64x8xf32>
    %149 = math.exp %148 : vector<64x8xf32>
    %cst_101 = arith.constant dense<0.000000e+00> : vector<64xf32>
    %150 = vector.multi_reduction <add>, %149, %cst_101 [1] : vector<64x8xf32> to vector<64xf32>
    %151 = vector.shape_cast %150 : vector<64xf32> to vector<64x1xf32>
    %cst_102 = arith.constant 1.000000e+00 : f32
    %152 = vector.broadcast %cst_102 : f32 to vector<64x1xf32>
    %153 = arith.divf %152, %151 : vector<64x1xf32>
    %154 = vector.broadcast %153 : vector<64x1xf32> to vector<64x8xf32>
    %155 = arith.mulf %149, %154 : vector<64x8xf32>
    %cst_103 = arith.constant dense<0.000000e+00> : vector<64x128xf32>
    %156 = tpu.matmul %155, %141, %cst_103 {dimension_numbers = #tpu.dot_dimension_numbers<[1], [0], [0], [1], [0, 0, 1, 1], [], []>} : vector<64x8xf32>, vector<8x128xf32>, vector<64x128xf32> -> vector<64x128xf32>
    %cst_104 = arith.constant dense<0.000000e+00> : vector<64x128xf32>
    %157 = tpu.matmul %156, %129, %cst_104 {dimension_numbers = #tpu.dot_dimension_numbers<[1], [0], [0], [1], [0, 0, 1, 1], [], []>} : vector<64x128xf32>, vector<128x128xf32>, vector<64x128xf32> -> vector<64x128xf32>
    %158 = vector.broadcast %130 : vector<1x128xf32> to vector<64x128xf32>
    %159 = arith.addf %157, %158 : vector<64x128xf32>
    %160 = arith.addf %98, %159 : vector<64x128xf32>
    %c0_105 = arith.constant 0 : index
    %c0_106 = arith.constant 0 : index
    %c0_107 = arith.constant 0 : index
    %161 = vector.load %arg32[%c0_105, %c0_106, %c0_107] : memref<1x64x128xf32, #tpu.memory_space<vmem>>, vector<1x64x128xf32>
    %162 = vector.shape_cast %161 : vector<1x64x128xf32> to vector<64x128xf32>
    %163 = vector.shape_cast %160 : vector<64x128xf32> to vector<1x64x128xf32>
    tpu.vector_store %arg32[%c0_105, %c0_106, %c0_107], %163 {strides = array<i32>} : memref<1x64x128xf32, #tpu.memory_space<vmem>>, vector<1x64x128xf32>,
    return
  }
  func.func @transform_0(%arg0: i32) -> (i32, i32, i32) {
    %c0_i32 = arith.constant 0 : i32
    %c0_i32_0 = arith.constant 0 : i32
    %c0_i32_1 = arith.constant 0 : i32
    return %arg0, %c0_i32, %c0_i32_0 : i32, i32, i32
  }
  func.func @transform_1(%arg0: i32) -> (i32, i32, i32) {
    %c0_i32 = arith.constant 0 : i32
    %c0_i32_0 = arith.constant 0 : i32
    %c0_i32_1 = arith.constant 0 : i32
    return %arg0, %c0_i32, %c0_i32_0 : i32, i32, i32
  }
  func.func @transform_2(%arg0: i32) -> (i32, i32, i32) {
    %c0_i32 = arith.constant 0 : i32
    %c0_i32_0 = arith.constant 0 : i32
    %c0_i32_1 = arith.constant 0 : i32
    return %arg0, %c0_i32, %c0_i32_0 : i32, i32, i32
  }
  func.func @transform_3(%arg0: i32) -> (i32, i32) {
    %c0_i32 = arith.constant 0 : i32
    %c0_i32_0 = arith.constant 0 : i32
    %c0_i32_1 = arith.constant 0 : i32
    return %c0_i32, %c0_i32_0 : i32, i32
  }
  func.func @transform_4(%arg0: i32) -> (i32, i32) {
    %c0_i32 = arith.constant 0 : i32
    %c0_i32_0 = arith.constant 0 : i32
    %c0_i32_1 = arith.constant 0 : i32
    return %c0_i32, %c0_i32_0 : i32, i32
  }
  func.func @transform_5(%arg0: i32) -> (i32, i32) {
    %c0_i32 = arith.constant 0 : i32
    %c0_i32_0 = arith.constant 0 : i32
    %c0_i32_1 = arith.constant 0 : i32
    return %c0_i32, %c0_i32_0 : i32, i32
  }
  func.func @transform_6(%arg0: i32) -> (i32, i32) {
    %c0_i32 = arith.constant 0 : i32
    %c0_i32_0 = arith.constant 0 : i32
    %c0_i32_1 = arith.constant 0 : i32
    return %c0_i32, %c0_i32_0 : i32, i32
  }
  func.func @transform_7(%arg0: i32) -> (i32, i32) {
    %c0_i32 = arith.constant 0 : i32
    %c0_i32_0 = arith.constant 0 : i32
    %c0_i32_1 = arith.constant 0 : i32
    return %c0_i32, %c0_i32_0 : i32, i32
  }
  func.func @transform_8(%arg0: i32) -> (i32, i32) {
    %c0_i32 = arith.constant 0 : i32
    %c0_i32_0 = arith.constant 0 : i32
    %c0_i32_1 = arith.constant 0 : i32
    return %c0_i32, %c0_i32_0 : i32, i32
  }
  func.func @transform_9(%arg0: i32) -> (i32, i32) {
    %c0_i32 = arith.constant 0 : i32
    %c0_i32_0 = arith.constant 0 : i32
    %c0_i32_1 = arith.constant 0 : i32
    return %c0_i32, %c0_i32_0 : i32, i32
  }
  func.func @transform_10(%arg0: i32) -> (i32, i32) {
    %c0_i32 = arith.constant 0 : i32
    %c0_i32_0 = arith.constant 0 : i32
    %c0_i32_1 = arith.constant 0 : i32
    return %c0_i32, %c0_i32_0 : i32, i32
  }
  func.func @transform_11(%arg0: i32) -> (i32, i32) {
    %c0_i32 = arith.constant 0 : i32
    %c0_i32_0 = arith.constant 0 : i32
    %c0_i32_1 = arith.constant 0 : i32
    return %c0_i32, %c0_i32_0 : i32, i32
  }
  func.func @transform_12(%arg0: i32) -> (i32, i32) {
    %c0_i32 = arith.constant 0 : i32
    %c0_i32_0 = arith.constant 0 : i32
    %c0_i32_1 = arith.constant 0 : i32
    return %c0_i32, %c0_i32_0 : i32, i32
  }
  func.func @transform_13(%arg0: i32) -> (i32, i32) {
    %c0_i32 = arith.constant 0 : i32
    %c0_i32_0 = arith.constant 0 : i32
    %c0_i32_1 = arith.constant 0 : i32
    return %c0_i32, %c0_i32_0 : i32, i32
  }
  func.func @transform_14(%arg0: i32) -> (i32, i32) {
    %c0_i32 = arith.constant 0 : i32
    %c0_i32_0 = arith.constant 0 : i32
    %c0_i32_1 = arith.constant 0 : i32
    return %c0_i32, %c0_i32_0 : i32, i32
  }
  func.func @transform_15(%arg0: i32) -> (i32, i32) {
    %c0_i32 = arith.constant 0 : i32
    %c0_i32_0 = arith.constant 0 : i32
    %c0_i32_1 = arith.constant 0 : i32
    return %c0_i32, %c0_i32_0 : i32, i32
  }
  func.func @transform_16(%arg0: i32) -> (i32, i32) {
    %c0_i32 = arith.constant 0 : i32
    %c0_i32_0 = arith.constant 0 : i32
    %c0_i32_1 = arith.constant 0 : i32
    return %c0_i32, %c0_i32_0 : i32, i32
  }
  func.func @transform_17(%arg0: i32) -> (i32, i32) {
    %c0_i32 = arith.constant 0 : i32
    %c0_i32_0 = arith.constant 0 : i32
    %c0_i32_1 = arith.constant 0 : i32
    return %c0_i32, %c0_i32_0 : i32, i32
  }
  func.func @transform_18(%arg0: i32) -> (i32, i32) {
    %c0_i32 = arith.constant 0 : i32
    %c0_i32_0 = arith.constant 0 : i32
    %c0_i32_1 = arith.constant 0 : i32
    return %c0_i32, %c0_i32_0 : i32, i32
  }
  func.func @transform_19(%arg0: i32) -> (i32, i32) {
    %c0_i32 = arith.constant 0 : i32
    %c0_i32_0 = arith.constant 0 : i32
    %c0_i32_1 = arith.constant 0 : i32
    return %c0_i32, %c0_i32_0 : i32, i32
  }
  func.func @transform_20(%arg0: i32) -> (i32, i32) {
    %c0_i32 = arith.constant 0 : i32
    %c0_i32_0 = arith.constant 0 : i32
    %c0_i32_1 = arith.constant 0 : i32
    return %c0_i32, %c0_i32_0 : i32, i32
  }
  func.func @transform_21(%arg0: i32) -> (i32, i32) {
    %c0_i32 = arith.constant 0 : i32
    %c0_i32_0 = arith.constant 0 : i32
    %c0_i32_1 = arith.constant 0 : i32
    return %c0_i32, %c0_i32_0 : i32, i32
  }
  func.func @transform_22(%arg0: i32) -> (i32, i32) {
    %c0_i32 = arith.constant 0 : i32
    %c0_i32_0 = arith.constant 0 : i32
    %c0_i32_1 = arith.constant 0 : i32
    return %c0_i32, %c0_i32_0 : i32, i32
  }
  func.func @transform_23(%arg0: i32) -> (i32, i32) {
    %c0_i32 = arith.constant 0 : i32
    %c0_i32_0 = arith.constant 0 : i32
    %c0_i32_1 = arith.constant 0 : i32
    return %c0_i32, %c0_i32_0 : i32, i32
  }
  func.func @transform_24(%arg0: i32) -> (i32, i32) {
    %c0_i32 = arith.constant 0 : i32
    %c0_i32_0 = arith.constant 0 : i32
    %c0_i32_1 = arith.constant 0 : i32
    return %c0_i32, %c0_i32_0 : i32, i32
  }
  func.func @transform_25(%arg0: i32) -> (i32, i32) {
    %c0_i32 = arith.constant 0 : i32
    %c0_i32_0 = arith.constant 0 : i32
    %c0_i32_1 = arith.constant 0 : i32
    return %c0_i32, %c0_i32_0 : i32, i32
  }
  func.func @transform_26(%arg0: i32) -> (i32, i32) {
    %c0_i32 = arith.constant 0 : i32
    %c0_i32_0 = arith.constant 0 : i32
    %c0_i32_1 = arith.constant 0 : i32
    return %c0_i32, %c0_i32_0 : i32, i32
  }
  func.func @transform_27(%arg0: i32) -> (i32, i32) {
    %c0_i32 = arith.constant 0 : i32
    %c0_i32_0 = arith.constant 0 : i32
    %c0_i32_1 = arith.constant 0 : i32
    return %c0_i32, %c0_i32_0 : i32, i32
  }
  func.func @transform_28(%arg0: i32) -> (i32, i32) {
    %c0_i32 = arith.constant 0 : i32
    %c0_i32_0 = arith.constant 0 : i32
    %c0_i32_1 = arith.constant 0 : i32
    return %c0_i32, %c0_i32_0 : i32, i32
  }
  func.func @transform_29(%arg0: i32) -> (i32, i32) {
    %c0_i32 = arith.constant 0 : i32
    %c0_i32_0 = arith.constant 0 : i32
    %c0_i32_1 = arith.constant 0 : i32
    return %c0_i32, %c0_i32_0 : i32, i32
  }
  func.func @transform_30(%arg0: i32) -> (i32, i32) {
    %c0_i32 = arith.constant 0 : i32
    %c0_i32_0 = arith.constant 0 : i32
    %c0_i32_1 = arith.constant 0 : i32
    return %c0_i32, %c0_i32_0 : i32, i32
  }
  func.func @transform_31(%arg0: i32) -> (i32, i32, i32) {
    %c0_i32 = arith.constant 0 : i32
    %c0_i32_0 = arith.constant 0 : i32
    %c0_i32_1 = arith.constant 0 : i32
    return %arg0, %c0_i32, %c0_i32_0 : i32, i32, i32
  }
}

</mosaic_0001>

<llo_original>
// kernel: basic_spatial_transformer_block.1
$region0: #{basic_spatial_transformer_block.1}
  #allocation0 [shape = 'u32[]', space=smem, size = 0x4, offset = 0x4, fixed_abs, tag = 'smem constant byte address 0x4 - core index']
  #allocation1 [shape = 'u32[144,128]{1,0:T(1,128)}', space=vmem, size = 0x12000, scoped, tag = 'internal scratch']
  %s0 = inlined_call_operand.smem [shape: u32[32], index: -1, kind: input, shape index: {}]
  %s1 = sld [smem:[%s0]]
  %s2 = scalar_lea.smem %s0, 1
  %s3 = sld [smem:[%s2]]
  %s4 = scalar_lea.smem %s0, 2
  %s5 = sld [smem:[%s4]]
  %s6 = scalar_lea.smem %s0, 3
  %s7 = sld [smem:[%s6]]
  %s8 = scalar_lea.smem %s0, 4
  %s9 = sld [smem:[%s8]]
  %s10 = scalar_lea.smem %s0, 5
  %s11 = sld [smem:[%s10]]
  %s12 = scalar_lea.smem %s0, 6
  %s13 = sld [smem:[%s12]]
  %s14 = scalar_lea.smem %s0, 7
  %s15 = sld [smem:[%s14]]
  %s16 = scalar_lea.smem %s0, 8
  %s17 = sld [smem:[%s16]]
  %s18 = scalar_lea.smem %s0, 9
  %s19 = sld [smem:[%s18]]
  %s20 = scalar_lea.smem %s0, 10
  %s21 = sld [smem:[%s20]]
  %s22 = scalar_lea.smem %s0, 11
  %s23 = sld [smem:[%s22]]
  %s24 = scalar_lea.smem %s0, 12
  %s25 = sld [smem:[%s24]]
  %s26 = scalar_lea.smem %s0, 13
  %s27 = sld [smem:[%s26]]
  %s28 = scalar_lea.smem %s0, 14
  %s29 = sld [smem:[%s28]]
  %s30 = scalar_lea.smem %s0, 15
  %s31 = sld [smem:[%s30]]
  %s32 = scalar_lea.smem %s0, 16
  %s33 = sld [smem:[%s32]]
  %s34 = scalar_lea.smem %s0, 17
  %s35 = sld [smem:[%s34]]
  %s36 = scalar_lea.smem %s0, 18
  %s37 = sld [smem:[%s36]]
  %s38 = scalar_lea.smem %s0, 19
  %s39 = sld [smem:[%s38]]
  %s40 = scalar_lea.smem %s0, 20
  %s41 = sld [smem:[%s40]]
  %s42 = scalar_lea.smem %s0, 21
  %s43 = sld [smem:[%s42]]
  %s44 = scalar_lea.smem %s0, 22
  %s45 = sld [smem:[%s44]]
  %s46 = scalar_lea.smem %s0, 23
  %s47 = sld [smem:[%s46]]
  %s48 = scalar_lea.smem %s0, 24
  %s49 = sld [smem:[%s48]]
  %s50 = scalar_lea.smem %s0, 25
  %s51 = sld [smem:[%s50]]
  %s52 = scalar_lea.smem %s0, 26
  %s53 = sld [smem:[%s52]]
  %s54 = scalar_lea.smem %s0, 27
  %s55 = sld [smem:[%s54]]
  %s56 = scalar_lea.smem %s0, 28
  %s57 = sld [smem:[%s56]]
  %s58 = scalar_lea.smem %s0, 29
  %s59 = sld [smem:[%s58]]
  %s60 = scalar_lea.smem %s0, 30
  %s61 = sld [smem:[%s60]]
  %s62 = scalar_lea.smem %s0, 31
  %s63 = sld [smem:[%s62]]
  %s64 = sld [smem:[#allocation0]]
  $region281: #{basic_spatial_transformer_block.1} parent=0
    _
  %s66 = ssub.s32 1, %s64
  %s67 = scalar_select 0, %s66, %s64
  $region1: #{basic_spatial_transformer_block.1} parent=0
    #allocation2 [shape = 'u8[65536]{0}', space=vmem, size = 0x10000, scoped, tag = 'input window, operand 0']
    #allocation3 [shape = 's32[2]{0}', space=sflag, size = 0x8, scoped, tag = 'scoped memory for basic_spatial_transformer_block.1']
    #allocation4 [shape = 's32[2]{0}', space=sflag, size = 0x8, scoped, tag = 'scoped memory for basic_spatial_transformer_block.1']
    #allocation5 [shape = 'u8[8192]{0}', space=vmem, size = 0x2000, scoped, tag = 'input window, operand 1']
    #allocation6 [shape = 's32[2]{0}', space=sflag, size = 0x8, scoped, tag = 'scoped memory for basic_spatial_transformer_block.1']
    #allocation7 [shape = 'u8[1024]{0}', space=vmem, size = 0x400, scoped, tag = 'input window, operand 2']
    #allocation8 [shape = 'u8[65536]{0}', space=vmem, size = 0x10000, scoped, tag = 'input window, operand 3, single buffered']
    #allocation9 [shape = 's32[1]{0}', space=sflag, size = 0x4, scoped, tag = 'scoped memory for basic_spatial_transformer_block.1']
    #allocation10 [shape = 'u8[4096]{0}', space=vmem, size = 0x1000, scoped, tag = 'input window, operand 4, single buffered']
    #allocation11 [shape = 'u8[512]{0}', space=vmem, size = 0x400, scoped, tag = 'input window, operand 5, single buffered']
    #allocation12 [shape = 's32[1]{0}', space=sflag, size = 0x4, scoped, tag = 'scoped memory for basic_spatial_transformer_block.1']
    #allocation13 [shape = 'u8[512]{0}', space=vmem, size = 0x400, scoped, tag = 'input window, operand 6, single buffered']
    #allocation14 [shape = 'u8[65536]{0}', space=vmem, size = 0x10000, scoped, tag = 'input window, operand 7, single buffered']
    #allocation15 [shape = 's32[1]{0}', space=sflag, size = 0x4, scoped, tag = 'scoped memory for basic_spatial_transformer_block.1']
    #allocation16 [shape = 'u8[512]{0}', space=vmem, size = 0x400, scoped, tag = 'input window, operand 8, single buffered']
    #allocation17 [shape = 'u8[65536]{0}', space=vmem, size = 0x10000, scoped, tag = 'input window, operand 9, single buffered']
    #allocation18 [shape = 's32[1]{0}', space=sflag, size = 0x4, scoped, tag = 'scoped memory for basic_spatial_transformer_block.1']
    #allocation19 [shape = 'u8[512]{0}', space=vmem, size = 0x400, scoped, tag = 'input window, operand 10, single buffered']
    #allocation20 [shape = 'u8[65536]{0}', space=vmem, size = 0x10000, scoped, tag = 'input window, operand 11, single buffered']
    #allocation21 [shape = 's32[1]{0}', space=sflag, size = 0x4, scoped, tag = 'scoped memory for basic_spatial_transformer_block.1']
    #allocation22 [shape = 'u8[512]{0}', space=vmem, size = 0x400, scoped, tag = 'input window, operand 12, single buffered']
    #allocation23 [shape = 'u8[65536]{0}', space=vmem, size = 0x10000, scoped, tag = 'input window, operand 13, single buffered']
    #allocation24 [shape = 's32[1]{0}', space=sflag, size = 0x4, scoped, tag = 'scoped memory for basic_spatial_transformer_block.1']
    #allocation25 [shape = 'u8[512]{0}', space=vmem, size = 0x400, scoped, tag = 'input window, operand 14, single buffered']
    #allocation26 [shape = 'u8[512]{0}', space=vmem, size = 0x400, scoped, tag = 'input window, operand 15, single buffered']
    #allocation27 [shape = 's32[1]{0}', space=sflag, size = 0x4, scoped, tag = 'scoped memory for basic_spatial_transformer_block.1']
    #allocation28 [shape = 'u8[512]{0}', space=vmem, size = 0x400, scoped, tag = 'input window, operand 16, single buffered']
    #allocation29 [shape = 'u8[262144]{0}', space=vmem, size = 0x40000, scoped, tag = 'input window, operand 17, single buffered']
    #allocation30 [shape = 's32[1]{0}', space=sflag, size = 0x4, scoped, tag = 'scoped memory for basic_spatial_transformer_block.1']
    #allocation31 [shape = 'u8[2048]{0}', space=vmem, size = 0x800, scoped, tag = 'input window, operand 18, single buffered']
    #allocation32 [shape = 'u8[262144]{0}', space=vmem, size = 0x40000, scoped, tag = 'input window, operand 19, single buffered']
    #allocation33 [shape = 's32[1]{0}', space=sflag, size = 0x4, scoped, tag = 'scoped memory for basic_spatial_transformer_block.1']
    #allocation34 [shape = 'u8[512]{0}', space=vmem, size = 0x400, scoped, tag = 'input window, operand 20, single buffered']
    #allocation35 [shape = 'u8[512]{0}', space=vmem, size = 0x400, scoped, tag = 'input window, operand 21, single buffered']
    #allocation36 [shape = 's32[1]{0}', space=sflag, size = 0x4, scoped, tag = 'scoped memory for basic_spatial_transformer_block.1']
    #allocation37 [shape = 'u8[512]{0}', space=vmem, size = 0x400, scoped, tag = 'input window, operand 22, single buffered']
    #allocation38 [shape = 'u8[65536]{0}', space=vmem, size = 0x10000, scoped, tag = 'input window, operand 23, single buffered']
    #allocation39 [shape = 's32[1]{0}', space=sflag, size = 0x4, scoped, tag = 'scoped memory for basic_spatial_transformer_block.1']
    #allocation40 [shape = 'u8[512]{0}', space=vmem, size = 0x400, scoped, tag = 'input window, operand 24, single buffered']
    #allocation41 [shape = 'u8[16384]{0}', space=vmem, size = 0x4000, scoped, tag = 'input window, operand 25, single buffered']
    #allocation42 [shape = 's32[1]{0}', space=sflag, size = 0x4, scoped, tag = 'scoped memory for basic_spatial_transformer_block.1']
    #allocation43 [shape = 'u8[512]{0}', space=vmem, size = 0x400, scoped, tag = 'input window, operand 26, single buffered']
    #allocation44 [shape = 'u8[16384]{0}', space=vmem, size = 0x4000, scoped, tag = 'input window, operand 27, single buffered']
    #allocation45 [shape = 's32[1]{0}', space=sflag, size = 0x4, scoped, tag = 'scoped memory for basic_spatial_transformer_block.1']
    #allocation46 [shape = 'u8[512]{0}', space=vmem, size = 0x400, scoped, tag = 'input window, operand 28, single buffered']
    #allocation47 [shape = 'u8[65536]{0}', space=vmem, size = 0x10000, scoped, tag = 'input window, operand 29, single buffered']
    #allocation48 [shape = 's32[1]{0}', space=sflag, size = 0x4, scoped, tag = 'scoped memory for basic_spatial_transformer_block.1']
    #allocation49 [shape = 'u8[512]{0}', space=vmem, size = 0x400, scoped, tag = 'input window, operand 30, single buffered']
    #allocation50 [shape = 'u8[65536]{0}', space=vmem, size = 0x10000, scoped, tag = 'output window, operand 0']
    %68 = vsyncpa [#allocation3], 0
    %s69 = scalar_lea.sflag [#allocation3], 1
    %70 = vsyncpa %s69, 0
    %71 = vsyncpa [#allocation6], 0
    %s72 = scalar_lea.sflag [#allocation6], 1
    %73 = vsyncpa %s72, 0
    %74 = vsyncpa [#allocation9], 0
    %75 = vsyncpa [#allocation12], 0
    %76 = vsyncpa [#allocation15], 0
    %77 = vsyncpa [#allocation18], 0
    %78 = vsyncpa [#allocation21], 0
    %79 = vsyncpa [#allocation24], 0
    %80 = vsyncpa [#allocation27], 0
    %81 = vsyncpa [#allocation30], 0
    %82 = vsyncpa [#allocation33], 0
    %83 = vsyncpa [#allocation36], 0
    %84 = vsyncpa [#allocation39], 0
    %85 = vsyncpa [#allocation42], 0
    %86 = vsyncpa [#allocation45], 0
    %87 = vsyncpa [#allocation48], 0
    %88 = vsyncpa [#allocation4], 0
    %s89 = scalar_lea.sflag [#allocation4], 1
    %90 = vsyncpa %s89, 0
    loop: start=0, step=1, limit=4
    $region2: #{basic_spatial_transformer_block.1} parent=1 // loop_pre_header
      _
    $region3: #{basic_spatial_transformer_block.1} parent=1 // loop_header
      %s92 = sphi 0, %s96
      %p93 = scmp.ge.s32.totalorder %s92, 4
      %s102 = sphi 0, %s104
      %s105 = sphi 0, %s102
      %s106 = sphi 0, %s105
      %s122 = sphi 0, %s106
      %s128 = sphi 0, %s130
      %s131 = sphi 0, %s128
      %s132 = sphi 0, %s131
      %s148 = sphi 0, %s132
      %s154 = sphi 0, %s156
      %s157 = sphi 0, %s154
      %s158 = sphi 0, %s157
      %s174 = sphi 0, %s158
      %s178 = sphi 0, %s178
      %s180 = sphi 0, %s178
      %s181 = sphi 0, %s180
      %s195 = sphi 0, %s181
      %s199 = sphi 0, %s199
      %s201 = sphi 0, %s199
      %s202 = sphi 0, %s201
      %s216 = sphi 0, %s202
      %s220 = sphi 0, %s220
      %s222 = sphi 0, %s220
      %s223 = sphi 0, %s222
      %s237 = sphi 0, %s223
      %s241 = sphi 0, %s241
      %s243 = sphi 0, %s241
      %s244 = sphi 0, %s243
      %s258 = sphi 0, %s244
      %s262 = sphi 0, %s262
      %s264 = sphi 0, %s262
      %s265 = sphi 0, %s264
      %s279 = sphi 0, %s265
      %s283 = sphi 0, %s283
      %s285 = sphi 0, %s283
      %s286 = sphi 0, %s285
      %s300 = sphi 0, %s286
      %s304 = sphi 0, %s304
      %s306 = sphi 0, %s304
      %s307 = sphi 0, %s306
      %s321 = sphi 0, %s307
      %s325 = sphi 0, %s325
      %s327 = sphi 0, %s325
      %s328 = sphi 0, %s327
      %s342 = sphi 0, %s328
      %s346 = sphi 0, %s346
      %s348 = sphi 0, %s346
      %s349 = sphi 0, %s348
      %s363 = sphi 0, %s349
      %s367 = sphi 0, %s367
      %s369 = sphi 0, %s367
      %s370 = sphi 0, %s369
      %s384 = sphi 0, %s370
      %s388 = sphi 0, %s388
      %s390 = sphi 0, %s388
      %s391 = sphi 0, %s390
      %s405 = sphi 0, %s391
      %s409 = sphi 0, %s409
      %s411 = sphi 0, %s409
      %s412 = sphi 0, %s411
      %s426 = sphi 0, %s412
      %s430 = sphi 0, %s430
      %s432 = sphi 0, %s430
      %s433 = sphi 0, %s432
      %s447 = sphi 0, %s433
      %s451 = sphi 0, %s451
      %s453 = sphi 0, %s451
      %s454 = sphi 0, %s453
      %s468 = sphi 0, %s454
      %s472 = sphi 0, %s472
      %s474 = sphi 0, %s472
      %s475 = sphi 0, %s474
      %s489 = sphi 0, %s475
      %s493 = sphi 0, %s493
      %s495 = sphi 0, %s493
      %s496 = sphi 0, %s495
      %s510 = sphi 0, %s496
      %s514 = sphi 0, %s514
      %s516 = sphi 0, %s514
      %s517 = sphi 0, %s516
      %s531 = sphi 0, %s517
      %s535 = sphi 0, %s535
      %s537 = sphi 0, %s535
      %s538 = sphi 0, %s537
      %s552 = sphi 0, %s538
      %s556 = sphi 0, %s556
      %s558 = sphi 0, %s556
      %s559 = sphi 0, %s558
      %s573 = sphi 0, %s559
      %s577 = sphi 0, %s577
      %s579 = sphi 0, %s577
      %s580 = sphi 0, %s579
      %s594 = sphi 0, %s580
      %s598 = sphi 0, %s598
      %s600 = sphi 0, %s598
      %s601 = sphi 0, %s600
      %s615 = sphi 0, %s601
      %s619 = sphi 0, %s619
      %s621 = sphi 0, %s619
      %s622 = sphi 0, %s621
      %s636 = sphi 0, %s622
      %s640 = sphi 0, %s640
      %s642 = sphi 0, %s640
      %s643 = sphi 0, %s642
      %s657 = sphi 0, %s643
      %s661 = sphi 0, %s661
      %s663 = sphi 0, %s661
      %s664 = sphi 0, %s663
      %s678 = sphi 0, %s664
      %s682 = sphi 0, %s682
      %s684 = sphi 0, %s682
      %s685 = sphi 0, %s684
      %s699 = sphi 0, %s685
      %s703 = sphi 0, %s703
      %s705 = sphi 0, %s703
      %s706 = sphi 0, %s705
      %s720 = sphi 0, %s706
      %s724 = sphi 0, %s724
      %s726 = sphi 0, %s724
      %s727 = sphi 0, %s726
      %s741 = sphi 0, %s727
      %s745 = sphi 0, %s745
      %s747 = sphi 0, %s745
      %s748 = sphi 0, %s747
      %s762 = sphi 0, %s748
      %s768 = sphi 0, %s770
      %s771 = sphi 0, %s768
      %s772 = sphi 0, %s771
      %s788 = sphi 0, %s772
    $region4: #{basic_spatial_transformer_block.1} parent=1 // loop_header_branch
      %95 = sbr.rel (%p93) target = $region8
    $region5: #{basic_spatial_transformer_block.1} parent=1 // loop_body
      %s97 = ssub.s32 %s92, 1
      %s98 = ssub.s32 %s92, 2
      %s99 = sadd.s32 %s92, 1
      %s100 = ssub.s32 %s92, %s99
      %p101 = scmp.eq.s32.totalorder %s100, 0
      %s103 = sadd.s32 %s102, 1
      %s104 = scalar_select %p101, %s102, %s103
      %p107 = pneg %p101
      %p108 = scmp.eq.s32.totalorder %s92, 1
      %p109 = por %p107, %p108
      %p110 = scmp.ne.s32.totalorder %s102, %s105
      %p111 = scmp.eq.s32.totalorder %s92, 0
      %p112 = por %p110, %p111
      %p113 = scmp.ne.s32.totalorder %s102, %s105
      %p114 = scmp.eq.s32.totalorder %s97, 1
      %p115 = por %p113, %p114
      %p116 = scmp.ne.s32.totalorder %s105, %s106
      %p117 = scmp.eq.s32.totalorder %s97, 0
      %p118 = por %p116, %p117
      %p119 = scmp.ne.s32.totalorder %s105, %s106
      %p120 = scmp.eq.s32.totalorder %s98, 1
      %p121 = por %p119, %p120
      %p123 = scmp.ne.s32.totalorder %s106, %s122
      %p124 = scmp.eq.s32.totalorder %s98, 0
      %p125 = por %p123, %p124
      %s126 = ssub.s32 %s92, %s99
      %p127 = scmp.eq.s32.totalorder %s126, 0
      %s129 = sadd.s32 %s128, 1
      %s130 = scalar_select %p127, %s128, %s129
      %p133 = pneg %p127
      %p134 = scmp.eq.s32.totalorder %s92, 1
      %p135 = por %p133, %p134
      %p136 = scmp.ne.s32.totalorder %s128, %s131
      %p137 = scmp.eq.s32.totalorder %s92, 0
      %p138 = por %p136, %p137
      %p139 = scmp.ne.s32.totalorder %s128, %s131
      %p140 = scmp.eq.s32.totalorder %s97, 1
      %p141 = por %p139, %p140
      %p142 = scmp.ne.s32.totalorder %s131, %s132
      %p143 = scmp.eq.s32.totalorder %s97, 0
      %p144 = por %p142, %p143
      %p145 = scmp.ne.s32.totalorder %s131, %s132
      %p146 = scmp.eq.s32.totalorder %s98, 1
      %p147 = por %p145, %p146
      %p149 = scmp.ne.s32.totalorder %s132, %s148
      %p150 = scmp.eq.s32.totalorder %s98, 0
      %p151 = por %p149, %p150
      %s152 = ssub.s32 %s92, %s99
      %p153 = scmp.eq.s32.totalorder %s152, 0
      %s155 = sadd.s32 %s154, 1
      %s156 = scalar_select %p153, %s154, %s155
      %p159 = pneg %p153
      %p160 = scmp.eq.s32.totalorder %s92, 1
      %p161 = por %p159, %p160
      %p162 = scmp.ne.s32.totalorder %s154, %s157
      %p163 = scmp.eq.s32.totalorder %s92, 0
      %p164 = por %p162, %p163
      %p165 = scmp.ne.s32.totalorder %s154, %s157
      %p166 = scmp.eq.s32.totalorder %s97, 1
      %p167 = por %p165, %p166
      %p168 = scmp.ne.s32.totalorder %s157, %s158
      %p169 = scmp.eq.s32.totalorder %s97, 0
      %p170 = por %p168, %p169
      %p171 = scmp.ne.s32.totalorder %s157, %s158
      %p172 = scmp.eq.s32.totalorder %s98, 1
      %p173 = por %p171, %p172
      %p175 = scmp.ne.s32.totalorder %s158, %s174
      %p176 = scmp.eq.s32.totalorder %s98, 0
      %p177 = por %p175, %p176
      %s179 = sadd.s32 %s178, 1
      %p182 = scmp.eq.s32.totalorder %s92, 1
      %p183 = scmp.ne.s32.totalorder %s178, %s180
      %p184 = scmp.eq.s32.totalorder %s92, 0
      %p185 = por %p183, %p184
      %p186 = scmp.ne.s32.totalorder %s178, %s180
      %p187 = scmp.eq.s32.totalorder %s97, 1
      %p188 = por %p186, %p187
      %p189 = scmp.ne.s32.totalorder %s180, %s181
      %p190 = scmp.eq.s32.totalorder %s97, 0
      %p191 = por %p189, %p190
      %p192 = scmp.ne.s32.totalorder %s180, %s181
      %p193 = scmp.eq.s32.totalorder %s98, 1
      %p194 = por %p192, %p193
      %p196 = scmp.ne.s32.totalorder %s181, %s195
      %p197 = scmp.eq.s32.totalorder %s98, 0
      %p198 = por %p196, %p197
      %s200 = sadd.s32 %s199, 1
      %p203 = scmp.eq.s32.totalorder %s92, 1
      %p204 = scmp.ne.s32.totalorder %s199, %s201
      %p205 = scmp.eq.s32.totalorder %s92, 0
      %p206 = por %p204, %p205
      %p207 = scmp.ne.s32.totalorder %s199, %s201
      %p208 = scmp.eq.s32.totalorder %s97, 1
      %p209 = por %p207, %p208
      %p210 = scmp.ne.s32.totalorder %s201, %s202
      %p211 = scmp.eq.s32.totalorder %s97, 0
      %p212 = por %p210, %p211
      %p213 = scmp.ne.s32.totalorder %s201, %s202
      %p214 = scmp.eq.s32.totalorder %s98, 1
      %p215 = por %p213, %p214
      %p217 = scmp.ne.s32.totalorder %s202, %s216
      %p218 = scmp.eq.s32.totalorder %s98, 0
      %p219 = por %p217, %p218
      %s221 = sadd.s32 %s220, 1
      %p224 = scmp.eq.s32.totalorder %s92, 1
      %p225 = scmp.ne.s32.totalorder %s220, %s222
      %p226 = scmp.eq.s32.totalorder %s92, 0
      %p227 = por %p225, %p226
      %p228 = scmp.ne.s32.totalorder %s220, %s222
      %p229 = scmp.eq.s32.totalorder %s97, 1
      %p230 = por %p228, %p229
      %p231 = scmp.ne.s32.totalorder %s222, %s223
      %p232 = scmp.eq.s32.totalorder %s97, 0
      %p233 = por %p231, %p232
      %p234 = scmp.ne.s32.totalorder %s222, %s223
      %p235 = scmp.eq.s32.totalorder %s98, 1
      %p236 = por %p234, %p235
      %p238 = scmp.ne.s32.totalorder %s223, %s237
      %p239 = scmp.eq.s32.totalorder %s98, 0
      %p240 = por %p238, %p239
      %s242 = sadd.s32 %s241, 1
      %p245 = scmp.eq.s32.totalorder %s92, 1
      %p246 = scmp.ne.s32.totalorder %s241, %s243
      %p247 = scmp.eq.s32.totalorder %s92, 0
      %p248 = por %p246, %p247
      %p249 = scmp.ne.s32.totalorder %s241, %s243
      %p250 = scmp.eq.s32.totalorder %s97, 1
      %p251 = por %p249, %p250
      %p252 = scmp.ne.s32.totalorder %s243, %s244
      %p253 = scmp.eq.s32.totalorder %s97, 0
      %p254 = por %p252, %p253
      %p255 = scmp.ne.s32.totalorder %s243, %s244
      %p256 = scmp.eq.s32.totalorder %s98, 1
      %p257 = por %p255, %p256
      %p259 = scmp.ne.s32.totalorder %s244, %s258
      %p260 = scmp.eq.s32.totalorder %s98, 0
      %p261 = por %p259, %p260
      %s263 = sadd.s32 %s262, 1
      %p266 = scmp.eq.s32.totalorder %s92, 1
      %p267 = scmp.ne.s32.totalorder %s262, %s264
      %p268 = scmp.eq.s32.totalorder %s92, 0
      %p269 = por %p267, %p268
      %p270 = scmp.ne.s32.totalorder %s262, %s264
      %p271 = scmp.eq.s32.totalorder %s97, 1
      %p272 = por %p270, %p271
      %p273 = scmp.ne.s32.totalorder %s264, %s265
      %p274 = scmp.eq.s32.totalorder %s97, 0
      %p275 = por %p273, %p274
      %p276 = scmp.ne.s32.totalorder %s264, %s265
      %p277 = scmp.eq.s32.totalorder %s98, 1
      %p278 = por %p276, %p277
      %p280 = scmp.ne.s32.totalorder %s265, %s279
      %p281 = scmp.eq.s32.totalorder %s98, 0
      %p282 = por %p280, %p281
      %s284 = sadd.s32 %s283, 1
      %p287 = scmp.eq.s32.totalorder %s92, 1
      %p288 = scmp.ne.s32.totalorder %s283, %s285
      %p289 = scmp.eq.s32.totalorder %s92, 0
      %p290 = por %p288, %p289
      %p291 = scmp.ne.s32.totalorder %s283, %s285
      %p292 = scmp.eq.s32.totalorder %s97, 1
      %p293 = por %p291, %p292
      %p294 = scmp.ne.s32.totalorder %s285, %s286
      %p295 = scmp.eq.s32.totalorder %s97, 0
      %p296 = por %p294, %p295
      %p297 = scmp.ne.s32.totalorder %s285, %s286
      %p298 = scmp.eq.s32.totalorder %s98, 1
      %p299 = por %p297, %p298
      %p301 = scmp.ne.s32.totalorder %s286, %s300
      %p302 = scmp.eq.s32.totalorder %s98, 0
      %p303 = por %p301, %p302
      %s305 = sadd.s32 %s304, 1
      %p308 = scmp.eq.s32.totalorder %s92, 1
      %p309 = scmp.ne.s32.totalorder %s304, %s306
      %p310 = scmp.eq.s32.totalorder %s92, 0
      %p311 = por %p309, %p310
      %p312 = scmp.ne.s32.totalorder %s304, %s306
      %p313 = scmp.eq.s32.totalorder %s97, 1
      %p314 = por %p312, %p313
      %p315 = scmp.ne.s32.totalorder %s306, %s307
      %p316 = scmp.eq.s32.totalorder %s97, 0
      %p317 = por %p315, %p316
      %p318 = scmp.ne.s32.totalorder %s306, %s307
      %p319 = scmp.eq.s32.totalorder %s98, 1
      %p320 = por %p318, %p319
      %p322 = scmp.ne.s32.totalorder %s307, %s321
      %p323 = scmp.eq.s32.totalorder %s98, 0
      %p324 = por %p322, %p323
      %s326 = sadd.s32 %s325, 1
      %p329 = scmp.eq.s32.totalorder %s92, 1
      %p330 = scmp.ne.s32.totalorder %s325, %s327
      %p331 = scmp.eq.s32.totalorder %s92, 0
      %p332 = por %p330, %p331
      %p333 = scmp.ne.s32.totalorder %s325, %s327
      %p334 = scmp.eq.s32.totalorder %s97, 1
      %p335 = por %p333, %p334
      %p336 = scmp.ne.s32.totalorder %s327, %s328
      %p337 = scmp.eq.s32.totalorder %s97, 0
      %p338 = por %p336, %p337
      %p339 = scmp.ne.s32.totalorder %s327, %s328
      %p340 = scmp.eq.s32.totalorder %s98, 1
      %p341 = por %p339, %p340
      %p343 = scmp.ne.s32.totalorder %s328, %s342
      %p344 = scmp.eq.s32.totalorder %s98, 0
      %p345 = por %p343, %p344
      %s347 = sadd.s32 %s346, 1
      %p350 = scmp.eq.s32.totalorder %s92, 1
      %p351 = scmp.ne.s32.totalorder %s346, %s348
      %p352 = scmp.eq.s32.totalorder %s92, 0
      %p353 = por %p351, %p352
      %p354 = scmp.ne.s32.totalorder %s346, %s348
      %p355 = scmp.eq.s32.totalorder %s97, 1
      %p356 = por %p354, %p355
      %p357 = scmp.ne.s32.totalorder %s348, %s349
      %p358 = scmp.eq.s32.totalorder %s97, 0
      %p359 = por %p357, %p358
      %p360 = scmp.ne.s32.totalorder %s348, %s349
      %p361 = scmp.eq.s32.totalorder %s98, 1
      %p362 = por %p360, %p361
      %p364 = scmp.ne.s32.totalorder %s349, %s363
      %p365 = scmp.eq.s32.totalorder %s98, 0
      %p366 = por %p364, %p365
      %s368 = sadd.s32 %s367, 1
      %p371 = scmp.eq.s32.totalorder %s92, 1
      %p372 = scmp.ne.s32.totalorder %s367, %s369
      %p373 = scmp.eq.s32.totalorder %s92, 0
      %p374 = por %p372, %p373
      %p375 = scmp.ne.s32.totalorder %s367, %s369
      %p376 = scmp.eq.s32.totalorder %s97, 1
      %p377 = por %p375, %p376
      %p378 = scmp.ne.s32.totalorder %s369, %s370
      %p379 = scmp.eq.s32.totalorder %s97, 0
      %p380 = por %p378, %p379
      %p381 = scmp.ne.s32.totalorder %s369, %s370
      %p382 = scmp.eq.s32.totalorder %s98, 1
      %p383 = por %p381, %p382
      %p385 = scmp.ne.s32.totalorder %s370, %s384
      %p386 = scmp.eq.s32.totalorder %s98, 0
      %p387 = por %p385, %p386
      %s389 = sadd.s32 %s388, 1
      %p392 = scmp.eq.s32.totalorder %s92, 1
      %p393 = scmp.ne.s32.totalorder %s388, %s390
      %p394 = scmp.eq.s32.totalorder %s92, 0
      %p395 = por %p393, %p394
      %p396 = scmp.ne.s32.totalorder %s388, %s390
      %p397 = scmp.eq.s32.totalorder %s97, 1
      %p398 = por %p396, %p397
      %p399 = scmp.ne.s32.totalorder %s390, %s391
      %p400 = scmp.eq.s32.totalorder %s97, 0
      %p401 = por %p399, %p400
      %p402 = scmp.ne.s32.totalorder %s390, %s391
      %p403 = scmp.eq.s32.totalorder %s98, 1
      %p404 = por %p402, %p403
      %p406 = scmp.ne.s32.totalorder %s391, %s405
      %p407 = scmp.eq.s32.totalorder %s98, 0
      %p408 = por %p406, %p407
      %s410 = sadd.s32 %s409, 1
      %p413 = scmp.eq.s32.totalorder %s92, 1
      %p414 = scmp.ne.s32.totalorder %s409, %s411
      %p415 = scmp.eq.s32.totalorder %s92, 0
      %p416 = por %p414, %p415
      %p417 = scmp.ne.s32.totalorder %s409, %s411
      %p418 = scmp.eq.s32.totalorder %s97, 1
      %p419 = por %p417, %p418
      %p420 = scmp.ne.s32.totalorder %s411, %s412
      %p421 = scmp.eq.s32.totalorder %s97, 0
      %p422 = por %p420, %p421
      %p423 = scmp.ne.s32.totalorder %s411, %s412
      %p424 = scmp.eq.s32.totalorder %s98, 1
      %p425 = por %p423, %p424
      %p427 = scmp.ne.s32.totalorder %s412, %s426
      %p428 = scmp.eq.s32.totalorder %s98, 0
      %p429 = por %p427, %p428
      %s431 = sadd.s32 %s430, 1
      %p434 = scmp.eq.s32.totalorder %s92, 1
      %p435 = scmp.ne.s32.totalorder %s430, %s432
      %p436 = scmp.eq.s32.totalorder %s92, 0
      %p437 = por %p435, %p436
      %p438 = scmp.ne.s32.totalorder %s430, %s432
      %p439 = scmp.eq.s32.totalorder %s97, 1
      %p440 = por %p438, %p439
      %p441 = scmp.ne.s32.totalorder %s432, %s433
      %p442 = scmp.eq.s32.totalorder %s97, 0
      %p443 = por %p441, %p442
      %p444 = scmp.ne.s32.totalorder %s432, %s433
      %p445 = scmp.eq.s32.totalorder %s98, 1
      %p446 = por %p444, %p445
      %p448 = scmp.ne.s32.totalorder %s433, %s447
      %p449 = scmp.eq.s32.totalorder %s98, 0
      %p450 = por %p448, %p449
      %s452 = sadd.s32 %s451, 1
      %p455 = scmp.eq.s32.totalorder %s92, 1
      %p456 = scmp.ne.s32.totalorder %s451, %s453
      %p457 = scmp.eq.s32.totalorder %s92, 0
      %p458 = por %p456, %p457
      %p459 = scmp.ne.s32.totalorder %s451, %s453
      %p460 = scmp.eq.s32.totalorder %s97, 1
      %p461 = por %p459, %p460
      %p462 = scmp.ne.s32.totalorder %s453, %s454
      %p463 = scmp.eq.s32.totalorder %s97, 0
      %p464 = por %p462, %p463
      %p465 = scmp.ne.s32.totalorder %s453, %s454
      %p466 = scmp.eq.s32.totalorder %s98, 1
      %p467 = por %p465, %p466
      %p469 = scmp.ne.s32.totalorder %s454, %s468
      %p470 = scmp.eq.s32.totalorder %s98, 0
      %p471 = por %p469, %p470
      %s473 = sadd.s32 %s472, 1
      %p476 = scmp.eq.s32.totalorder %s92, 1
      %p477 = scmp.ne.s32.totalorder %s472, %s474
      %p478 = scmp.eq.s32.totalorder %s92, 0
      %p479 = por %p477, %p478
      %p480 = scmp.ne.s32.totalorder %s472, %s474
      %p481 = scmp.eq.s32.totalorder %s97, 1
      %p482 = por %p480, %p481
      %p483 = scmp.ne.s32.totalorder %s474, %s475
      %p484 = scmp.eq.s32.totalorder %s97, 0
      %p485 = por %p483, %p484
      %p486 = scmp.ne.s32.totalorder %s474, %s475
      %p487 = scmp.eq.s32.totalorder %s98, 1
      %p488 = por %p486, %p487
      %p490 = scmp.ne.s32.totalorder %s475, %s489
      %p491 = scmp.eq.s32.totalorder %s98, 0
      %p492 = por %p490, %p491
      %s494 = sadd.s32 %s493, 1
      %p497 = scmp.eq.s32.totalorder %s92, 1
      %p498 = scmp.ne.s32.totalorder %s493, %s495
      %p499 = scmp.eq.s32.totalorder %s92, 0
      %p500 = por %p498, %p499
      %p501 = scmp.ne.s32.totalorder %s493, %s495
      %p502 = scmp.eq.s32.totalorder %s97, 1
      %p503 = por %p501, %p502
      %p504 = scmp.ne.s32.totalorder %s495, %s496
      %p505 = scmp.eq.s32.totalorder %s97, 0
      %p506 = por %p504, %p505
      %p507 = scmp.ne.s32.totalorder %s495, %s496
      %p508 = scmp.eq.s32.totalorder %s98, 1
      %p509 = por %p507, %p508
      %p511 = scmp.ne.s32.totalorder %s496, %s510
      %p512 = scmp.eq.s32.totalorder %s98, 0
      %p513 = por %p511, %p512
      %s515 = sadd.s32 %s514, 1
      %p518 = scmp.eq.s32.totalorder %s92, 1
      %p519 = scmp.ne.s32.totalorder %s514, %s516
      %p520 = scmp.eq.s32.totalorder %s92, 0
      %p521 = por %p519, %p520
      %p522 = scmp.ne.s32.totalorder %s514, %s516
      %p523 = scmp.eq.s32.totalorder %s97, 1
      %p524 = por %p522, %p523
      %p525 = scmp.ne.s32.totalorder %s516, %s517
      %p526 = scmp.eq.s32.totalorder %s97, 0
      %p527 = por %p525, %p526
      %p528 = scmp.ne.s32.totalorder %s516, %s517
      %p529 = scmp.eq.s32.totalorder %s98, 1
      %p530 = por %p528, %p529
      %p532 = scmp.ne.s32.totalorder %s517, %s531
      %p533 = scmp.eq.s32.totalorder %s98, 0
      %p534 = por %p532, %p533
      %s536 = sadd.s32 %s535, 1
      %p539 = scmp.eq.s32.totalorder %s92, 1
      %p540 = scmp.ne.s32.totalorder %s535, %s537
      %p541 = scmp.eq.s32.totalorder %s92, 0
      %p542 = por %p540, %p541
      %p543 = scmp.ne.s32.totalorder %s535, %s537
      %p544 = scmp.eq.s32.totalorder %s97, 1
      %p545 = por %p543, %p544
      %p546 = scmp.ne.s32.totalorder %s537, %s538
      %p547 = scmp.eq.s32.totalorder %s97, 0
      %p548 = por %p546, %p547
      %p549 = scmp.ne.s32.totalorder %s537, %s538
      %p550 = scmp.eq.s32.totalorder %s98, 1
      %p551 = por %p549, %p550
      %p553 = scmp.ne.s32.totalorder %s538, %s552
      %p554 = scmp.eq.s32.totalorder %s98, 0
      %p555 = por %p553, %p554
      %s557 = sadd.s32 %s556, 1
      %p560 = scmp.eq.s32.totalorder %s92, 1
      %p561 = scmp.ne.s32.totalorder %s556, %s558
      %p562 = scmp.eq.s32.totalorder %s92, 0
      %p563 = por %p561, %p562
      %p564 = scmp.ne.s32.totalorder %s556, %s558
      %p565 = scmp.eq.s32.totalorder %s97, 1
      %p566 = por %p564, %p565
      %p567 = scmp.ne.s32.totalorder %s558, %s559
      %p568 = scmp.eq.s32.totalorder %s97, 0
      %p569 = por %p567, %p568
      %p570 = scmp.ne.s32.totalorder %s558, %s559
      %p571 = scmp.eq.s32.totalorder %s98, 1
      %p572 = por %p570, %p571
      %p574 = scmp.ne.s32.totalorder %s559, %s573
      %p575 = scmp.eq.s32.totalorder %s98, 0
      %p576 = por %p574, %p575
      %s578 = sadd.s32 %s577, 1
      %p581 = scmp.eq.s32.totalorder %s92, 1
      %p582 = scmp.ne.s32.totalorder %s577, %s579
      %p583 = scmp.eq.s32.totalorder %s92, 0
      %p584 = por %p582, %p583
      %p585 = scmp.ne.s32.totalorder %s577, %s579
      %p586 = scmp.eq.s32.totalorder %s97, 1
      %p587 = por %p585, %p586
      %p588 = scmp.ne.s32.totalorder %s579, %s580
      %p589 = scmp.eq.s32.totalorder %s97, 0
      %p590 = por %p588, %p589
      %p591 = scmp.ne.s32.totalorder %s579, %s580
      %p592 = scmp.eq.s32.totalorder %s98, 1
      %p593 = por %p591, %p592
      %p595 = scmp.ne.s32.totalorder %s580, %s594
      %p596 = scmp.eq.s32.totalorder %s98, 0
      %p597 = por %p595, %p596
      %s599 = sadd.s32 %s598, 1
      %p602 = scmp.eq.s32.totalorder %s92, 1
      %p603 = scmp.ne.s32.totalorder %s598, %s600
      %p604 = scmp.eq.s32.totalorder %s92, 0
      %p605 = por %p603, %p604
      %p606 = scmp.ne.s32.totalorder %s598, %s600
      %p607 = scmp.eq.s32.totalorder %s97, 1
      %p608 = por %p606, %p607
      %p609 = scmp.ne.s32.totalorder %s600, %s601
      %p610 = scmp.eq.s32.totalorder %s97, 0
      %p611 = por %p609, %p610
      %p612 = scmp.ne.s32.totalorder %s600, %s601
      %p613 = scmp.eq.s32.totalorder %s98, 1
      %p614 = por %p612, %p613
      %p616 = scmp.ne.s32.totalorder %s601, %s615
      %p617 = scmp.eq.s32.totalorder %s98, 0
      %p618 = por %p616, %p617
      %s620 = sadd.s32 %s619, 1
      %p623 = scmp.eq.s32.totalorder %s92, 1
      %p624 = scmp.ne.s32.totalorder %s619, %s621
      %p625 = scmp.eq.s32.totalorder %s92, 0
      %p626 = por %p624, %p625
      %p627 = scmp.ne.s32.totalorder %s619, %s621
      %p628 = scmp.eq.s32.totalorder %s97, 1
      %p629 = por %p627, %p628
      %p630 = scmp.ne.s32.totalorder %s621, %s622
      %p631 = scmp.eq.s32.totalorder %s97, 0
      %p632 = por %p630, %p631
      %p633 = scmp.ne.s32.totalorder %s621, %s622
      %p634 = scmp.eq.s32.totalorder %s98, 1
      %p635 = por %p633, %p634
      %p637 = scmp.ne.s32.totalorder %s622, %s636
      %p638 = scmp.eq.s32.totalorder %s98, 0
      %p639 = por %p637, %p638
      %s641 = sadd.s32 %s640, 1
      %p644 = scmp.eq.s32.totalorder %s92, 1
      %p645 = scmp.ne.s32.totalorder %s640, %s642
      %p646 = scmp.eq.s32.totalorder %s92, 0
      %p647 = por %p645, %p646
      %p648 = scmp.ne.s32.totalorder %s640, %s642
      %p649 = scmp.eq.s32.totalorder %s97, 1
      %p650 = por %p648, %p649
      %p651 = scmp.ne.s32.totalorder %s642, %s643
      %p652 = scmp.eq.s32.totalorder %s97, 0
      %p653 = por %p651, %p652
      %p654 = scmp.ne.s32.totalorder %s642, %s643
      %p655 = scmp.eq.s32.totalorder %s98, 1
      %p656 = por %p654, %p655
      %p658 = scmp.ne.s32.totalorder %s643, %s657
      %p659 = scmp.eq.s32.totalorder %s98, 0
      %p660 = por %p658, %p659
      %s662 = sadd.s32 %s661, 1
      %p665 = scmp.eq.s32.totalorder %s92, 1
      %p666 = scmp.ne.s32.totalorder %s661, %s663
      %p667 = scmp.eq.s32.totalorder %s92, 0
      %p668 = por %p666, %p667
      %p669 = scmp.ne.s32.totalorder %s661, %s663
      %p670 = scmp.eq.s32.totalorder %s97, 1
      %p671 = por %p669, %p670
      %p672 = scmp.ne.s32.totalorder %s663, %s664
      %p673 = scmp.eq.s32.totalorder %s97, 0
      %p674 = por %p672, %p673
      %p675 = scmp.ne.s32.totalorder %s663, %s664
      %p676 = scmp.eq.s32.totalorder %s98, 1
      %p677 = por %p675, %p676
      %p679 = scmp.ne.s32.totalorder %s664, %s678
      %p680 = scmp.eq.s32.totalorder %s98, 0
      %p681 = por %p679, %p680
      %s683 = sadd.s32 %s682, 1
      %p686 = scmp.eq.s32.totalorder %s92, 1
      %p687 = scmp.ne.s32.totalorder %s682, %s684
      %p688 = scmp.eq.s32.totalorder %s92, 0
      %p689 = por %p687, %p688
      %p690 = scmp.ne.s32.totalorder %s682, %s684
      %p691 = scmp.eq.s32.totalorder %s97, 1
      %p692 = por %p690, %p691
      %p693 = scmp.ne.s32.totalorder %s684, %s685
      %p694 = scmp.eq.s32.totalorder %s97, 0
      %p695 = por %p693, %p694
      %p696 = scmp.ne.s32.totalorder %s684, %s685
      %p697 = scmp.eq.s32.totalorder %s98, 1
      %p698 = por %p696, %p697
      %p700 = scmp.ne.s32.totalorder %s685, %s699
      %p701 = scmp.eq.s32.totalorder %s98, 0
      %p702 = por %p700, %p701
      %s704 = sadd.s32 %s703, 1
      %p707 = scmp.eq.s32.totalorder %s92, 1
      %p708 = scmp.ne.s32.totalorder %s703, %s705
      %p709 = scmp.eq.s32.totalorder %s92, 0
      %p710 = por %p708, %p709
      %p711 = scmp.ne.s32.totalorder %s703, %s705
      %p712 = scmp.eq.s32.totalorder %s97, 1
      %p713 = por %p711, %p712
      %p714 = scmp.ne.s32.totalorder %s705, %s706
      %p715 = scmp.eq.s32.totalorder %s97, 0
      %p716 = por %p714, %p715
      %p717 = scmp.ne.s32.totalorder %s705, %s706
      %p718 = scmp.eq.s32.totalorder %s98, 1
      %p719 = por %p717, %p718
      %p721 = scmp.ne.s32.totalorder %s706, %s720
      %p722 = scmp.eq.s32.totalorder %s98, 0
      %p723 = por %p721, %p722
      %s725 = sadd.s32 %s724, 1
      %p728 = scmp.eq.s32.totalorder %s92, 1
      %p729 = scmp.ne.s32.totalorder %s724, %s726
      %p730 = scmp.eq.s32.totalorder %s92, 0
      %p731 = por %p729, %p730
      %p732 = scmp.ne.s32.totalorder %s724, %s726
      %p733 = scmp.eq.s32.totalorder %s97, 1
      %p734 = por %p732, %p733
      %p735 = scmp.ne.s32.totalorder %s726, %s727
      %p736 = scmp.eq.s32.totalorder %s97, 0
      %p737 = por %p735, %p736
      %p738 = scmp.ne.s32.totalorder %s726, %s727
      %p739 = scmp.eq.s32.totalorder %s98, 1
      %p740 = por %p738, %p739
      %p742 = scmp.ne.s32.totalorder %s727, %s741
      %p743 = scmp.eq.s32.totalorder %s98, 0
      %p744 = por %p742, %p743
      %s746 = sadd.s32 %s745, 1
      %p749 = scmp.eq.s32.totalorder %s92, 1
      %p750 = scmp.ne.s32.totalorder %s745, %s747
      %p751 = scmp.eq.s32.totalorder %s92, 0
      %p752 = por %p750, %p751
      %p753 = scmp.ne.s32.totalorder %s745, %s747
      %p754 = scmp.eq.s32.totalorder %s97, 1
      %p755 = por %p753, %p754
      %p756 = scmp.ne.s32.totalorder %s747, %s748
      %p757 = scmp.eq.s32.totalorder %s97, 0
      %p758 = por %p756, %p757
      %p759 = scmp.ne.s32.totalorder %s747, %s748
      %p760 = scmp.eq.s32.totalorder %s98, 1
      %p761 = por %p759, %p760
      %p763 = scmp.ne.s32.totalorder %s748, %s762
      %p764 = scmp.eq.s32.totalorder %s98, 0
      %p765 = por %p763, %p764
      %s766 = ssub.s32 %s92, %s99
      %p767 = scmp.eq.s32.totalorder %s766, 0
      %s769 = sadd.s32 %s768, 1
      %s770 = scalar_select %p767, %s768, %s769
      %p773 = pneg %p767
      %p774 = scmp.eq.s32.totalorder %s92, 1
      %p775 = por %p773, %p774
      %p776 = scmp.ne.s32.totalorder %s768, %s771
      %p777 = scmp.eq.s32.totalorder %s92, 0
      %p778 = por %p776, %p777
      %p779 = scmp.ne.s32.totalorder %s768, %s771
      %p780 = scmp.eq.s32.totalorder %s97, 1
      %p781 = por %p779, %p780
      %p782 = scmp.ne.s32.totalorder %s771, %s772
      %p783 = scmp.eq.s32.totalorder %s97, 0
      %p784 = por %p782, %p783
      %p785 = scmp.ne.s32.totalorder %s771, %s772
      %p786 = scmp.eq.s32.totalorder %s98, 1
      %p787 = por %p785, %p786
      %p789 = scmp.ne.s32.totalorder %s772, %s788
      %p790 = scmp.eq.s32.totalorder %s98, 0
      %p791 = por %p789, %p790
      %p792 = scmp.le.s32.totalorder 1, %s92
      %p793 = scmp.lt.s32.totalorder %s92, 3
      %p794 = pnand %p792, %p793
      %p795 = pneg %p794
      // Predicated region
      $region9: #{basic_spatial_transformer_block.1} parent=5 // pred_check
        _
      $region10: #{basic_spatial_transformer_block.1} parent=5 // pred_check_branch
        %797 = sbr.rel (%p794) target = $region12
      $region11: #{basic_spatial_transformer_block.1} parent=5 // pred_region
        %s798 = ssub.s32 %s92, 1
        // Predicated region
        $region13: #{basic_spatial_transformer_block.1} parent=11 // pred_check
          %p799 = pneg %p191
        $region14: #{basic_spatial_transformer_block.1} parent=11 // pred_check_branch
          %801 = sbr.rel (%p799) target = $region16
        $region15: #{basic_spatial_transformer_block.1} parent=11 // pred_region
          %s803 = ssub.s32 2048, 2048
          %804 = vsyncadd [#allocation9], %s803
          %s805 = sshll.u32 [#allocation8], 4
          %s806 = int_to_ptr.vmem [resolvable:$true] %s805
          %811 = dma.hbm_to_vmem [thread:$0]  %s7, 2048, %s806, [#allocation9], 128, 128, 8
        $region16: #{basic_spatial_transformer_block.1} parent=11 // pred_fallthru
          _
        // Predicated region
        $region17: #{basic_spatial_transformer_block.1} parent=11 // pred_check
          %p812 = pneg %p212
        $region18: #{basic_spatial_transformer_block.1} parent=11 // pred_check_branch
          %814 = sbr.rel (%p812) target = $region20
        $region19: #{basic_spatial_transformer_block.1} parent=11 // pred_region
          %s816 = ssub.s32 128, 128
          %817 = vsyncadd [#allocation9], %s816
          %s819 = sshll.u32 [#allocation10], 4
          %s820 = int_to_ptr.vmem [resolvable:$true] %s819
          %822 = dma.hbm_to_vmem [thread:$0]  %s9, 128, %s820, [#allocation9]
        $region20: #{basic_spatial_transformer_block.1} parent=11 // pred_fallthru
          _
        // Predicated region
        $region21: #{basic_spatial_transformer_block.1} parent=11 // pred_check
          %p823 = pneg %p233
        $region22: #{basic_spatial_transformer_block.1} parent=11 // pred_check_branch
          %825 = sbr.rel (%p823) target = $region24
        $region23: #{basic_spatial_transformer_block.1} parent=11 // pred_region
          %s827 = ssub.s32 16, 16
          %828 = vsyncadd [#allocation12], %s827
          %s830 = sshll.u32 [#allocation11], 4
          %s831 = int_to_ptr.vmem [resolvable:$true] %s830
          %833 = dma.hbm_to_vmem [thread:$0]  %s11, 16, %s831, [#allocation12]
        $region24: #{basic_spatial_transformer_block.1} parent=11 // pred_fallthru
          _
        // Predicated region
        $region25: #{basic_spatial_transformer_block.1} parent=11 // pred_check
          %p834 = pneg %p254
        $region26: #{basic_spatial_transformer_block.1} parent=11 // pred_check_branch
          %836 = sbr.rel (%p834) target = $region28
        $region27: #{basic_spatial_transformer_block.1} parent=11 // pred_region
          %s838 = ssub.s32 16, 16
          %839 = vsyncadd [#allocation12], %s838
          %s841 = sshll.u32 [#allocation13], 4
          %s842 = int_to_ptr.vmem [resolvable:$true] %s841
          %844 = dma.hbm_to_vmem [thread:$0]  %s13, 16, %s842, [#allocation12]
        $region28: #{basic_spatial_transformer_block.1} parent=11 // pred_fallthru
          _
        // Predicated region
        $region29: #{basic_spatial_transformer_block.1} parent=11 // pred_check
          %p845 = pneg %p275
        $region30: #{basic_spatial_transformer_block.1} parent=11 // pred_check_branch
          %847 = sbr.rel (%p845) target = $region32
        $region31: #{basic_spatial_transformer_block.1} parent=11 // pred_region
          %s849 = ssub.s32 2048, 2048
          %850 = vsyncadd [#allocation15], %s849
          %s851 = sshll.u32 [#allocation14], 4
          %s852 = int_to_ptr.vmem [resolvable:$true] %s851
          %857 = dma.hbm_to_vmem [thread:$0]  %s15, 2048, %s852, [#allocation15], 128, 128, 8
        $region32: #{basic_spatial_transformer_block.1} parent=11 // pred_fallthru
          _
        // Predicated region
        $region33: #{basic_spatial_transformer_block.1} parent=11 // pred_check
          %p858 = pneg %p296
        $region34: #{basic_spatial_transformer_block.1} parent=11 // pred_check_branch
          %860 = sbr.rel (%p858) target = $region36
        $region35: #{basic_spatial_transformer_block.1} parent=11 // pred_region
          %s862 = ssub.s32 16, 16
          %863 = vsyncadd [#allocation15], %s862
          %s865 = sshll.u32 [#allocation16], 4
          %s866 = int_to_ptr.vmem [resolvable:$true] %s865
          %868 = dma.hbm_to_vmem [thread:$0]  %s17, 16, %s866, [#allocation15]
        $region36: #{basic_spatial_transformer_block.1} parent=11 // pred_fallthru
          _
        // Predicated region
        $region37: #{basic_spatial_transformer_block.1} parent=11 // pred_check
          %p869 = pneg %p317
        $region38: #{basic_spatial_transformer_block.1} parent=11 // pred_check_branch
          %871 = sbr.rel (%p869) target = $region40
        $region39: #{basic_spatial_transformer_block.1} parent=11 // pred_region
          %s873 = ssub.s32 2048, 2048
          %874 = vsyncadd [#allocation18], %s873
          %s875 = sshll.u32 [#allocation17], 4
          %s876 = int_to_ptr.vmem [resolvable:$true] %s875
          %881 = dma.hbm_to_vmem [thread:$0]  %s19, 2048, %s876, [#allocation18], 128, 128, 8
        $region40: #{basic_spatial_transformer_block.1} parent=11 // pred_fallthru
          _
        // Predicated region
        $region41: #{basic_spatial_transformer_block.1} parent=11 // pred_check
          %p882 = pneg %p338
        $region42: #{basic_spatial_transformer_block.1} parent=11 // pred_check_branch
          %884 = sbr.rel (%p882) target = $region44
        $region43: #{basic_spatial_transformer_block.1} parent=11 // pred_region
          %s886 = ssub.s32 16, 16
          %887 = vsyncadd [#allocation18], %s886
          %s889 = sshll.u32 [#allocation19], 4
          %s890 = int_to_ptr.vmem [resolvable:$true] %s889
          %892 = dma.hbm_to_vmem [thread:$0]  %s21, 16, %s890, [#allocation18]
        $region44: #{basic_spatial_transformer_block.1} parent=11 // pred_fallthru
          _
        // Predicated region
        $region45: #{basic_spatial_transformer_block.1} parent=11 // pred_check
          %p893 = pneg %p359
        $region46: #{basic_spatial_transformer_block.1} parent=11 // pred_check_branch
          %895 = sbr.rel (%p893) target = $region48
        $region47: #{basic_spatial_transformer_block.1} parent=11 // pred_region
          %s897 = ssub.s32 2048, 2048
          %898 = vsyncadd [#allocation21], %s897
          %s899 = sshll.u32 [#allocation20], 4
          %s900 = int_to_ptr.vmem [resolvable:$true] %s899
          %905 = dma.hbm_to_vmem [thread:$0]  %s23, 2048, %s900, [#allocation21], 128, 128, 8
        $region48: #{basic_spatial_transformer_block.1} parent=11 // pred_fallthru
          _
        // Predicated region
        $region49: #{basic_spatial_transformer_block.1} parent=11 // pred_check
          %p906 = pneg %p380
        $region50: #{basic_spatial_transformer_block.1} parent=11 // pred_check_branch
          %908 = sbr.rel (%p906) target = $region52
        $region51: #{basic_spatial_transformer_block.1} parent=11 // pred_region
          %s910 = ssub.s32 16, 16
          %911 = vsyncadd [#allocation21], %s910
          %s913 = sshll.u32 [#allocation22], 4
          %s914 = int_to_ptr.vmem [resolvable:$true] %s913
          %916 = dma.hbm_to_vmem [thread:$0]  %s25, 16, %s914, [#allocation21]
        $region52: #{basic_spatial_transformer_block.1} parent=11 // pred_fallthru
          _
        // Predicated region
        $region53: #{basic_spatial_transformer_block.1} parent=11 // pred_check
          %p917 = pneg %p401
        $region54: #{basic_spatial_transformer_block.1} parent=11 // pred_check_branch
          %919 = sbr.rel (%p917) target = $region56
        $region55: #{basic_spatial_transformer_block.1} parent=11 // pred_region
          %s921 = ssub.s32 2048, 2048
          %922 = vsyncadd [#allocation24], %s921
          %s923 = sshll.u32 [#allocation23], 4
          %s924 = int_to_ptr.vmem [resolvable:$true] %s923
          %929 = dma.hbm_to_vmem [thread:$0]  %s27, 2048, %s924, [#allocation24], 128, 128, 8
        $region56: #{basic_spatial_transformer_block.1} parent=11 // pred_fallthru
          _
        // Predicated region
        $region57: #{basic_spatial_transformer_block.1} parent=11 // pred_check
          %p930 = pneg %p422
        $region58: #{basic_spatial_transformer_block.1} parent=11 // pred_check_branch
          %932 = sbr.rel (%p930) target = $region60
        $region59: #{basic_spatial_transformer_block.1} parent=11 // pred_region
          %s934 = ssub.s32 16, 16
          %935 = vsyncadd [#allocation24], %s934
          %s937 = sshll.u32 [#allocation25], 4
          %s938 = int_to_ptr.vmem [resolvable:$true] %s937
          %940 = dma.hbm_to_vmem [thread:$0]  %s29, 16, %s938, [#allocation24]
        $region60: #{basic_spatial_transformer_block.1} parent=11 // pred_fallthru
          _
        // Predicated region
        $region61: #{basic_spatial_transformer_block.1} parent=11 // pred_check
          %p941 = pneg %p443
        $region62: #{basic_spatial_transformer_block.1} parent=11 // pred_check_branch
          %943 = sbr.rel (%p941) target = $region64
        $region63: #{basic_spatial_transformer_block.1} parent=11 // pred_region
          %s945 = ssub.s32 16, 16
          %946 = vsyncadd [#allocation27], %s945
          %s948 = sshll.u32 [#allocation26], 4
          %s949 = int_to_ptr.vmem [resolvable:$true] %s948
          %951 = dma.hbm_to_vmem [thread:$0]  %s31, 16, %s949, [#allocation27]
        $region64: #{basic_spatial_transformer_block.1} parent=11 // pred_fallthru
          _
        // Predicated region
        $region65: #{basic_spatial_transformer_block.1} parent=11 // pred_check
          %p952 = pneg %p464
        $region66: #{basic_spatial_transformer_block.1} parent=11 // pred_check_branch
          %954 = sbr.rel (%p952) target = $region68
        $region67: #{basic_spatial_transformer_block.1} parent=11 // pred_region
          %s956 = ssub.s32 16, 16
          %957 = vsyncadd [#allocation27], %s956
          %s959 = sshll.u32 [#allocation28], 4
          %s960 = int_to_ptr.vmem [resolvable:$true] %s959
          %962 = dma.hbm_to_vmem [thread:$0]  %s33, 16, %s960, [#allocation27]
        $region68: #{basic_spatial_transformer_block.1} parent=11 // pred_fallthru
          _
        // Predicated region
        $region69: #{basic_spatial_transformer_block.1} parent=11 // pred_check
          %p963 = pneg %p485
        $region70: #{basic_spatial_transformer_block.1} parent=11 // pred_check_branch
          %965 = sbr.rel (%p963) target = $region72
        $region71: #{basic_spatial_transformer_block.1} parent=11 // pred_region
          %s967 = ssub.s32 8192, 8192
          %968 = vsyncadd [#allocation30], %s967
          %s969 = sshll.u32 [#allocation29], 4
          %s970 = int_to_ptr.vmem [resolvable:$true] %s969
          %975 = dma.hbm_to_vmem [thread:$0]  %s35, 8192, %s970, [#allocation30], 512, 512, 32
        $region72: #{basic_spatial_transformer_block.1} parent=11 // pred_fallthru
          _
        // Predicated region
        $region73: #{basic_spatial_transformer_block.1} parent=11 // pred_check
          %p976 = pneg %p506
        $region74: #{basic_spatial_transformer_block.1} parent=11 // pred_check_branch
          %978 = sbr.rel (%p976) target = $region76
        $region75: #{basic_spatial_transformer_block.1} parent=11 // pred_region
          %s980 = ssub.s32 64, 64
          %981 = vsyncadd [#allocation30], %s980
          %s983 = sshll.u32 [#allocation31], 4
          %s984 = int_to_ptr.vmem [resolvable:$true] %s983
          %986 = dma.hbm_to_vmem [thread:$0]  %s37, 64, %s984, [#allocation30]
        $region76: #{basic_spatial_transformer_block.1} parent=11 // pred_fallthru
          _
        // Predicated region
        $region77: #{basic_spatial_transformer_block.1} parent=11 // pred_check
          %p987 = pneg %p527
        $region78: #{basic_spatial_transformer_block.1} parent=11 // pred_check_branch
          %989 = sbr.rel (%p987) target = $region80
        $region79: #{basic_spatial_transformer_block.1} parent=11 // pred_region
          %s991 = ssub.s32 8192, 8192
          %992 = vsyncadd [#allocation33], %s991
          %s993 = sshll.u32 [#allocation32], 4
          %s994 = int_to_ptr.vmem [resolvable:$true] %s993
          %999 = dma.hbm_to_vmem [thread:$0]  %s39, 8192, %s994, [#allocation33], 128, 128, 8
        $region80: #{basic_spatial_transformer_block.1} parent=11 // pred_fallthru
          _
        // Predicated region
        $region81: #{basic_spatial_transformer_block.1} parent=11 // pred_check
          %p1000 = pneg %p548
        $region82: #{basic_spatial_transformer_block.1} parent=11 // pred_check_branch
          %1002 = sbr.rel (%p1000) target = $region84
        $region83: #{basic_spatial_transformer_block.1} parent=11 // pred_region
          %s1004 = ssub.s32 16, 16
          %1005 = vsyncadd [#allocation33], %s1004
          %s1007 = sshll.u32 [#allocation34], 4
          %s1008 = int_to_ptr.vmem [resolvable:$true] %s1007
          %1010 = dma.hbm_to_vmem [thread:$0]  %s41, 16, %s1008, [#allocation33]
        $region84: #{basic_spatial_transformer_block.1} parent=11 // pred_fallthru
          _
        // Predicated region
        $region85: #{basic_spatial_transformer_block.1} parent=11 // pred_check
          %p1011 = pneg %p569
        $region86: #{basic_spatial_transformer_block.1} parent=11 // pred_check_branch
          %1013 = sbr.rel (%p1011) target = $region88
        $region87: #{basic_spatial_transformer_block.1} parent=11 // pred_region
          %s1015 = ssub.s32 16, 16
          %1016 = vsyncadd [#allocation36], %s1015
          %s1018 = sshll.u32 [#allocation35], 4
          %s1019 = int_to_ptr.vmem [resolvable:$true] %s1018
          %1021 = dma.hbm_to_vmem [thread:$0]  %s43, 16, %s1019, [#allocation36]
        $region88: #{basic_spatial_transformer_block.1} parent=11 // pred_fallthru
          _
        // Predicated region
        $region89: #{basic_spatial_transformer_block.1} parent=11 // pred_check
          %p1022 = pneg %p590
        $region90: #{basic_spatial_transformer_block.1} parent=11 // pred_check_branch
          %1024 = sbr.rel (%p1022) target = $region92
        $region91: #{basic_spatial_transformer_block.1} parent=11 // pred_region
          %s1026 = ssub.s32 16, 16
          %1027 = vsyncadd [#allocation36], %s1026
          %s1029 = sshll.u32 [#allocation37], 4
          %s1030 = int_to_ptr.vmem [resolvable:$true] %s1029
          %1032 = dma.hbm_to_vmem [thread:$0]  %s45, 16, %s1030, [#allocation36]
        $region92: #{basic_spatial_transformer_block.1} parent=11 // pred_fallthru
          _
        // Predicated region
        $region93: #{basic_spatial_transformer_block.1} parent=11 // pred_check
          %p1033 = pneg %p611
        $region94: #{basic_spatial_transformer_block.1} parent=11 // pred_check_branch
          %1035 = sbr.rel (%p1033) target = $region96
        $region95: #{basic_spatial_transformer_block.1} parent=11 // pred_region
          %s1037 = ssub.s32 2048, 2048
          %1038 = vsyncadd [#allocation39], %s1037
          %s1039 = sshll.u32 [#allocation38], 4
          %s1040 = int_to_ptr.vmem [resolvable:$true] %s1039
          %1045 = dma.hbm_to_vmem [thread:$0]  %s47, 2048, %s1040, [#allocation39], 128, 128, 8
        $region96: #{basic_spatial_transformer_block.1} parent=11 // pred_fallthru
          _
        // Predicated region
        $region97: #{basic_spatial_transformer_block.1} parent=11 // pred_check
          %p1046 = pneg %p632
        $region98: #{basic_spatial_transformer_block.1} parent=11 // pred_check_branch
          %1048 = sbr.rel (%p1046) target = $region100
        $region99: #{basic_spatial_transformer_block.1} parent=11 // pred_region
          %s1050 = ssub.s32 16, 16
          %1051 = vsyncadd [#allocation39], %s1050
          %s1053 = sshll.u32 [#allocation40], 4
          %s1054 = int_to_ptr.vmem [resolvable:$true] %s1053
          %1056 = dma.hbm_to_vmem [thread:$0]  %s49, 16, %s1054, [#allocation39]
        $region100: #{basic_spatial_transformer_block.1} parent=11 // pred_fallthru
          _
        // Predicated region
        $region101: #{basic_spatial_transformer_block.1} parent=11 // pred_check
          %p1057 = pneg %p653
        $region102: #{basic_spatial_transformer_block.1} parent=11 // pred_check_branch
          %1059 = sbr.rel (%p1057) target = $region104
        $region103: #{basic_spatial_transformer_block.1} parent=11 // pred_region
          %s1061 = ssub.s32 512, 512
          %1062 = vsyncadd [#allocation42], %s1061
          %s1063 = sshll.u32 [#allocation41], 4
          %s1064 = int_to_ptr.vmem [resolvable:$true] %s1063
          %1069 = dma.hbm_to_vmem [thread:$0]  %s51, 512, %s1064, [#allocation42], 128, 128, 8
        $region104: #{basic_spatial_transformer_block.1} parent=11 // pred_fallthru
          _
        // Predicated region
        $region105: #{basic_spatial_transformer_block.1} parent=11 // pred_check
          %p1070 = pneg %p674
        $region106: #{basic_spatial_transformer_block.1} parent=11 // pred_check_branch
          %1072 = sbr.rel (%p1070) target = $region108
        $region107: #{basic_spatial_transformer_block.1} parent=11 // pred_region
          %s1074 = ssub.s32 16, 16
          %1075 = vsyncadd [#allocation42], %s1074
          %s1077 = sshll.u32 [#allocation43], 4
          %s1078 = int_to_ptr.vmem [resolvable:$true] %s1077
          %1080 = dma.hbm_to_vmem [thread:$0]  %s53, 16, %s1078, [#allocation42]
        $region108: #{basic_spatial_transformer_block.1} parent=11 // pred_fallthru
          _
        // Predicated region
        $region109: #{basic_spatial_transformer_block.1} parent=11 // pred_check
          %p1081 = pneg %p695
        $region110: #{basic_spatial_transformer_block.1} parent=11 // pred_check_branch
          %1083 = sbr.rel (%p1081) target = $region112
        $region111: #{basic_spatial_transformer_block.1} parent=11 // pred_region
          %s1085 = ssub.s32 512, 512
          %1086 = vsyncadd [#allocation45], %s1085
          %s1087 = sshll.u32 [#allocation44], 4
          %s1088 = int_to_ptr.vmem [resolvable:$true] %s1087
          %1093 = dma.hbm_to_vmem [thread:$0]  %s55, 512, %s1088, [#allocation45], 128, 128, 8
        $region112: #{basic_spatial_transformer_block.1} parent=11 // pred_fallthru
          _
        // Predicated region
        $region113: #{basic_spatial_transformer_block.1} parent=11 // pred_check
          %p1094 = pneg %p716
        $region114: #{basic_spatial_transformer_block.1} parent=11 // pred_check_branch
          %1096 = sbr.rel (%p1094) target = $region116
        $region115: #{basic_spatial_transformer_block.1} parent=11 // pred_region
          %s1098 = ssub.s32 16, 16
          %1099 = vsyncadd [#allocation45], %s1098
          %s1101 = sshll.u32 [#allocation46], 4
          %s1102 = int_to_ptr.vmem [resolvable:$true] %s1101
          %1104 = dma.hbm_to_vmem [thread:$0]  %s57, 16, %s1102, [#allocation45]
        $region116: #{basic_spatial_transformer_block.1} parent=11 // pred_fallthru
          _
        // Predicated region
        $region117: #{basic_spatial_transformer_block.1} parent=11 // pred_check
          %p1105 = pneg %p737
        $region118: #{basic_spatial_transformer_block.1} parent=11 // pred_check_branch
          %1107 = sbr.rel (%p1105) target = $region120
        $region119: #{basic_spatial_transformer_block.1} parent=11 // pred_region
          %s1109 = ssub.s32 2048, 2048
          %1110 = vsyncadd [#allocation48], %s1109
          %s1111 = sshll.u32 [#allocation47], 4
          %s1112 = int_to_ptr.vmem [resolvable:$true] %s1111
          %1117 = dma.hbm_to_vmem [thread:$0]  %s59, 2048, %s1112, [#allocation48], 128, 128, 8
        $region120: #{basic_spatial_transformer_block.1} parent=11 // pred_fallthru
          _
        // Predicated region
        $region121: #{basic_spatial_transformer_block.1} parent=11 // pred_check
          %p1118 = pneg %p758
        $region122: #{basic_spatial_transformer_block.1} parent=11 // pred_check_branch
          %1120 = sbr.rel (%p1118) target = $region124
        $region123: #{basic_spatial_transformer_block.1} parent=11 // pred_region
          %s1122 = ssub.s32 16, 16
          %1123 = vsyncadd [#allocation48], %s1122
          %s1125 = sshll.u32 [#allocation49], 4
          %s1126 = int_to_ptr.vmem [resolvable:$true] %s1125
          %1128 = dma.hbm_to_vmem [thread:$0]  %s61, 16, %s1126, [#allocation48]
        $region124: #{basic_spatial_transformer_block.1} parent=11 // pred_fallthru
          _
      $region12: #{basic_spatial_transformer_block.1} parent=5 // pred_fallthru
        _
      %p1129 = scmp.lt.s32.totalorder %s92, 2
      // Predicated region
      $region125: #{basic_spatial_transformer_block.1} parent=5 // pred_check
        %p1130 = pneg %p1129
      $region126: #{basic_spatial_transformer_block.1} parent=5 // pred_check_branch
        %1132 = sbr.rel (%p1130) target = $region128
      $region127: #{basic_spatial_transformer_block.1} parent=5 // pred_region
        // Predicated region
        $region129: #{basic_spatial_transformer_block.1} parent=127 // pred_check
          %p1133 = pneg %p112
        $region130: #{basic_spatial_transformer_block.1} parent=127 // pred_check_branch
          %1135 = sbr.rel (%p1133) target = $region132
        $region131: #{basic_spatial_transformer_block.1} parent=127 // pred_region
          %s1136 = sand.u32 %s102, 1
          %s1137 = scalar_lea.sflag [#allocation3], %s1136
          %s1138 = sand.u32 %s102, 1
          %s1139 = smul.addr %s1138, 64
          %s1140 = scalar_lea.vmem [#allocation2], %s1139
          %s1142 = ssub.s32 1024, 1024
          %1143 = vsyncadd %s1137, %s1142
          %s1144 = smul.addr %s92, 8
          %s1145 = smul.addr %s1144, 128
          %s1146 = scalar_lea.hbm %s1, %s1145
          %s1147 = sshll.u32 %s1140, 4
          %s1148 = int_to_ptr.vmem [resolvable:$true] %s1147
          %1153 = dma.hbm_to_vmem [thread:$0]  %s1146, 1024, %s1148, %s1137, 128, 128, 8
        $region132: #{basic_spatial_transformer_block.1} parent=127 // pred_fallthru
          _
        // Predicated region
        $region133: #{basic_spatial_transformer_block.1} parent=127 // pred_check
          %p1154 = pneg %p138
        $region134: #{basic_spatial_transformer_block.1} parent=127 // pred_check_branch
          %1156 = sbr.rel (%p1154) target = $region136
        $region135: #{basic_spatial_transformer_block.1} parent=127 // pred_region
          %s1157 = sand.u32 %s92, 1
          %s1158 = scalar_lea.sflag [#allocation6], %s1157
          %s1159 = sand.u32 %s128, 1
          %s1160 = smul.addr %s1159, 8
          %s1161 = scalar_lea.vmem [#allocation5], %s1160
          %s1163 = ssub.s32 128, 128
          %1164 = vsyncadd %s1158, %s1163
          %s1165 = smul.addr %s92, 128
          %s1166 = scalar_lea.hbm %s3, %s1165
          %s1168 = sshll.u32 %s1161, 4
          %s1169 = int_to_ptr.vmem [resolvable:$true] %s1168
          %1171 = dma.hbm_to_vmem [thread:$0]  %s1166, 128, %s1169, %s1158
        $region136: #{basic_spatial_transformer_block.1} parent=127 // pred_fallthru
          _
        // Predicated region
        $region137: #{basic_spatial_transformer_block.1} parent=127 // pred_check
          %p1172 = pneg %p164
        $region138: #{basic_spatial_transformer_block.1} parent=127 // pred_check_branch
          %1174 = sbr.rel (%p1172) target = $region140
        $region139: #{basic_spatial_transformer_block.1} parent=127 // pred_region
          %s1175 = sand.u32 %s92, 1
          %s1176 = scalar_lea.sflag [#allocation6], %s1175
          %s1177 = sand.u32 %s154, 1
          %s1178 = scalar_lea.vmem [#allocation7], %s1177
          %s1180 = ssub.s32 16, 16
          %1181 = vsyncadd %s1176, %s1180
          %s1182 = smul.addr %s92, 16
          %s1183 = scalar_lea.hbm %s5, %s1182
          %s1185 = sshll.u32 %s1178, 4
          %s1186 = int_to_ptr.vmem [resolvable:$true] %s1185
          %1188 = dma.hbm_to_vmem [thread:$0]  %s1183, 16, %s1186, %s1176
        $region140: #{basic_spatial_transformer_block.1} parent=127 // pred_fallthru
          _
      $region128: #{basic_spatial_transformer_block.1} parent=5 // pred_fallthru
        _
      %p1189 = scmp.le.s32.totalorder 1, %s92
      %p1190 = scmp.lt.s32.totalorder %s92, 3
      %p1191 = pnand %p1189, %p1190
      %p1192 = pneg %p1191
      // Predicated region
      $region141: #{basic_spatial_transformer_block.1} parent=5 // pred_check
        _
      $region142: #{basic_spatial_transformer_block.1} parent=5 // pred_check_branch
        %1194 = sbr.rel (%p1191) target = $region144
      $region143: #{basic_spatial_transformer_block.1} parent=5 // pred_region
        %s1195 = ssub.s32 %s92, 1
        %s1196 = sand.u32 %s105, 1
        %s1197 = scalar_lea.sflag [#allocation3], %s1196
        %s1198 = sand.u32 %s105, 1
        %s1199 = smul.addr %s1198, 64
        %s1200 = scalar_lea.vmem [#allocation2], %s1199
        // Predicated region
        $region145: #{basic_spatial_transformer_block.1} parent=143 // pred_check
          %p1201 = pneg %p118
        $region146: #{basic_spatial_transformer_block.1} parent=143 // pred_check_branch
          %1203 = sbr.rel (%p1201) target = $region148
        $region147: #{basic_spatial_transformer_block.1} parent=143 // pred_region
          %1204 = dma.done %s1197, 1024
        $region148: #{basic_spatial_transformer_block.1} parent=143 // pred_fallthru
          _
        %s1205 = sand.u32 %s97, 1
        %s1206 = scalar_lea.sflag [#allocation6], %s1205
        %s1207 = sand.u32 %s131, 1
        %s1208 = smul.addr %s1207, 8
        %s1209 = scalar_lea.vmem [#allocation5], %s1208
        // Predicated region
        $region149: #{basic_spatial_transformer_block.1} parent=143 // pred_check
          %p1210 = pneg %p144
        $region150: #{basic_spatial_transformer_block.1} parent=143 // pred_check_branch
          %1212 = sbr.rel (%p1210) target = $region152
        $region151: #{basic_spatial_transformer_block.1} parent=143 // pred_region
          %1213 = dma.done %s1206, 128
        $region152: #{basic_spatial_transformer_block.1} parent=143 // pred_fallthru
          _
        %s1214 = sand.u32 %s97, 1
        %s1215 = scalar_lea.sflag [#allocation6], %s1214
        %s1216 = sand.u32 %s157, 1
        %s1217 = scalar_lea.vmem [#allocation7], %s1216
        // Predicated region
        $region153: #{basic_spatial_transformer_block.1} parent=143 // pred_check
          %p1218 = pneg %p170
        $region154: #{basic_spatial_transformer_block.1} parent=143 // pred_check_branch
          %1220 = sbr.rel (%p1218) target = $region156
        $region155: #{basic_spatial_transformer_block.1} parent=143 // pred_region
          %1221 = dma.done %s1215, 16
        $region156: #{basic_spatial_transformer_block.1} parent=143 // pred_fallthru
          _
        // Predicated region
        $region157: #{basic_spatial_transformer_block.1} parent=143 // pred_check
          %p1222 = pneg %p191
        $region158: #{basic_spatial_transformer_block.1} parent=143 // pred_check_branch
          %1224 = sbr.rel (%p1222) target = $region160
        $region159: #{basic_spatial_transformer_block.1} parent=143 // pred_region
          %1225 = dma.done [#allocation9], 2048
        $region160: #{basic_spatial_transformer_block.1} parent=143 // pred_fallthru
          _
        // Predicated region
        $region161: #{basic_spatial_transformer_block.1} parent=143 // pred_check
          %p1226 = pneg %p212
        $region162: #{basic_spatial_transformer_block.1} parent=143 // pred_check_branch
          %1228 = sbr.rel (%p1226) target = $region164
        $region163: #{basic_spatial_transformer_block.1} parent=143 // pred_region
          %1229 = dma.done [#allocation9], 128
        $region164: #{basic_spatial_transformer_block.1} parent=143 // pred_fallthru
          _
        // Predicated region
        $region165: #{basic_spatial_transformer_block.1} parent=143 // pred_check
          %p1230 = pneg %p233
        $region166: #{basic_spatial_transformer_block.1} parent=143 // pred_check_branch
          %1232 = sbr.rel (%p1230) target = $region168
        $region167: #{basic_spatial_transformer_block.1} parent=143 // pred_region
          %1233 = dma.done [#allocation12], 16
        $region168: #{basic_spatial_transformer_block.1} parent=143 // pred_fallthru
          _
        // Predicated region
        $region169: #{basic_spatial_transformer_block.1} parent=143 // pred_check
          %p1234 = pneg %p254
        $region170: #{basic_spatial_transformer_block.1} parent=143 // pred_check_branch
          %1236 = sbr.rel (%p1234) target = $region172
        $region171: #{basic_spatial_transformer_block.1} parent=143 // pred_region
          %1237 = dma.done [#allocation12], 16
        $region172: #{basic_spatial_transformer_block.1} parent=143 // pred_fallthru
          _
        // Predicated region
        $region173: #{basic_spatial_transformer_block.1} parent=143 // pred_check
          %p1238 = pneg %p275
        $region174: #{basic_spatial_transformer_block.1} parent=143 // pred_check_branch
          %1240 = sbr.rel (%p1238) target = $region176
        $region175: #{basic_spatial_transformer_block.1} parent=143 // pred_region
          %1241 = dma.done [#allocation15], 2048
        $region176: #{basic_spatial_transformer_block.1} parent=143 // pred_fallthru
          _
        // Predicated region
        $region177: #{basic_spatial_transformer_block.1} parent=143 // pred_check
          %p1242 = pneg %p296
        $region178: #{basic_spatial_transformer_block.1} parent=143 // pred_check_branch
          %1244 = sbr.rel (%p1242) target = $region180
        $region179: #{basic_spatial_transformer_block.1} parent=143 // pred_region
          %1245 = dma.done [#allocation15], 16
        $region180: #{basic_spatial_transformer_block.1} parent=143 // pred_fallthru
          _
        // Predicated region
        $region181: #{basic_spatial_transformer_block.1} parent=143 // pred_check
          %p1246 = pneg %p317
        $region182: #{basic_spatial_transformer_block.1} parent=143 // pred_check_branch
          %1248 = sbr.rel (%p1246) target = $region184
        $region183: #{basic_spatial_transformer_block.1} parent=143 // pred_region
          %1249 = dma.done [#allocation18], 2048
        $region184: #{basic_spatial_transformer_block.1} parent=143 // pred_fallthru
          _
        // Predicated region
        $region185: #{basic_spatial_transformer_block.1} parent=143 // pred_check
          %p1250 = pneg %p338
        $region186: #{basic_spatial_transformer_block.1} parent=143 // pred_check_branch
          %1252 = sbr.rel (%p1250) target = $region188
        $region187: #{basic_spatial_transformer_block.1} parent=143 // pred_region
          %1253 = dma.done [#allocation18], 16
        $region188: #{basic_spatial_transformer_block.1} parent=143 // pred_fallthru
          _
        // Predicated region
        $region189: #{basic_spatial_transformer_block.1} parent=143 // pred_check
          %p1254 = pneg %p359
        $region190: #{basic_spatial_transformer_block.1} parent=143 // pred_check_branch
          %1256 = sbr.rel (%p1254) target = $region192
        $region191: #{basic_spatial_transformer_block.1} parent=143 // pred_region
          %1257 = dma.done [#allocation21], 2048
        $region192: #{basic_spatial_transformer_block.1} parent=143 // pred_fallthru
          _
        // Predicated region
        $region193: #{basic_spatial_transformer_block.1} parent=143 // pred_check
          %p1258 = pneg %p380
        $region194: #{basic_spatial_transformer_block.1} parent=143 // pred_check_branch
          %1260 = sbr.rel (%p1258) target = $region196
        $region195: #{basic_spatial_transformer_block.1} parent=143 // pred_region
          %1261 = dma.done [#allocation21], 16
        $region196: #{basic_spatial_transformer_block.1} parent=143 // pred_fallthru
          _
        // Predicated region
        $region197: #{basic_spatial_transformer_block.1} parent=143 // pred_check
          %p1262 = pneg %p401
        $region198: #{basic_spatial_transformer_block.1} parent=143 // pred_check_branch
          %1264 = sbr.rel (%p1262) target = $region200
        $region199: #{basic_spatial_transformer_block.1} parent=143 // pred_region
          %1265 = dma.done [#allocation24], 2048
        $region200: #{basic_spatial_transformer_block.1} parent=143 // pred_fallthru
          _
        // Predicated region
        $region201: #{basic_spatial_transformer_block.1} parent=143 // pred_check
          %p1266 = pneg %p422
        $region202: #{basic_spatial_transformer_block.1} parent=143 // pred_check_branch
          %1268 = sbr.rel (%p1266) target = $region204
        $region203: #{basic_spatial_transformer_block.1} parent=143 // pred_region
          %1269 = dma.done [#allocation24], 16
        $region204: #{basic_spatial_transformer_block.1} parent=143 // pred_fallthru
          _
        // Predicated region
        $region205: #{basic_spatial_transformer_block.1} parent=143 // pred_check
          %p1270 = pneg %p443
        $region206: #{basic_spatial_transformer_block.1} parent=143 // pred_check_branch
          %1272 = sbr.rel (%p1270) target = $region208
        $region207: #{basic_spatial_transformer_block.1} parent=143 // pred_region
          %1273 = dma.done [#allocation27], 16
        $region208: #{basic_spatial_transformer_block.1} parent=143 // pred_fallthru
          _
        // Predicated region
        $region209: #{basic_spatial_transformer_block.1} parent=143 // pred_check
          %p1274 = pneg %p464
        $region210: #{basic_spatial_transformer_block.1} parent=143 // pred_check_branch
          %1276 = sbr.rel (%p1274) target = $region212
        $region211: #{basic_spatial_transformer_block.1} parent=143 // pred_region
          %1277 = dma.done [#allocation27], 16
        $region212: #{basic_spatial_transformer_block.1} parent=143 // pred_fallthru
          _
        // Predicated region
        $region213: #{basic_spatial_transformer_block.1} parent=143 // pred_check
          %p1278 = pneg %p485
        $region214: #{basic_spatial_transformer_block.1} parent=143 // pred_check_branch
          %1280 = sbr.rel (%p1278) target = $region216
        $region215: #{basic_spatial_transformer_block.1} parent=143 // pred_region
          %1281 = dma.done [#allocation30], 8192
        $region216: #{basic_spatial_transformer_block.1} parent=143 // pred_fallthru
          _
        // Predicated region
        $region217: #{basic_spatial_transformer_block.1} parent=143 // pred_check
          %p1282 = pneg %p506
        $region218: #{basic_spatial_transformer_block.1} parent=143 // pred_check_branch
          %1284 = sbr.rel (%p1282) target = $region220
        $region219: #{basic_spatial_transformer_block.1} parent=143 // pred_region
          %1285 = dma.done [#allocation30], 64
        $region220: #{basic_spatial_transformer_block.1} parent=143 // pred_fallthru
          _
        // Predicated region
        $region221: #{basic_spatial_transformer_block.1} parent=143 // pred_check
          %p1286 = pneg %p527
        $region222: #{basic_spatial_transformer_block.1} parent=143 // pred_check_branch
          %1288 = sbr.rel (%p1286) target = $region224
        $region223: #{basic_spatial_transformer_block.1} parent=143 // pred_region
          %1289 = dma.done [#allocation33], 8192
        $region224: #{basic_spatial_transformer_block.1} parent=143 // pred_fallthru
          _
        // Predicated region
        $region225: #{basic_spatial_transformer_block.1} parent=143 // pred_check
          %p1290 = pneg %p548
        $region226: #{basic_spatial_transformer_block.1} parent=143 // pred_check_branch
          %1292 = sbr.rel (%p1290) target = $region228
        $region227: #{basic_spatial_transformer_block.1} parent=143 // pred_region
          %1293 = dma.done [#allocation33], 16
        $region228: #{basic_spatial_transformer_block.1} parent=143 // pred_fallthru
          _
        // Predicated region
        $region229: #{basic_spatial_transformer_block.1} parent=143 // pred_check
          %p1294 = pneg %p569
        $region230: #{basic_spatial_transformer_block.1} parent=143 // pred_check_branch
          %1296 = sbr.rel (%p1294) target = $region232
        $region231: #{basic_spatial_transformer_block.1} parent=143 // pred_region
          %1297 = dma.done [#allocation36], 16
        $region232: #{basic_spatial_transformer_block.1} parent=143 // pred_fallthru
          _
        // Predicated region
        $region233: #{basic_spatial_transformer_block.1} parent=143 // pred_check
          %p1298 = pneg %p590
        $region234: #{basic_spatial_transformer_block.1} parent=143 // pred_check_branch
          %1300 = sbr.rel (%p1298) target = $region236
        $region235: #{basic_spatial_transformer_block.1} parent=143 // pred_region
          %1301 = dma.done [#allocation36], 16
        $region236: #{basic_spatial_transformer_block.1} parent=143 // pred_fallthru
          _
        // Predicated region
        $region237: #{basic_spatial_transformer_block.1} parent=143 // pred_check
          %p1302 = pneg %p611
        $region238: #{basic_spatial_transformer_block.1} parent=143 // pred_check_branch
          %1304 = sbr.rel (%p1302) target = $region240
        $region239: #{basic_spatial_transformer_block.1} parent=143 // pred_region
          %1305 = dma.done [#allocation39], 2048
        $region240: #{basic_spatial_transformer_block.1} parent=143 // pred_fallthru
          _
        // Predicated region
        $region241: #{basic_spatial_transformer_block.1} parent=143 // pred_check
          %p1306 = pneg %p632
        $region242: #{basic_spatial_transformer_block.1} parent=143 // pred_check_branch
          %1308 = sbr.rel (%p1306) target = $region244
        $region243: #{basic_spatial_transformer_block.1} parent=143 // pred_region
          %1309 = dma.done [#allocation39], 16
        $region244: #{basic_spatial_transformer_block.1} parent=143 // pred_fallthru
          _
        // Predicated region
        $region245: #{basic_spatial_transformer_block.1} parent=143 // pred_check
          %p1310 = pneg %p653
        $region246: #{basic_spatial_transformer_block.1} parent=143 // pred_check_branch
          %1312 = sbr.rel (%p1310) target = $region248
        $region247: #{basic_spatial_transformer_block.1} parent=143 // pred_region
          %1313 = dma.done [#allocation42], 512
        $region248: #{basic_spatial_transformer_block.1} parent=143 // pred_fallthru
          _
        // Predicated region
        $region249: #{basic_spatial_transformer_block.1} parent=143 // pred_check
          %p1314 = pneg %p674
        $region250: #{basic_spatial_transformer_block.1} parent=143 // pred_check_branch
          %1316 = sbr.rel (%p1314) target = $region252
        $region251: #{basic_spatial_transformer_block.1} parent=143 // pred_region
          %1317 = dma.done [#allocation42], 16
        $region252: #{basic_spatial_transformer_block.1} parent=143 // pred_fallthru
          _
        // Predicated region
        $region253: #{basic_spatial_transformer_block.1} parent=143 // pred_check
          %p1318 = pneg %p695
        $region254: #{basic_spatial_transformer_block.1} parent=143 // pred_check_branch
          %1320 = sbr.rel (%p1318) target = $region256
        $region255: #{basic_spatial_transformer_block.1} parent=143 // pred_region
          %1321 = dma.done [#allocation45], 512
        $region256: #{basic_spatial_transformer_block.1} parent=143 // pred_fallthru
          _
        // Predicated region
        $region257: #{basic_spatial_transformer_block.1} parent=143 // pred_check
          %p1322 = pneg %p716
        $region258: #{basic_spatial_transformer_block.1} parent=143 // pred_check_branch
          %1324 = sbr.rel (%p1322) target = $region260
        $region259: #{basic_spatial_transformer_block.1} parent=143 // pred_region
          %1325 = dma.done [#allocation45], 16
        $region260: #{basic_spatial_transformer_block.1} parent=143 // pred_fallthru
          _
        // Predicated region
        $region261: #{basic_spatial_transformer_block.1} parent=143 // pred_check
          %p1326 = pneg %p737
        $region262: #{basic_spatial_transformer_block.1} parent=143 // pred_check_branch
          %1328 = sbr.rel (%p1326) target = $region264
        $region263: #{basic_spatial_transformer_block.1} parent=143 // pred_region
          %1329 = dma.done [#allocation48], 2048
        $region264: #{basic_spatial_transformer_block.1} parent=143 // pred_fallthru
          _
        // Predicated region
        $region265: #{basic_spatial_transformer_block.1} parent=143 // pred_check
          %p1330 = pneg %p758
        $region266: #{basic_spatial_transformer_block.1} parent=143 // pred_check_branch
          %1332 = sbr.rel (%p1330) target = $region268
        $region267: #{basic_spatial_transformer_block.1} parent=143 // pred_region
          %1333 = dma.done [#allocation48], 16
        $region268: #{basic_spatial_transformer_block.1} parent=143 // pred_fallthru
          _
        %s1334 = sand.u32 %s105, 1
        %s1335 = scalar_lea.sflag [#allocation3], %s1334
        %s1336 = sand.u32 %s105, 1
        %s1337 = smul.addr %s1336, 64
        %s1338 = scalar_lea.vmem [#allocation2], %s1337
        %p1339 = pneg %p118
        %p1340 = pneg %p115
        %s1341 = sand.u32 %s97, 1
        %s1342 = scalar_lea.sflag [#allocation6], %s1341
        %s1343 = sand.u32 %s131, 1
        %s1344 = smul.addr %s1343, 8
        %s1345 = scalar_lea.vmem [#allocation5], %s1344
        %p1346 = pneg %p144
        %p1347 = pneg %p141
        %s1348 = sand.u32 %s97, 1
        %s1349 = scalar_lea.sflag [#allocation6], %s1348
        %s1350 = sand.u32 %s157, 1
        %s1351 = scalar_lea.vmem [#allocation7], %s1350
        %p1352 = pneg %p170
        %p1353 = pneg %p167
        %p1354 = pneg %p191
        %p1355 = pneg %p188
        %p1356 = pneg %p212
        %p1357 = pneg %p209
        %p1358 = pneg %p233
        %p1359 = pneg %p230
        %p1360 = pneg %p254
        %p1361 = pneg %p251
        %p1362 = pneg %p275
        %p1363 = pneg %p272
        %p1364 = pneg %p296
        %p1365 = pneg %p293
        %p1366 = pneg %p317
        %p1367 = pneg %p314
        %p1368 = pneg %p338
        %p1369 = pneg %p335
        %p1370 = pneg %p359
        %p1371 = pneg %p356
        %p1372 = pneg %p380
        %p1373 = pneg %p377
        %p1374 = pneg %p401
        %p1375 = pneg %p398
        %p1376 = pneg %p422
        %p1377 = pneg %p419
        %p1378 = pneg %p443
        %p1379 = pneg %p440
        %p1380 = pneg %p464
        %p1381 = pneg %p461
        %p1382 = pneg %p485
        %p1383 = pneg %p482
        %p1384 = pneg %p506
        %p1385 = pneg %p503
        %p1386 = pneg %p527
        %p1387 = pneg %p524
        %p1388 = pneg %p548
        %p1389 = pneg %p545
        %p1390 = pneg %p569
        %p1391 = pneg %p566
        %p1392 = pneg %p590
        %p1393 = pneg %p587
        %p1394 = pneg %p611
        %p1395 = pneg %p608
        %p1396 = pneg %p632
        %p1397 = pneg %p629
        %p1398 = pneg %p653
        %p1399 = pneg %p650
        %p1400 = pneg %p674
        %p1401 = pneg %p671
        %p1402 = pneg %p695
        %p1403 = pneg %p692
        %p1404 = pneg %p716
        %p1405 = pneg %p713
        %p1406 = pneg %p737
        %p1407 = pneg %p734
        %p1408 = pneg %p758
        %p1409 = pneg %p755
        %p1410 = pneg %p784
        %p1411 = pneg %p781
        %s1412 = sand.u32 %s771, 1
        %s1413 = scalar_lea.sflag [#allocation4], %s1412
        %s1414 = sand.u32 %s771, 1
        %s1415 = smul.addr %s1414, 64
        %s1416 = scalar_lea.vmem [#allocation50], %s1415
        %v1417 = vld [vmem:[#allocation8] sm:$0xff]
        %v1418 = vld [vmem:[#allocation8 + $0x8] sm:$0xff]
        %v1419 = vld [vmem:[#allocation8 + $0x10] sm:$0xff]
        %v1420 = vld [vmem:[#allocation8 + $0x18] sm:$0xff]
        %v1421 = vld [vmem:[#allocation8 + $0x20] sm:$0xff]
        %v1422 = vld [vmem:[#allocation8 + $0x28] sm:$0xff]
        %v1423 = vld [vmem:[#allocation8 + $0x30] sm:$0xff]
        %v1424 = vld [vmem:[#allocation8 + $0x38] sm:$0xff]
        %v1425 = vld [vmem:[#allocation8 + $0x40] sm:$0xff]
        %v1426 = vld [vmem:[#allocation8 + $0x48] sm:$0xff]
        %v1427 = vld [vmem:[#allocation8 + $0x50] sm:$0xff]
        %v1428 = vld [vmem:[#allocation8 + $0x58] sm:$0xff]
        %v1429 = vld [vmem:[#allocation8 + $0x60] sm:$0xff]
        %v1430 = vld [vmem:[#allocation8 + $0x68] sm:$0xff]
        %v1431 = vld [vmem:[#allocation8 + $0x70] sm:$0xff]
        %v1432 = vld [vmem:[#allocation8 + $0x78] sm:$0xff]
        %v1433 = vld [vmem:[#allocation10] sm:$0xff]
        %v1434 = vld [vmem:[%s1200] sm:$0xff]
        %v1435 = vld [vmem:[%s1200 + $0x8] sm:$0xff]
        %v1436 = vld [vmem:[%s1200 + $0x10] sm:$0xff]
        %v1437 = vld [vmem:[%s1200 + $0x18] sm:$0xff]
        %v1438 = vld [vmem:[%s1200 + $0x20] sm:$0xff]
        %v1439 = vld [vmem:[%s1200 + $0x28] sm:$0xff]
        %v1440 = vld [vmem:[%s1200 + $0x30] sm:$0xff]
        %v1441 = vld [vmem:[%s1200 + $0x38] sm:$0xff]
        %v1442 = vld [vmem:[#allocation11] sm:$0x1]
        %v1443 = vld [vmem:[#allocation13] sm:$0x1]
        %v1444 = vadd.f32 %v1434, %v1435
        %v1445 = vadd.f32 %v1444, %v1436
        %v1446 = vadd.f32 %v1445, %v1437
        %v1447 = vadd.f32 %v1446, %v1438
        %v1448 = vadd.f32 %v1447, %v1439
        %v1449 = vadd.f32 %v1448, %v1440
        %v1450 = vadd.f32 %v1449, %v1441
        %v1451 = vrot.slane %v1450, 4
        %v1452 = vadd.f32 %v1450, %v1451
        %v1453 = vrot.slane %v1452, 2
        %v1454 = vadd.f32 %v1452, %v1453
        %v1455 = vrot.slane %v1454, 1
        %v1456 = vadd.f32 %v1454, %v1455
        %1457 = vmatprep.subr.mxu0 0.0
        %1458 = vmatpush1.msra.mxu0 %v1417
        %1459 = vmatprep.subr.mxu0 0.0
        %1460 = vmatpush1.msra.mxu0 %v1418
        %1461 = vmatprep.subr.mxu0 0.0
        %1462 = vmatpush1.msra.mxu0 %v1419
        %1463 = vmatprep.subr.mxu0 0.0
        %1464 = vmatpush1.msra.mxu0 %v1420
        %1465 = vmatprep.subr.mxu0 0.0
        %1466 = vmatpush1.msra.mxu0 %v1421
        %1467 = vmatprep.subr.mxu0 0.0
        %1468 = vmatpush1.msra.mxu0 %v1422
        %1469 = vmatprep.subr.mxu0 0.0
        %1470 = vmatpush1.msra.mxu0 %v1423
        %1471 = vmatprep.subr.mxu0 0.0
        %1472 = vmatpush1.msra.mxu0 %v1424
        %1473 = vmatprep.subr.mxu0 0.0
        %1474 = vmatpush1.msra.mxu0 %v1425
        %1475 = vmatprep.subr.mxu0 0.0
        %1476 = vmatpush1.msra.mxu0 %v1426
        %1477 = vmatprep.subr.mxu0 0.0
        %1478 = vmatpush1.msra.mxu0 %v1427
        %1479 = vmatprep.subr.mxu0 0.0
        %1480 = vmatpush1.msra.mxu0 %v1428
        %1481 = vmatprep.subr.mxu0 0.0
        %1482 = vmatpush1.msra.mxu0 %v1429
        %1483 = vmatprep.subr.mxu0 0.0
        %1484 = vmatpush1.msra.mxu0 %v1430
        %1485 = vmatprep.subr.mxu0 0.0
        %1486 = vmatpush1.msra.mxu0 %v1431
        %1487 = vmatprep.subr.mxu0 0.0
        %1488 = vmatpush1.msra.mxu0 %v1432
        %1489 = vmatprep.subr.mxu0 0.0
        %1490 = vmatpush1.msra.mxu0 0.0
        %1491 = vmatprep.subr.mxu0 0.0
        %1492 = vmatpush1.msra.mxu0 0.0
        %1493 = vmatprep.subr.mxu0 0.0
        %1494 = vmatpush1.msra.mxu0 0.0
        %1495 = vmatprep.subr.mxu0 0.0
        %1496 = vmatpush1.msra.mxu0 0.0
        %1497 = vmatprep.subr.mxu0 0.0
        %1498 = vmatpush1.msra.mxu0 0.0
        %1499 = vmatprep.subr.mxu0 0.0
        %1500 = vmatpush1.msra.mxu0 0.0
        %1501 = vmatprep.subr.mxu0 0.0
        %1502 = vmatpush1.msra.mxu0 0.0
        %1503 = vmatprep.subr.mxu0 0.0
        %1504 = vmatpush1.msra.mxu0 0.0
        %1505 = vmatprep.subr.mxu0 0.0
        %1506 = vmatpush1.msra.mxu0 0.0
        %1507 = vmatprep.subr.mxu0 0.0
        %1508 = vmatpush1.msra.mxu0 0.0
        %1509 = vmatprep.subr.mxu0 0.0
        %1510 = vmatpush1.msra.mxu0 0.0
        %1511 = vmatprep.subr.mxu0 0.0
        %1512 = vmatpush1.msra.mxu0 0.0
        %1513 = vmatprep.subr.mxu0 0.0
        %1514 = vmatpush1.msra.mxu0 0.0
        %1515 = vmatprep.subr.mxu0 0.0
        %1516 = vmatpush1.msra.mxu0 0.0
        %1517 = vmatprep.subr.mxu0 0.0
        %1518 = vmatpush1.msra.mxu0 0.0
        %1519 = vmatprep.subr.mxu0 0.0
        %1520 = vmatpush1.msra.mxu0 0.0
        %1521 = vmatprep.mubr.f32.mxu0 0.0
        %1522 = vmatmul.mubr.f32.gmra.mrb[0].mxu0 %v1456
        %v1523 = vpop.f32.mrb[0].mxu0
        %v1524 = vadd.f32 0.0, %v1523
        %v1525 = vpop.f32.mrb[0].mxu0
        %1526 = vdwg.mxu0
        %vm1527 = vcmask 64512
        %v1529 = vsel %vm1527, %v1524, 0
        %1531 = vmatprep.subr.mxu0 0.0
        %1532 = vmatpush1.msra.mxu0 %v1433
        %1533 = vmatprep.subr.mxu0 0.0
        %1534 = vmatpush1.msra.mxu0 0.0
        %1535 = vmatprep.subr.mxu0 0.0
        %1536 = vmatpush1.msra.mxu0 0.0
        %1537 = vmatprep.subr.mxu0 0.0
        %1538 = vmatpush1.msra.mxu0 0.0
        %1539 = vmatprep.subr.mxu0 0.0
        %1540 = vmatpush1.msra.mxu0 0.0
        %1541 = vmatprep.subr.mxu0 0.0
        %1542 = vmatpush1.msra.mxu0 0.0
        %1543 = vmatprep.subr.mxu0 0.0
        %1544 = vmatpush1.msra.mxu0 0.0
        %1545 = vmatprep.subr.mxu0 0.0
        %1546 = vmatpush1.msra.mxu0 0.0
        %1547 = vmatprep.subr.mxu0 0.0
        %1548 = vmatpush1.msra.mxu0 0.0
        %1549 = vmatprep.subr.mxu0 0.0
        %1550 = vmatpush1.msra.mxu0 0.0
        %1551 = vmatprep.subr.mxu0 0.0
        %1552 = vmatpush1.msra.mxu0 0.0
        %1553 = vmatprep.subr.mxu0 0.0
        %1554 = vmatpush1.msra.mxu0 0.0
        %1555 = vmatprep.subr.mxu0 0.0
        %1556 = vmatpush1.msra.mxu0 0.0
        %1557 = vmatprep.subr.mxu0 0.0
        %1558 = vmatpush1.msra.mxu0 0.0
        %1559 = vmatprep.subr.mxu0 0.0
        %1560 = vmatpush1.msra.mxu0 0.0
        %1561 = vmatprep.subr.mxu0 0.0
        %1562 = vmatpush1.msra.mxu0 0.0
        %1563 = vmatprep.subr.mxu0 0.0
        %1564 = vmatpush1.msra.mxu0 0.0
        %1565 = vmatprep.subr.mxu0 0.0
        %1566 = vmatpush1.msra.mxu0 0.0
        %1567 = vmatprep.subr.mxu0 0.0
        %1568 = vmatpush1.msra.mxu0 0.0
        %1569 = vmatprep.subr.mxu0 0.0
        %1570 = vmatpush1.msra.mxu0 0.0
        %1571 = vmatprep.subr.mxu0 0.0
        %1572 = vmatpush1.msra.mxu0 0.0
        %1573 = vmatprep.subr.mxu0 0.0
        %1574 = vmatpush1.msra.mxu0 0.0
        %1575 = vmatprep.subr.mxu0 0.0
        %1576 = vmatpush1.msra.mxu0 0.0
        %1577 = vmatprep.subr.mxu0 0.0
        %1578 = vmatpush1.msra.mxu0 0.0
        %1579 = vmatprep.subr.mxu0 0.0
        %1580 = vmatpush1.msra.mxu0 0.0
        %1581 = vmatprep.subr.mxu0 0.0
        %1582 = vmatpush1.msra.mxu0 0.0
        %1583 = vmatprep.subr.mxu0 0.0
        %1584 = vmatpush1.msra.mxu0 0.0
        %1585 = vmatprep.subr.mxu0 0.0
        %1586 = vmatpush1.msra.mxu0 0.0
        %1587 = vmatprep.subr.mxu0 0.0
        %1588 = vmatpush1.msra.mxu0 0.0
        %1589 = vmatprep.subr.mxu0 0.0
        %1590 = vmatpush1.msra.mxu0 0.0
        %1591 = vmatprep.subr.mxu0 0.0
        %1592 = vmatpush1.msra.mxu0 0.0
        %1593 = vmatprep.subr.mxu0 0.0
        %1594 = vmatpush1.msra.mxu0 0.0
        %1595 = vmatprep.mubr.f32.mxu0 0.0
        %1596 = vmatmul.mubr.f32.gmra.mrb[0].mxu0 %v1529
        %v1597 = vpop.f32.mrb[0].mxu0
        %v1598 = vadd.f32 0.0, %v1597
        %v1599 = vpop.f32.mrb[0].mxu0
        %1600 = vdwg.mxu0
        %v1601 = vlaneseq
        %v1602 = vshrl.u32 %v1601, 7
        %v1603 = vsub.s32 0, %v1602
        %v1604 = vrot.slane %v1598, %v1603
        %v1605 = vsub.f32 %v1434, %v1604
        %v1606 = vsub.f32 %v1435, %v1604
        %v1607 = vsub.f32 %v1436, %v1604
        %v1608 = vsub.f32 %v1437, %v1604
        %v1609 = vsub.f32 %v1438, %v1604
        %v1610 = vsub.f32 %v1439, %v1604
        %v1611 = vsub.f32 %v1440, %v1604
        %v1612 = vsub.f32 %v1441, %v1604
        %v1613 = vmul.f32 %v1605, %v1605
        %v1614 = vmul.f32 %v1606, %v1606
        %v1615 = vmul.f32 %v1607, %v1607
        %v1616 = vmul.f32 %v1608, %v1608
        %v1617 = vmul.f32 %v1609, %v1609
        %v1618 = vmul.f32 %v1610, %v1610
        %v1619 = vmul.f32 %v1611, %v1611
        %v1620 = vmul.f32 %v1612, %v1612
        %v1621 = vadd.f32 %v1613, %v1614
        %v1622 = vadd.f32 %v1621, %v1615
        %v1623 = vadd.f32 %v1622, %v1616
        %v1624 = vadd.f32 %v1623, %v1617
        %v1625 = vadd.f32 %v1624, %v1618
        %v1626 = vadd.f32 %v1625, %v1619
        %v1627 = vadd.f32 %v1626, %v1620
        %v1628 = vrot.slane %v1627, 4
        %v1629 = vadd.f32 %v1627, %v1628
        %v1630 = vrot.slane %v1629, 2
        %v1631 = vadd.f32 %v1629, %v1630
        %v1632 = vrot.slane %v1631, 1
        %v1633 = vadd.f32 %v1631, %v1632
        %1634 = vmatprep.subr.mxu0 0.0
        %1635 = vmatpush1.msra.mxu0 %v1417
        %1636 = vmatprep.subr.mxu0 0.0
        %1637 = vmatpush1.msra.mxu0 %v1418
        %1638 = vmatprep.subr.mxu0 0.0
        %1639 = vmatpush1.msra.mxu0 %v1419
        %1640 = vmatprep.subr.mxu0 0.0
        %1641 = vmatpush1.msra.mxu0 %v1420
        %1642 = vmatprep.subr.mxu0 0.0
        %1643 = vmatpush1.msra.mxu0 %v1421
        %1644 = vmatprep.subr.mxu0 0.0
        %1645 = vmatpush1.msra.mxu0 %v1422
        %1646 = vmatprep.subr.mxu0 0.0
        %1647 = vmatpush1.msra.mxu0 %v1423
        %1648 = vmatprep.subr.mxu0 0.0
        %1649 = vmatpush1.msra.mxu0 %v1424
        %1650 = vmatprep.subr.mxu0 0.0
        %1651 = vmatpush1.msra.mxu0 %v1425
        %1652 = vmatprep.subr.mxu0 0.0
        %1653 = vmatpush1.msra.mxu0 %v1426
        %1654 = vmatprep.subr.mxu0 0.0
        %1655 = vmatpush1.msra.mxu0 %v1427
        %1656 = vmatprep.subr.mxu0 0.0
        %1657 = vmatpush1.msra.mxu0 %v1428
        %1658 = vmatprep.subr.mxu0 0.0
        %1659 = vmatpush1.msra.mxu0 %v1429
        %1660 = vmatprep.subr.mxu0 0.0
        %1661 = vmatpush1.msra.mxu0 %v1430
        %1662 = vmatprep.subr.mxu0 0.0
        %1663 = vmatpush1.msra.mxu0 %v1431
        %1664 = vmatprep.subr.mxu0 0.0
        %1665 = vmatpush1.msra.mxu0 %v1432
        %1666 = vmatprep.subr.mxu0 0.0
        %1667 = vmatpush1.msra.mxu0 0.0
        %1668 = vmatprep.subr.mxu0 0.0
        %1669 = vmatpush1.msra.mxu0 0.0
        %1670 = vmatprep.subr.mxu0 0.0
        %1671 = vmatpush1.msra.mxu0 0.0
        %1672 = vmatprep.subr.mxu0 0.0
        %1673 = vmatpush1.msra.mxu0 0.0
        %1674 = vmatprep.subr.mxu0 0.0
        %1675 = vmatpush1.msra.mxu0 0.0
        %1676 = vmatprep.subr.mxu0 0.0
        %1677 = vmatpush1.msra.mxu0 0.0
        %1678 = vmatprep.subr.mxu0 0.0
        %1679 = vmatpush1.msra.mxu0 0.0
        %1680 = vmatprep.subr.mxu0 0.0
        %1681 = vmatpush1.msra.mxu0 0.0
        %1682 = vmatprep.subr.mxu0 0.0
        %1683 = vmatpush1.msra.mxu0 0.0
        %1684 = vmatprep.subr.mxu0 0.0
        %1685 = vmatpush1.msra.mxu0 0.0
        %1686 = vmatprep.subr.mxu0 0.0
        %1687 = vmatpush1.msra.mxu0 0.0
        %1688 = vmatprep.subr.mxu0 0.0
        %1689 = vmatpush1.msra.mxu0 0.0
        %1690 = vmatprep.subr.mxu0 0.0
        %1691 = vmatpush1.msra.mxu0 0.0
        %1692 = vmatprep.subr.mxu0 0.0
        %1693 = vmatpush1.msra.mxu0 0.0
        %1694 = vmatprep.subr.mxu0 0.0
        %1695 = vmatpush1.msra.mxu0 0.0
        %1696 = vmatprep.subr.mxu0 0.0
        %1697 = vmatpush1.msra.mxu0 0.0
        %1698 = vmatprep.mubr.f32.mxu0 0.0
        %1699 = vmatmul.mubr.f32.gmra.mrb[0].mxu0 %v1633
        %v1700 = vpop.f32.mrb[0].mxu0
        %v1701 = vadd.f32 0.0, %v1700
        %v1702 = vpop.f32.mrb[0].mxu0
        %1703 = vdwg.mxu0
        %v1705 = vsel %vm1527, %v1701, 0
        %1707 = vmatprep.subr.mxu0 0.0
        %1708 = vmatpush1.msra.mxu0 %v1433
        %1709 = vmatprep.subr.mxu0 0.0
        %1710 = vmatpush1.msra.mxu0 0.0
        %1711 = vmatprep.subr.mxu0 0.0
        %1712 = vmatpush1.msra.mxu0 0.0
        %1713 = vmatprep.subr.mxu0 0.0
        %1714 = vmatpush1.msra.mxu0 0.0
        %1715 = vmatprep.subr.mxu0 0.0
        %1716 = vmatpush1.msra.mxu0 0.0
        %1717 = vmatprep.subr.mxu0 0.0
        %1718 = vmatpush1.msra.mxu0 0.0
        %1719 = vmatprep.subr.mxu0 0.0
        %1720 = vmatpush1.msra.mxu0 0.0
        %1721 = vmatprep.subr.mxu0 0.0
        %1722 = vmatpush1.msra.mxu0 0.0
        %1723 = vmatprep.subr.mxu0 0.0
        %1724 = vmatpush1.msra.mxu0 0.0
        %1725 = vmatprep.subr.mxu0 0.0
        %1726 = vmatpush1.msra.mxu0 0.0
        %1727 = vmatprep.subr.mxu0 0.0
        %1728 = vmatpush1.msra.mxu0 0.0
        %1729 = vmatprep.subr.mxu0 0.0
        %1730 = vmatpush1.msra.mxu0 0.0
        %1731 = vmatprep.subr.mxu0 0.0
        %1732 = vmatpush1.msra.mxu0 0.0
        %1733 = vmatprep.subr.mxu0 0.0
        %1734 = vmatpush1.msra.mxu0 0.0
        %1735 = vmatprep.subr.mxu0 0.0
        %1736 = vmatpush1.msra.mxu0 0.0
        %1737 = vmatprep.subr.mxu0 0.0
        %1738 = vmatpush1.msra.mxu0 0.0
        %1739 = vmatprep.subr.mxu0 0.0
        %1740 = vmatpush1.msra.mxu0 0.0
        %1741 = vmatprep.subr.mxu0 0.0
        %1742 = vmatpush1.msra.mxu0 0.0
        %1743 = vmatprep.subr.mxu0 0.0
        %1744 = vmatpush1.msra.mxu0 0.0
        %1745 = vmatprep.subr.mxu0 0.0
        %1746 = vmatpush1.msra.mxu0 0.0
        %1747 = vmatprep.subr.mxu0 0.0
        %1748 = vmatpush1.msra.mxu0 0.0
        %1749 = vmatprep.subr.mxu0 0.0
        %1750 = vmatpush1.msra.mxu0 0.0
        %1751 = vmatprep.subr.mxu0 0.0
        %1752 = vmatpush1.msra.mxu0 0.0
        %1753 = vmatprep.subr.mxu0 0.0
        %1754 = vmatpush1.msra.mxu0 0.0
        %1755 = vmatprep.subr.mxu0 0.0
        %1756 = vmatpush1.msra.mxu0 0.0
        %1757 = vmatprep.subr.mxu0 0.0
        %1758 = vmatpush1.msra.mxu0 0.0
        %1759 = vmatprep.subr.mxu0 0.0
        %1760 = vmatpush1.msra.mxu0 0.0
        %1761 = vmatprep.subr.mxu0 0.0
        %1762 = vmatpush1.msra.mxu0 0.0
        %1763 = vmatprep.subr.mxu0 0.0
        %1764 = vmatpush1.msra.mxu0 0.0
        %1765 = vmatprep.subr.mxu0 0.0
        %1766 = vmatpush1.msra.mxu0 0.0
        %1767 = vmatprep.subr.mxu0 0.0
        %1768 = vmatpush1.msra.mxu0 0.0
        %1769 = vmatprep.subr.mxu0 0.0
        %1770 = vmatpush1.msra.mxu0 0.0
        %1771 = vmatprep.mubr.f32.mxu0 0.0
        %1772 = vmatmul.mubr.f32.gmra.mrb[0].mxu0 %v1705
        %v1773 = vpop.f32.mrb[0].mxu0
        %v1774 = vadd.f32 1e-05, %v1773
        %v1775 = vpop.f32.mrb[0].mxu0
        %1776 = vdwg.mxu0
        %v1777 = vrsqrt.pop %v1774
        %v1778 = vlaneseq
        %v1779 = vshrl.u32 %v1778, 7
        %v1780 = vsub.s32 0, %v1779
        %v1781 = vrot.slane %v1777, %v1780
        %v1782 = vmul.f32 %v1605, %v1781
        %v1783 = vmul.f32 %v1606, %v1781
        %v1784 = vmul.f32 %v1607, %v1781
        %v1785 = vmul.f32 %v1608, %v1781
        %v1786 = vmul.f32 %v1609, %v1781
        %v1787 = vmul.f32 %v1610, %v1781
        %v1788 = vmul.f32 %v1611, %v1781
        %v1789 = vmul.f32 %v1612, %v1781
        %v1791 = vlaneseq
        %v1792 = vshrl.u32 %v1791, 7
        %v1793 = vsub.s32 0, %v1792
        %v1794 = vrot.slane %v1442, %v1793
        %v1796 = vmul.f32 %v1782, %v1794
        %v1797 = vmul.f32 %v1783, %v1794
        %v1798 = vmul.f32 %v1784, %v1794
        %v1799 = vmul.f32 %v1785, %v1794
        %v1800 = vmul.f32 %v1786, %v1794
        %v1801 = vmul.f32 %v1787, %v1794
        %v1802 = vmul.f32 %v1788, %v1794
        %v1803 = vmul.f32 %v1789, %v1794
        %v1805 = vlaneseq
        %v1806 = vshrl.u32 %v1805, 7
        %v1807 = vsub.s32 0, %v1806
        %v1808 = vrot.slane %v1443, %v1807
        %v1810 = vadd.f32 %v1796, %v1808
        %v1811 = vadd.f32 %v1797, %v1808
        %v1812 = vadd.f32 %v1798, %v1808
        %v1813 = vadd.f32 %v1799, %v1808
        %v1814 = vadd.f32 %v1800, %v1808
        %v1815 = vadd.f32 %v1801, %v1808
        %v1816 = vadd.f32 %v1802, %v1808
        %v1817 = vadd.f32 %v1803, %v1808
        %v1818 = vld [vmem:[#allocation14] sm:$0xff]
        %v1819 = vld [vmem:[#allocation14 + $0x8] sm:$0xff]
        %v1820 = vld [vmem:[#allocation14 + $0x10] sm:$0xff]
        %v1821 = vld [vmem:[#allocation14 + $0x18] sm:$0xff]
        %v1822 = vld [vmem:[#allocation14 + $0x20] sm:$0xff]
        %v1823 = vld [vmem:[#allocation14 + $0x28] sm:$0xff]
        %v1824 = vld [vmem:[#allocation14 + $0x30] sm:$0xff]
        %v1825 = vld [vmem:[#allocation14 + $0x38] sm:$0xff]
        %v1826 = vld [vmem:[#allocation14 + $0x40] sm:$0xff]
        %v1827 = vld [vmem:[#allocation14 + $0x48] sm:$0xff]
        %v1828 = vld [vmem:[#allocation14 + $0x50] sm:$0xff]
        %v1829 = vld [vmem:[#allocation14 + $0x58] sm:$0xff]
        %v1830 = vld [vmem:[#allocation14 + $0x60] sm:$0xff]
        %v1831 = vld [vmem:[#allocation14 + $0x68] sm:$0xff]
        %v1832 = vld [vmem:[#allocation14 + $0x70] sm:$0xff]
        %v1833 = vld [vmem:[#allocation14 + $0x78] sm:$0xff]
        %v1834 = vld [vmem:[#allocation16] sm:$0x1]
        %v1835 = vld [vmem:[#allocation17] sm:$0xff]
        %v1836 = vld [vmem:[#allocation17 + $0x8] sm:$0xff]
        %v1837 = vld [vmem:[#allocation17 + $0x10] sm:$0xff]
        %v1838 = vld [vmem:[#allocation17 + $0x18] sm:$0xff]
        %v1839 = vld [vmem:[#allocation17 + $0x20] sm:$0xff]
        %v1840 = vld [vmem:[#allocation17 + $0x28] sm:$0xff]
        %v1841 = vld [vmem:[#allocation17 + $0x30] sm:$0xff]
        %v1842 = vld [vmem:[#allocation17 + $0x38] sm:$0xff]
        %v1843 = vld [vmem:[#allocation17 + $0x40] sm:$0xff]
        %v1844 = vld [vmem:[#allocation17 + $0x48] sm:$0xff]
        %v1845 = vld [vmem:[#allocation17 + $0x50] sm:$0xff]
        %v1846 = vld [vmem:[#allocation17 + $0x58] sm:$0xff]
        %v1847 = vld [vmem:[#allocation17 + $0x60] sm:$0xff]
        %v1848 = vld [vmem:[#allocation17 + $0x68] sm:$0xff]
        %v1849 = vld [vmem:[#allocation17 + $0x70] sm:$0xff]
        %v1850 = vld [vmem:[#allocation17 + $0x78] sm:$0xff]
        %v1851 = vld [vmem:[#allocation19] sm:$0x1]
        %v1852 = vld [vmem:[#allocation20] sm:$0xff]
        %v1853 = vld [vmem:[#allocation20 + $0x8] sm:$0xff]
        %v1854 = vld [vmem:[#allocation20 + $0x10] sm:$0xff]
        %v1855 = vld [vmem:[#allocation20 + $0x18] sm:$0xff]
        %v1856 = vld [vmem:[#allocation20 + $0x20] sm:$0xff]
        %v1857 = vld [vmem:[#allocation20 + $0x28] sm:$0xff]
        %v1858 = vld [vmem:[#allocation20 + $0x30] sm:$0xff]
        %v1859 = vld [vmem:[#allocation20 + $0x38] sm:$0xff]
        %v1860 = vld [vmem:[#allocation20 + $0x40] sm:$0xff]
        %v1861 = vld [vmem:[#allocation20 + $0x48] sm:$0xff]
        %v1862 = vld [vmem:[#allocation20 + $0x50] sm:$0xff]
        %v1863 = vld [vmem:[#allocation20 + $0x58] sm:$0xff]
        %v1864 = vld [vmem:[#allocation20 + $0x60] sm:$0xff]
        %v1865 = vld [vmem:[#allocation20 + $0x68] sm:$0xff]
        %v1866 = vld [vmem:[#allocation20 + $0x70] sm:$0xff]
        %v1867 = vld [vmem:[#allocation20 + $0x78] sm:$0xff]
        %v1868 = vld [vmem:[#allocation22] sm:$0x1]
        %v1869 = vld [vmem:[#allocation23] sm:$0xff]
        %v1870 = vld [vmem:[#allocation23 + $0x8] sm:$0xff]
        %v1871 = vld [vmem:[#allocation23 + $0x10] sm:$0xff]
        %v1872 = vld [vmem:[#allocation23 + $0x18] sm:$0xff]
        %v1873 = vld [vmem:[#allocation23 + $0x20] sm:$0xff]
        %v1874 = vld [vmem:[#allocation23 + $0x28] sm:$0xff]
        %v1875 = vld [vmem:[#allocation23 + $0x30] sm:$0xff]
        %v1876 = vld [vmem:[#allocation23 + $0x38] sm:$0xff]
        %v1877 = vld [vmem:[#allocation23 + $0x40] sm:$0xff]
        %v1878 = vld [vmem:[#allocation23 + $0x48] sm:$0xff]
        %v1879 = vld [vmem:[#allocation23 + $0x50] sm:$0xff]
        %v1880 = vld [vmem:[#allocation23 + $0x58] sm:$0xff]
        %v1881 = vld [vmem:[#allocation23 + $0x60] sm:$0xff]
        %v1882 = vld [vmem:[#allocation23 + $0x68] sm:$0xff]
        %v1883 = vld [vmem:[#allocation23 + $0x70] sm:$0xff]
        %v1884 = vld [vmem:[#allocation23 + $0x78] sm:$0xff]
        %v1885 = vld [vmem:[#allocation25] sm:$0x1]
        %v1887 = vlaneseq
        %v1888 = vshrl.u32 %v1887, 7
        %v1889 = vsub.s32 0, %v1888
        %v1890 = vrot.slane %v1834, %v1889
        %1892 = vmatprep.subr.mxu0 0.0
        %1893 = vmatpush1.msra.mxu0 %v1818
        %1894 = vmatprep.subr.mxu0 0.0
        %1895 = vmatpush1.msra.mxu0 %v1819
        %1896 = vmatprep.subr.mxu0 0.0
        %1897 = vmatpush1.msra.mxu0 %v1820
        %1898 = vmatprep.subr.mxu0 0.0
        %1899 = vmatpush1.msra.mxu0 %v1821
        %1900 = vmatprep.subr.mxu0 0.0
        %1901 = vmatpush1.msra.mxu0 %v1822
        %1902 = vmatprep.subr.mxu0 0.0
        %1903 = vmatpush1.msra.mxu0 %v1823
        %1904 = vmatprep.subr.mxu0 0.0
        %1905 = vmatpush1.msra.mxu0 %v1824
        %1906 = vmatprep.subr.mxu0 0.0
        %1907 = vmatpush1.msra.mxu0 %v1825
        %1908 = vmatprep.subr.mxu0 0.0
        %1909 = vmatpush1.msra.mxu0 %v1826
        %1910 = vmatprep.subr.mxu0 0.0
        %1911 = vmatpush1.msra.mxu0 %v1827
        %1912 = vmatprep.subr.mxu0 0.0
        %1913 = vmatpush1.msra.mxu0 %v1828
        %1914 = vmatprep.subr.mxu0 0.0
        %1915 = vmatpush1.msra.mxu0 %v1829
        %1916 = vmatprep.subr.mxu0 0.0
        %1917 = vmatpush1.msra.mxu0 %v1830
        %1918 = vmatprep.subr.mxu0 0.0
        %1919 = vmatpush1.msra.mxu0 %v1831
        %1920 = vmatprep.subr.mxu0 0.0
        %1921 = vmatpush1.msra.mxu0 %v1832
        %1922 = vmatprep.subr.mxu0 0.0
        %1923 = vmatpush1.msra.mxu0 %v1833
        %1924 = vmatprep.subr.mxu0 0.0
        %1925 = vmatpush1.msra.mxu0 0.0
        %1926 = vmatprep.subr.mxu0 0.0
        %1927 = vmatpush1.msra.mxu0 0.0
        %1928 = vmatprep.subr.mxu0 0.0
        %1929 = vmatpush1.msra.mxu0 0.0
        %1930 = vmatprep.subr.mxu0 0.0
        %1931 = vmatpush1.msra.mxu0 0.0
        %1932 = vmatprep.subr.mxu0 0.0
        %1933 = vmatpush1.msra.mxu0 0.0
        %1934 = vmatprep.subr.mxu0 0.0
        %1935 = vmatpush1.msra.mxu0 0.0
        %1936 = vmatprep.subr.mxu0 0.0
        %1937 = vmatpush1.msra.mxu0 0.0
        %1938 = vmatprep.subr.mxu0 0.0
        %1939 = vmatpush1.msra.mxu0 0.0
        %1940 = vmatprep.subr.mxu0 0.0
        %1941 = vmatpush1.msra.mxu0 0.0
        %1942 = vmatprep.subr.mxu0 0.0
        %1943 = vmatpush1.msra.mxu0 0.0
        %1944 = vmatprep.subr.mxu0 0.0
        %1945 = vmatpush1.msra.mxu0 0.0
        %1946 = vmatprep.subr.mxu0 0.0
        %1947 = vmatpush1.msra.mxu0 0.0
        %1948 = vmatprep.subr.mxu0 0.0
        %1949 = vmatpush1.msra.mxu0 0.0
        %1950 = vmatprep.subr.mxu0 0.0
        %1951 = vmatpush1.msra.mxu0 0.0
        %1952 = vmatprep.subr.mxu0 0.0
        %1953 = vmatpush1.msra.mxu0 0.0
        %1954 = vmatprep.subr.mxu0 0.0
        %1955 = vmatpush1.msra.mxu0 0.0
        %1956 = vmatprep.mubr.f32.mxu0 0.0
        %1957 = vmatmul.mubr.f32.gmra.mrb[0].mxu0 %v1810
        %v1958 = vpop.f32.mrb[0].mxu0
        %v1959 = vadd.f32 %v1890, %v1958
        %v1960 = vpop.f32.mrb[0].mxu0
        %1961 = vmatprep.mubr.f32.mxu0 0.0
        %1962 = vmatmul.mubr.f32.gmra.mrb[0].mxu0 %v1811
        %v1963 = vpop.f32.mrb[0].mxu0
        %v1964 = vadd.f32 %v1890, %v1963
        %v1965 = vpop.f32.mrb[0].mxu0
        %1966 = vmatprep.mubr.f32.mxu0 0.0
        %1967 = vmatmul.mubr.f32.gmra.mrb[0].mxu0 %v1812
        %v1968 = vpop.f32.mrb[0].mxu0
        %v1969 = vadd.f32 %v1890, %v1968
        %v1970 = vpop.f32.mrb[0].mxu0
        %1971 = vmatprep.mubr.f32.mxu0 0.0
        %1972 = vmatmul.mubr.f32.gmra.mrb[0].mxu0 %v1813
        %v1973 = vpop.f32.mrb[0].mxu0
        %v1974 = vadd.f32 %v1890, %v1973
        %v1975 = vpop.f32.mrb[0].mxu0
        %1976 = vmatprep.mubr.f32.mxu0 0.0
        %1977 = vmatmul.mubr.f32.gmra.mrb[0].mxu0 %v1814
        %v1978 = vpop.f32.mrb[0].mxu0
        %v1979 = vadd.f32 %v1890, %v1978
        %v1980 = vpop.f32.mrb[0].mxu0
        %1981 = vmatprep.mubr.f32.mxu0 0.0
        %1982 = vmatmul.mubr.f32.gmra.mrb[0].mxu0 %v1815
        %v1983 = vpop.f32.mrb[0].mxu0
        %v1984 = vadd.f32 %v1890, %v1983
        %v1985 = vpop.f32.mrb[0].mxu0
        %1986 = vmatprep.mubr.f32.mxu0 0.0
        %1987 = vmatmul.mubr.f32.gmra.mrb[0].mxu0 %v1816
        %v1988 = vpop.f32.mrb[0].mxu0
        %v1989 = vadd.f32 %v1890, %v1988
        %v1990 = vpop.f32.mrb[0].mxu0
        %1991 = vmatprep.mubr.f32.mxu0 0.0
        %1992 = vmatmul.mubr.f32.gmra.mrb[0].mxu0 %v1817
        %v1993 = vpop.f32.mrb[0].mxu0
        %v1994 = vadd.f32 %v1890, %v1993
        %v1995 = vpop.f32.mrb[0].mxu0
        %1996 = vdwg.mxu0
        %v1998 = vlaneseq
        %v1999 = vshrl.u32 %v1998, 7
        %v2000 = vsub.s32 0, %v1999
        %v2001 = vrot.slane %v1851, %v2000
        %2003 = vmatprep.subr.mxu0 0.0
        %2004 = vmatpush1.msra.mxu0 %v1835
        %2005 = vmatprep.subr.mxu0 0.0
        %2006 = vmatpush1.msra.mxu0 %v1836
        %2007 = vmatprep.subr.mxu0 0.0
        %2008 = vmatpush1.msra.mxu0 %v1837
        %2009 = vmatprep.subr.mxu0 0.0
        %2010 = vmatpush1.msra.mxu0 %v1838
        %2011 = vmatprep.subr.mxu0 0.0
        %2012 = vmatpush1.msra.mxu0 %v1839
        %2013 = vmatprep.subr.mxu0 0.0
        %2014 = vmatpush1.msra.mxu0 %v1840
        %2015 = vmatprep.subr.mxu0 0.0
        %2016 = vmatpush1.msra.mxu0 %v1841
        %2017 = vmatprep.subr.mxu0 0.0
        %2018 = vmatpush1.msra.mxu0 %v1842
        %2019 = vmatprep.subr.mxu0 0.0
        %2020 = vmatpush1.msra.mxu0 %v1843
        %2021 = vmatprep.subr.mxu0 0.0
        %2022 = vmatpush1.msra.mxu0 %v1844
        %2023 = vmatprep.subr.mxu0 0.0
        %2024 = vmatpush1.msra.mxu0 %v1845
        %2025 = vmatprep.subr.mxu0 0.0
        %2026 = vmatpush1.msra.mxu0 %v1846
        %2027 = vmatprep.subr.mxu0 0.0
        %2028 = vmatpush1.msra.mxu0 %v1847
        %2029 = vmatprep.subr.mxu0 0.0
        %2030 = vmatpush1.msra.mxu0 %v1848
        %2031 = vmatprep.subr.mxu0 0.0
        %2032 = vmatpush1.msra.mxu0 %v1849
        %2033 = vmatprep.subr.mxu0 0.0
        %2034 = vmatpush1.msra.mxu0 %v1850
        %2035 = vmatprep.subr.mxu0 0.0
        %2036 = vmatpush1.msra.mxu0 0.0
        %2037 = vmatprep.subr.mxu0 0.0
        %2038 = vmatpush1.msra.mxu0 0.0
        %2039 = vmatprep.subr.mxu0 0.0
        %2040 = vmatpush1.msra.mxu0 0.0
        %2041 = vmatprep.subr.mxu0 0.0
        %2042 = vmatpush1.msra.mxu0 0.0
        %2043 = vmatprep.subr.mxu0 0.0
        %2044 = vmatpush1.msra.mxu0 0.0
        %2045 = vmatprep.subr.mxu0 0.0
        %2046 = vmatpush1.msra.mxu0 0.0
        %2047 = vmatprep.subr.mxu0 0.0
        %2048 = vmatpush1.msra.mxu0 0.0
        %2049 = vmatprep.subr.mxu0 0.0
        %2050 = vmatpush1.msra.mxu0 0.0
        %2051 = vmatprep.subr.mxu0 0.0
        %2052 = vmatpush1.msra.mxu0 0.0
        %2053 = vmatprep.subr.mxu0 0.0
        %2054 = vmatpush1.msra.mxu0 0.0
        %2055 = vmatprep.subr.mxu0 0.0
        %2056 = vmatpush1.msra.mxu0 0.0
        %2057 = vmatprep.subr.mxu0 0.0
        %2058 = vmatpush1.msra.mxu0 0.0
        %2059 = vmatprep.subr.mxu0 0.0
        %2060 = vmatpush1.msra.mxu0 0.0
        %2061 = vmatprep.subr.mxu0 0.0
        %2062 = vmatpush1.msra.mxu0 0.0
        %2063 = vmatprep.subr.mxu0 0.0
        %2064 = vmatpush1.msra.mxu0 0.0
        %2065 = vmatprep.subr.mxu0 0.0
        %2066 = vmatpush1.msra.mxu0 0.0
        %2067 = vmatprep.mubr.f32.mxu0 0.0
        %2068 = vmatmul.mubr.f32.gmra.mrb[0].mxu0 %v1810
        %v2069 = vpop.f32.mrb[0].mxu0
        %v2070 = vadd.f32 %v2001, %v2069
        %v2071 = vpop.f32.mrb[0].mxu0
        %2072 = vmatprep.mubr.f32.mxu0 0.0
        %2073 = vmatmul.mubr.f32.gmra.mrb[0].mxu0 %v1811
        %v2074 = vpop.f32.mrb[0].mxu0
        %v2075 = vadd.f32 %v2001, %v2074
        %v2076 = vpop.f32.mrb[0].mxu0
        %2077 = vmatprep.mubr.f32.mxu0 0.0
        %2078 = vmatmul.mubr.f32.gmra.mrb[0].mxu0 %v1812
        %v2079 = vpop.f32.mrb[0].mxu0
        %v2080 = vadd.f32 %v2001, %v2079
        %v2081 = vpop.f32.mrb[0].mxu0
        %2082 = vmatprep.mubr.f32.mxu0 0.0
        %2083 = vmatmul.mubr.f32.gmra.mrb[0].mxu0 %v1813
        %v2084 = vpop.f32.mrb[0].mxu0
        %v2085 = vadd.f32 %v2001, %v2084
        %v2086 = vpop.f32.mrb[0].mxu0
        %2087 = vmatprep.mubr.f32.mxu0 0.0
        %2088 = vmatmul.mubr.f32.gmra.mrb[0].mxu0 %v1814
        %v2089 = vpop.f32.mrb[0].mxu0
        %v2090 = vadd.f32 %v2001, %v2089
        %v2091 = vpop.f32.mrb[0].mxu0
        %2092 = vmatprep.mubr.f32.mxu0 0.0
        %2093 = vmatmul.mubr.f32.gmra.mrb[0].mxu0 %v1815
        %v2094 = vpop.f32.mrb[0].mxu0
        %v2095 = vadd.f32 %v2001, %v2094
        %v2096 = vpop.f32.mrb[0].mxu0
        %2097 = vmatprep.mubr.f32.mxu0 0.0
        %2098 = vmatmul.mubr.f32.gmra.mrb[0].mxu0 %v1816
        %v2099 = vpop.f32.mrb[0].mxu0
        %v2100 = vadd.f32 %v2001, %v2099
        %v2101 = vpop.f32.mrb[0].mxu0
        %2102 = vmatprep.mubr.f32.mxu0 0.0
        %2103 = vmatmul.mubr.f32.gmra.mrb[0].mxu0 %v1817
        %v2104 = vpop.f32.mrb[0].mxu0
        %v2105 = vadd.f32 %v2001, %v2104
        %v2106 = vpop.f32.mrb[0].mxu0
        %2107 = vdwg.mxu0
        %v2109 = vlaneseq
        %v2110 = vshrl.u32 %v2109, 7
        %v2111 = vsub.s32 0, %v2110
        %v2112 = vrot.slane %v1868, %v2111
        %2114 = vmatprep.subr.mxu0 0.0
        %2115 = vmatpush1.msra.mxu0 %v1852
        %2116 = vmatprep.subr.mxu0 0.0
        %2117 = vmatpush1.msra.mxu0 %v1853
        %2118 = vmatprep.subr.mxu0 0.0
        %2119 = vmatpush1.msra.mxu0 %v1854
        %2120 = vmatprep.subr.mxu0 0.0
        %2121 = vmatpush1.msra.mxu0 %v1855
        %2122 = vmatprep.subr.mxu0 0.0
        %2123 = vmatpush1.msra.mxu0 %v1856
        %2124 = vmatprep.subr.mxu0 0.0
        %2125 = vmatpush1.msra.mxu0 %v1857
        %2126 = vmatprep.subr.mxu0 0.0
        %2127 = vmatpush1.msra.mxu0 %v1858
        %2128 = vmatprep.subr.mxu0 0.0
        %2129 = vmatpush1.msra.mxu0 %v1859
        %2130 = vmatprep.subr.mxu0 0.0
        %2131 = vmatpush1.msra.mxu0 %v1860
        %2132 = vmatprep.subr.mxu0 0.0
        %2133 = vmatpush1.msra.mxu0 %v1861
        %2134 = vmatprep.subr.mxu0 0.0
        %2135 = vmatpush1.msra.mxu0 %v1862
        %2136 = vmatprep.subr.mxu0 0.0
        %2137 = vmatpush1.msra.mxu0 %v1863
        %2138 = vmatprep.subr.mxu0 0.0
        %2139 = vmatpush1.msra.mxu0 %v1864
        %2140 = vmatprep.subr.mxu0 0.0
        %2141 = vmatpush1.msra.mxu0 %v1865
        %2142 = vmatprep.subr.mxu0 0.0
        %2143 = vmatpush1.msra.mxu0 %v1866
        %2144 = vmatprep.subr.mxu0 0.0
        %2145 = vmatpush1.msra.mxu0 %v1867
        %2146 = vmatprep.subr.mxu0 0.0
        %2147 = vmatpush1.msra.mxu0 0.0
        %2148 = vmatprep.subr.mxu0 0.0
        %2149 = vmatpush1.msra.mxu0 0.0
        %2150 = vmatprep.subr.mxu0 0.0
        %2151 = vmatpush1.msra.mxu0 0.0
        %2152 = vmatprep.subr.mxu0 0.0
        %2153 = vmatpush1.msra.mxu0 0.0
        %2154 = vmatprep.subr.mxu0 0.0
        %2155 = vmatpush1.msra.mxu0 0.0
        %2156 = vmatprep.subr.mxu0 0.0
        %2157 = vmatpush1.msra.mxu0 0.0
        %2158 = vmatprep.subr.mxu0 0.0
        %2159 = vmatpush1.msra.mxu0 0.0
        %2160 = vmatprep.subr.mxu0 0.0
        %2161 = vmatpush1.msra.mxu0 0.0
        %2162 = vmatprep.subr.mxu0 0.0
        %2163 = vmatpush1.msra.mxu0 0.0
        %2164 = vmatprep.subr.mxu0 0.0
        %2165 = vmatpush1.msra.mxu0 0.0
        %2166 = vmatprep.subr.mxu0 0.0
        %2167 = vmatpush1.msra.mxu0 0.0
        %2168 = vmatprep.subr.mxu0 0.0
        %2169 = vmatpush1.msra.mxu0 0.0
        %2170 = vmatprep.subr.mxu0 0.0
        %2171 = vmatpush1.msra.mxu0 0.0
        %2172 = vmatprep.subr.mxu0 0.0
        %2173 = vmatpush1.msra.mxu0 0.0
        %2174 = vmatprep.subr.mxu0 0.0
        %2175 = vmatpush1.msra.mxu0 0.0
        %2176 = vmatprep.subr.mxu0 0.0
        %2177 = vmatpush1.msra.mxu0 0.0
        %2178 = vmatprep.mubr.f32.mxu0 0.0
        %2179 = vmatmul.mubr.f32.gmra.mrb[0].mxu0 %v1810
        %v2180 = vpop.f32.mrb[0].mxu0
        %v2181 = vadd.f32 %v2112, %v2180
        %v2182 = vpop.f32.mrb[0].mxu0
        %2183 = vmatprep.mubr.f32.mxu0 0.0
        %2184 = vmatmul.mubr.f32.gmra.mrb[0].mxu0 %v1811
        %v2185 = vpop.f32.mrb[0].mxu0
        %v2186 = vadd.f32 %v2112, %v2185
        %v2187 = vpop.f32.mrb[0].mxu0
        %2188 = vmatprep.mubr.f32.mxu0 0.0
        %2189 = vmatmul.mubr.f32.gmra.mrb[0].mxu0 %v1812
        %v2190 = vpop.f32.mrb[0].mxu0
        %v2191 = vadd.f32 %v2112, %v2190
        %v2192 = vpop.f32.mrb[0].mxu0
        %2193 = vmatprep.mubr.f32.mxu0 0.0
        %2194 = vmatmul.mubr.f32.gmra.mrb[0].mxu0 %v1813
        %v2195 = vpop.f32.mrb[0].mxu0
        %v2196 = vadd.f32 %v2112, %v2195
        %v2197 = vpop.f32.mrb[0].mxu0
        %2198 = vmatprep.mubr.f32.mxu0 0.0
        %2199 = vmatmul.mubr.f32.gmra.mrb[0].mxu0 %v1814
        %v2200 = vpop.f32.mrb[0].mxu0
        %v2201 = vadd.f32 %v2112, %v2200
        %v2202 = vpop.f32.mrb[0].mxu0
        %2203 = vmatprep.mubr.f32.mxu0 0.0
        %2204 = vmatmul.mubr.f32.gmra.mrb[0].mxu0 %v1815
        %v2205 = vpop.f32.mrb[0].mxu0
        %v2206 = vadd.f32 %v2112, %v2205
        %v2207 = vpop.f32.mrb[0].mxu0
        %2208 = vmatprep.mubr.f32.mxu0 0.0
        %2209 = vmatmul.mubr.f32.gmra.mrb[0].mxu0 %v1816
        %v2210 = vpop.f32.mrb[0].mxu0
        %v2211 = vadd.f32 %v2112, %v2210
        %v2212 = vpop.f32.mrb[0].mxu0
        %2213 = vmatprep.mubr.f32.mxu0 0.0
        %2214 = vmatmul.mubr.f32.gmra.mrb[0].mxu0 %v1817
        %v2215 = vpop.f32.mrb[0].mxu0
        %v2216 = vadd.f32 %v2112, %v2215
        %v2217 = vpop.f32.mrb[0].mxu0
        %2218 = vdwg.mxu0
        %2219 = vmatprep.subr.mxu0 0.0
        %2220 = vmatpush1.xpose.msra.mxu0 %v2070
        %2221 = vmatprep.subr.mxu0 0.0
        %2222 = vmatpush1.xpose.msra.mxu0 %v2075
        %2223 = vmatprep.subr.mxu0 0.0
        %2224 = vmatpush1.xpose.msra.mxu0 %v2080
        %2225 = vmatprep.subr.mxu0 0.0
        %2226 = vmatpush1.xpose.msra.mxu0 %v2085
        %2227 = vmatprep.subr.mxu0 0.0
        %2228 = vmatpush1.xpose.msra.mxu0 %v2090
        %2229 = vmatprep.subr.mxu0 0.0
        %2230 = vmatpush1.xpose.msra.mxu0 %v2095
        %2231 = vmatprep.subr.mxu0 0.0
        %2232 = vmatpush1.xpose.msra.mxu0 %v2100
        %2233 = vmatprep.subr.mxu0 0.0
        %2234 = vmatpush1.xpose.msra.mxu0 %v2105
        %2235 = vmatprep.subr.mxu0 0.0
        %2236 = vmatpush1.xpose.msra.mxu0 0.0
        %2237 = vmatprep.subr.mxu0 0.0
        %2238 = vmatpush1.xpose.msra.mxu0 0.0
        %2239 = vmatprep.subr.mxu0 0.0
        %2240 = vmatpush1.xpose.msra.mxu0 0.0
        %2241 = vmatprep.subr.mxu0 0.0
        %2242 = vmatpush1.xpose.msra.mxu0 0.0
        %2243 = vmatprep.subr.mxu0 0.0
        %2244 = vmatpush1.xpose.msra.mxu0 0.0
        %2245 = vmatprep.subr.mxu0 0.0
        %2246 = vmatpush1.xpose.msra.mxu0 0.0
        %2247 = vmatprep.subr.mxu0 0.0
        %2248 = vmatpush1.xpose.msra.mxu0 0.0
        %2249 = vmatprep.subr.mxu0 0.0
        %2250 = vmatpush1.xpose.msra.mxu0 0.0
        %2251 = vmatprep.subr.mxu0 0.0
        %2252 = vmatpush1.xpose.msra.mxu0 0.0
        %2253 = vmatprep.subr.mxu0 0.0
        %2254 = vmatpush1.xpose.msra.mxu0 0.0
        %2255 = vmatprep.subr.mxu0 0.0
        %2256 = vmatpush1.xpose.msra.mxu0 0.0
        %2257 = vmatprep.subr.mxu0 0.0
        %2258 = vmatpush1.xpose.msra.mxu0 0.0
        %2259 = vmatprep.subr.mxu0 0.0
        %2260 = vmatpush1.xpose.msra.mxu0 0.0
        %2261 = vmatprep.subr.mxu0 0.0
        %2262 = vmatpush1.xpose.msra.mxu0 0.0
        %2263 = vmatprep.subr.mxu0 0.0
        %2264 = vmatpush1.xpose.msra.mxu0 0.0
        %2265 = vmatprep.subr.mxu0 0.0
        %2266 = vmatpush1.xpose.msra.mxu0 0.0
        %2267 = vmatprep.subr.mxu0 0.0
        %2268 = vmatpush1.xpose.msra.mxu0 0.0
        %2269 = vmatprep.subr.mxu0 0.0
        %2270 = vmatpush1.xpose.msra.mxu0 0.0
        %2271 = vmatprep.subr.mxu0 0.0
        %2272 = vmatpush1.xpose.msra.mxu0 0.0
        %2273 = vmatprep.subr.mxu0 0.0
        %2274 = vmatpush1.xpose.msra.mxu0 0.0
        %2275 = vmatprep.subr.mxu0 0.0
        %2276 = vmatpush1.xpose.msra.mxu0 0.0
        %2277 = vmatprep.subr.mxu0 0.0
        %2278 = vmatpush1.xpose.msra.mxu0 0.0
        %2279 = vmatprep.subr.mxu0 0.0
        %2280 = vmatpush1.xpose.msra.mxu0 0.0
        %2281 = vmatprep.subr.mxu0 0.0
        %2282 = vmatpush1.xpose.msra.mxu0 0.0
        %2283 = vmatprep.mubr.f32.mxu0 0.0
        %2284 = vmatmul.mubr.f32.gmra.mrb[0].mxu0 %v1959
        %v2285 = vpop.f32.mrb[0].mxu0
        %v2286 = vadd.f32 0.0, %v2285
        %v2287 = vpop.f32.mrb[0].mxu0
        %2288 = vmatprep.mubr.f32.mxu0 0.0
        %2289 = vmatmul.mubr.f32.gmra.mrb[0].mxu0 %v1964
        %v2290 = vpop.f32.mrb[0].mxu0
        %v2291 = vadd.f32 0.0, %v2290
        %v2292 = vpop.f32.mrb[0].mxu0
        %2293 = vmatprep.mubr.f32.mxu0 0.0
        %2294 = vmatmul.mubr.f32.gmra.mrb[0].mxu0 %v1969
        %v2295 = vpop.f32.mrb[0].mxu0
        %v2296 = vadd.f32 0.0, %v2295
        %v2297 = vpop.f32.mrb[0].mxu0
        %2298 = vmatprep.mubr.f32.mxu0 0.0
        %2299 = vmatmul.mubr.f32.gmra.mrb[0].mxu0 %v1974
        %v2300 = vpop.f32.mrb[0].mxu0
        %v2301 = vadd.f32 0.0, %v2300
        %v2302 = vpop.f32.mrb[0].mxu0
        %2303 = vmatprep.mubr.f32.mxu0 0.0
        %2304 = vmatmul.mubr.f32.gmra.mrb[0].mxu0 %v1979
        %v2305 = vpop.f32.mrb[0].mxu0
        %v2306 = vadd.f32 0.0, %v2305
        %v2307 = vpop.f32.mrb[0].mxu0
        %2308 = vmatprep.mubr.f32.mxu0 0.0
        %2309 = vmatmul.mubr.f32.gmra.mrb[0].mxu0 %v1984
        %v2310 = vpop.f32.mrb[0].mxu0
        %v2311 = vadd.f32 0.0, %v2310
        %v2312 = vpop.f32.mrb[0].mxu0
        %2313 = vmatprep.mubr.f32.mxu0 0.0
        %2314 = vmatmul.mubr.f32.gmra.mrb[0].mxu0 %v1989
        %v2315 = vpop.f32.mrb[0].mxu0
        %v2316 = vadd.f32 0.0, %v2315
        %v2317 = vpop.f32.mrb[0].mxu0
        %2318 = vmatprep.mubr.f32.mxu0 0.0
        %2319 = vmatmul.mubr.f32.gmra.mrb[0].mxu0 %v1994
        %v2320 = vpop.f32.mrb[0].mxu0
        %v2321 = vadd.f32 0.0, %v2320
        %v2322 = vpop.f32.mrb[0].mxu0
        %2323 = vdwg.mxu0
        %vm2324 = vcmask 523264
        %v2325 = vsel %vm2324, %v2286, -inf
        %2326 = vmax.xlane.f32.xlu0 %v2325
        %v2327 = vpop.xlane.xlu0 %2326
        %v2328 = vsel %vm2324, %v2291, -inf
        %2329 = vmax.xlane.f32.xlu0 %v2328
        %v2330 = vpop.xlane.xlu0 %2329
        %v2331 = vsel %vm2324, %v2296, -inf
        %2332 = vmax.xlane.f32.xlu0 %v2331
        %v2333 = vpop.xlane.xlu0 %2332
        %v2334 = vsel %vm2324, %v2301, -inf
        %2335 = vmax.xlane.f32.xlu0 %v2334
        %v2336 = vpop.xlane.xlu0 %2335
        %v2337 = vsel %vm2324, %v2306, -inf
        %2338 = vmax.xlane.f32.xlu0 %v2337
        %v2339 = vpop.xlane.xlu0 %2338
        %v2340 = vsel %vm2324, %v2311, -inf
        %2341 = vmax.xlane.f32.xlu0 %v2340
        %v2342 = vpop.xlane.xlu0 %2341
        %v2343 = vsel %vm2324, %v2316, -inf
        %2344 = vmax.xlane.f32.xlu0 %v2343
        %v2345 = vpop.xlane.xlu0 %2344
        %v2346 = vsel %vm2324, %v2321, -inf
        %2347 = vmax.xlane.f32.xlu0 %v2346
        %v2348 = vpop.xlane.xlu0 %2347
        %v2349 = vsub.f32 %v2286, %v2327
        %v2350 = vsub.f32 %v2291, %v2330
        %v2351 = vsub.f32 %v2296, %v2333
        %v2352 = vsub.f32 %v2301, %v2336
        %v2353 = vsub.f32 %v2306, %v2339
        %v2354 = vsub.f32 %v2311, %v2342
        %v2355 = vsub.f32 %v2316, %v2345
        %v2356 = vsub.f32 %v2321, %v2348
        %v2357 = vmul.f32 %v2349, 1.442695
        %v2358 = vpow.pop %v2357
        %v2359 = vmul.f32 %v2350, 1.442695
        %v2360 = vpow.pop %v2359
        %v2361 = vmul.f32 %v2351, 1.442695
        %v2362 = vpow.pop %v2361
        %v2363 = vmul.f32 %v2352, 1.442695
        %v2364 = vpow.pop %v2363
        %v2365 = vmul.f32 %v2353, 1.442695
        %v2366 = vpow.pop %v2365
        %v2367 = vmul.f32 %v2354, 1.442695
        %v2368 = vpow.pop %v2367
        %v2369 = vmul.f32 %v2355, 1.442695
        %v2370 = vpow.pop %v2369
        %v2371 = vmul.f32 %v2356, 1.442695
        %v2372 = vpow.pop %v2371
        %v2373 = vsel %vm2324, %v2358, 0.0
        %2374 = vadd.xlane.f32.xlu0 %v2373
        %v2375 = vpop.xlane.xlu0 %2374
        %v2376 = vsel %vm2324, %v2360, 0.0
        %2377 = vadd.xlane.f32.xlu0 %v2376
        %v2378 = vpop.xlane.xlu0 %2377
        %v2379 = vsel %vm2324, %v2362, 0.0
        %2380 = vadd.xlane.f32.xlu0 %v2379
        %v2381 = vpop.xlane.xlu0 %2380
        %v2382 = vsel %vm2324, %v2364, 0.0
        %2383 = vadd.xlane.f32.xlu0 %v2382
        %v2384 = vpop.xlane.xlu0 %2383
        %v2385 = vsel %vm2324, %v2366, 0.0
        %2386 = vadd.xlane.f32.xlu0 %v2385
        %v2387 = vpop.xlane.xlu0 %2386
        %v2388 = vsel %vm2324, %v2368, 0.0
        %2389 = vadd.xlane.f32.xlu0 %v2388
        %v2390 = vpop.xlane.xlu0 %2389
        %v2391 = vsel %vm2324, %v2370, 0.0
        %2392 = vadd.xlane.f32.xlu0 %v2391
        %v2393 = vpop.xlane.xlu0 %2392
        %v2394 = vsel %vm2324, %v2372, 0.0
        %2395 = vadd.xlane.f32.xlu0 %v2394
        %v2396 = vpop.xlane.xlu0 %2395
        %v2397 = vrcp.pop %v2375
        %v2398 = vmul.f32 1.0, %v2397
        %v2399 = vrcp.pop %v2378
        %v2400 = vmul.f32 1.0, %v2399
        %v2401 = vrcp.pop %v2381
        %v2402 = vmul.f32 1.0, %v2401
        %v2403 = vrcp.pop %v2384
        %v2404 = vmul.f32 1.0, %v2403
        %v2405 = vrcp.pop %v2387
        %v2406 = vmul.f32 1.0, %v2405
        %v2407 = vrcp.pop %v2390
        %v2408 = vmul.f32 1.0, %v2407
        %v2409 = vrcp.pop %v2393
        %v2410 = vmul.f32 1.0, %v2409
        %v2411 = vrcp.pop %v2396
        %v2412 = vmul.f32 1.0, %v2411
        %v2413 = vmul.f32 %v2358, %v2398
        %v2414 = vmul.f32 %v2360, %v2400
        %v2415 = vmul.f32 %v2362, %v2402
        %v2416 = vmul.f32 %v2364, %v2404
        %v2417 = vmul.f32 %v2366, %v2406
        %v2418 = vmul.f32 %v2368, %v2408
        %v2419 = vmul.f32 %v2370, %v2410
        %v2420 = vmul.f32 %v2372, %v2412
        %v2422 = vsel %vm2324, %v2413, 0
        %v2425 = vsel %vm2324, %v2414, 0
        %v2428 = vsel %vm2324, %v2415, 0
        %v2431 = vsel %vm2324, %v2416, 0
        %v2434 = vsel %vm2324, %v2417, 0
        %v2437 = vsel %vm2324, %v2418, 0
        %v2440 = vsel %vm2324, %v2419, 0
        %v2443 = vsel %vm2324, %v2420, 0
        %2445 = vmatprep.subr.mxu0 0.0
        %2446 = vmatpush1.msra.mxu0 %v2181
        %2447 = vmatprep.subr.mxu0 0.0
        %2448 = vmatpush1.msra.mxu0 %v2186
        %2449 = vmatprep.subr.mxu0 0.0
        %2450 = vmatpush1.msra.mxu0 %v2191
        %2451 = vmatprep.subr.mxu0 0.0
        %2452 = vmatpush1.msra.mxu0 %v2196
        %2453 = vmatprep.subr.mxu0 0.0
        %2454 = vmatpush1.msra.mxu0 %v2201
        %2455 = vmatprep.subr.mxu0 0.0
        %2456 = vmatpush1.msra.mxu0 %v2206
        %2457 = vmatprep.subr.mxu0 0.0
        %2458 = vmatpush1.msra.mxu0 %v2211
        %2459 = vmatprep.subr.mxu0 0.0
        %2460 = vmatpush1.msra.mxu0 %v2216
        %2461 = vmatprep.subr.mxu0 0.0
        %2462 = vmatpush1.msra.mxu0 0.0
        %2463 = vmatprep.subr.mxu0 0.0
        %2464 = vmatpush1.msra.mxu0 0.0
        %2465 = vmatprep.subr.mxu0 0.0
        %2466 = vmatpush1.msra.mxu0 0.0
        %2467 = vmatprep.subr.mxu0 0.0
        %2468 = vmatpush1.msra.mxu0 0.0
        %2469 = vmatprep.subr.mxu0 0.0
        %2470 = vmatpush1.msra.mxu0 0.0
        %2471 = vmatprep.subr.mxu0 0.0
        %2472 = vmatpush1.msra.mxu0 0.0
        %2473 = vmatprep.subr.mxu0 0.0
        %2474 = vmatpush1.msra.mxu0 0.0
        %2475 = vmatprep.subr.mxu0 0.0
        %2476 = vmatpush1.msra.mxu0 0.0
        %2477 = vmatprep.subr.mxu0 0.0
        %2478 = vmatpush1.msra.mxu0 0.0
        %2479 = vmatprep.subr.mxu0 0.0
        %2480 = vmatpush1.msra.mxu0 0.0
        %2481 = vmatprep.subr.mxu0 0.0
        %2482 = vmatpush1.msra.mxu0 0.0
        %2483 = vmatprep.subr.mxu0 0.0
        %2484 = vmatpush1.msra.mxu0 0.0
        %2485 = vmatprep.subr.mxu0 0.0
        %2486 = vmatpush1.msra.mxu0 0.0
        %2487 = vmatprep.subr.mxu0 0.0
        %2488 = vmatpush1.msra.mxu0 0.0
        %2489 = vmatprep.subr.mxu0 0.0
        %2490 = vmatpush1.msra.mxu0 0.0
        %2491 = vmatprep.subr.mxu0 0.0
        %2492 = vmatpush1.msra.mxu0 0.0
        %2493 = vmatprep.subr.mxu0 0.0
        %2494 = vmatpush1.msra.mxu0 0.0
        %2495 = vmatprep.subr.mxu0 0.0
        %2496 = vmatpush1.msra.mxu0 0.0
        %2497 = vmatprep.subr.mxu0 0.0
        %2498 = vmatpush1.msra.mxu0 0.0
        %2499 = vmatprep.subr.mxu0 0.0
        %2500 = vmatpush1.msra.mxu0 0.0
        %2501 = vmatprep.subr.mxu0 0.0
        %2502 = vmatpush1.msra.mxu0 0.0
        %2503 = vmatprep.subr.mxu0 0.0
        %2504 = vmatpush1.msra.mxu0 0.0
        %2505 = vmatprep.subr.mxu0 0.0
        %2506 = vmatpush1.msra.mxu0 0.0
        %2507 = vmatprep.subr.mxu0 0.0
        %2508 = vmatpush1.msra.mxu0 0.0
        %2509 = vmatprep.mubr.f32.mxu0 0.0
        %2510 = vmatmul.mubr.f32.gmra.mrb[0].mxu0 %v2422
        %v2511 = vpop.f32.mrb[0].mxu0
        %v2512 = vadd.f32 0.0, %v2511
        %v2513 = vpop.f32.mrb[0].mxu0
        %2514 = vmatprep.mubr.f32.mxu0 0.0
        %2515 = vmatmul.mubr.f32.gmra.mrb[0].mxu0 %v2425
        %v2516 = vpop.f32.mrb[0].mxu0
        %v2517 = vadd.f32 0.0, %v2516
        %v2518 = vpop.f32.mrb[0].mxu0
        %2519 = vmatprep.mubr.f32.mxu0 0.0
        %2520 = vmatmul.mubr.f32.gmra.mrb[0].mxu0 %v2428
        %v2521 = vpop.f32.mrb[0].mxu0
        %v2522 = vadd.f32 0.0, %v2521
        %v2523 = vpop.f32.mrb[0].mxu0
        %2524 = vmatprep.mubr.f32.mxu0 0.0
        %2525 = vmatmul.mubr.f32.gmra.mrb[0].mxu0 %v2431
        %v2526 = vpop.f32.mrb[0].mxu0
        %v2527 = vadd.f32 0.0, %v2526
        %v2528 = vpop.f32.mrb[0].mxu0
        %2529 = vmatprep.mubr.f32.mxu0 0.0
        %2530 = vmatmul.mubr.f32.gmra.mrb[0].mxu0 %v2434
        %v2531 = vpop.f32.mrb[0].mxu0
        %v2532 = vadd.f32 0.0, %v2531
        %v2533 = vpop.f32.mrb[0].mxu0
        %2534 = vmatprep.mubr.f32.mxu0 0.0
        %2535 = vmatmul.mubr.f32.gmra.mrb[0].mxu0 %v2437
        %v2536 = vpop.f32.mrb[0].mxu0
        %v2537 = vadd.f32 0.0, %v2536
        %v2538 = vpop.f32.mrb[0].mxu0
        %2539 = vmatprep.mubr.f32.mxu0 0.0
        %2540 = vmatmul.mubr.f32.gmra.mrb[0].mxu0 %v2440
        %v2541 = vpop.f32.mrb[0].mxu0
        %v2542 = vadd.f32 0.0, %v2541
        %v2543 = vpop.f32.mrb[0].mxu0
        %2544 = vmatprep.mubr.f32.mxu0 0.0
        %2545 = vmatmul.mubr.f32.gmra.mrb[0].mxu0 %v2443
        %v2546 = vpop.f32.mrb[0].mxu0
        %v2547 = vadd.f32 0.0, %v2546
        %v2548 = vpop.f32.mrb[0].mxu0
        %2549 = vdwg.mxu0
        %v2551 = vlaneseq
        %v2552 = vshrl.u32 %v2551, 7
        %v2553 = vsub.s32 0, %v2552
        %v2554 = vrot.slane %v1885, %v2553
        %2556 = vmatprep.subr.mxu0 0.0
        %2557 = vmatpush1.msra.mxu0 %v1869
        %2558 = vmatprep.subr.mxu0 0.0
        %2559 = vmatpush1.msra.mxu0 %v1870
        %2560 = vmatprep.subr.mxu0 0.0
        %2561 = vmatpush1.msra.mxu0 %v1871
        %2562 = vmatprep.subr.mxu0 0.0
        %2563 = vmatpush1.msra.mxu0 %v1872
        %2564 = vmatprep.subr.mxu0 0.0
        %2565 = vmatpush1.msra.mxu0 %v1873
        %2566 = vmatprep.subr.mxu0 0.0
        %2567 = vmatpush1.msra.mxu0 %v1874
        %2568 = vmatprep.subr.mxu0 0.0
        %2569 = vmatpush1.msra.mxu0 %v1875
        %2570 = vmatprep.subr.mxu0 0.0
        %2571 = vmatpush1.msra.mxu0 %v1876
        %2572 = vmatprep.subr.mxu0 0.0
        %2573 = vmatpush1.msra.mxu0 %v1877
        %2574 = vmatprep.subr.mxu0 0.0
        %2575 = vmatpush1.msra.mxu0 %v1878
        %2576 = vmatprep.subr.mxu0 0.0
        %2577 = vmatpush1.msra.mxu0 %v1879
        %2578 = vmatprep.subr.mxu0 0.0
        %2579 = vmatpush1.msra.mxu0 %v1880
        %2580 = vmatprep.subr.mxu0 0.0
        %2581 = vmatpush1.msra.mxu0 %v1881
        %2582 = vmatprep.subr.mxu0 0.0
        %2583 = vmatpush1.msra.mxu0 %v1882
        %2584 = vmatprep.subr.mxu0 0.0
        %2585 = vmatpush1.msra.mxu0 %v1883
        %2586 = vmatprep.subr.mxu0 0.0
        %2587 = vmatpush1.msra.mxu0 %v1884
        %2588 = vmatprep.subr.mxu0 0.0
        %2589 = vmatpush1.msra.mxu0 0.0
        %2590 = vmatprep.subr.mxu0 0.0
        %2591 = vmatpush1.msra.mxu0 0.0
        %2592 = vmatprep.subr.mxu0 0.0
        %2593 = vmatpush1.msra.mxu0 0.0
        %2594 = vmatprep.subr.mxu0 0.0
        %2595 = vmatpush1.msra.mxu0 0.0
        %2596 = vmatprep.subr.mxu0 0.0
        %2597 = vmatpush1.msra.mxu0 0.0
        %2598 = vmatprep.subr.mxu0 0.0
        %2599 = vmatpush1.msra.mxu0 0.0
        %2600 = vmatprep.subr.mxu0 0.0
        %2601 = vmatpush1.msra.mxu0 0.0
        %2602 = vmatprep.subr.mxu0 0.0
        %2603 = vmatpush1.msra.mxu0 0.0
        %2604 = vmatprep.subr.mxu0 0.0
        %2605 = vmatpush1.msra.mxu0 0.0
        %2606 = vmatprep.subr.mxu0 0.0
        %2607 = vmatpush1.msra.mxu0 0.0
        %2608 = vmatprep.subr.mxu0 0.0
        %2609 = vmatpush1.msra.mxu0 0.0
        %2610 = vmatprep.subr.mxu0 0.0
        %2611 = vmatpush1.msra.mxu0 0.0
        %2612 = vmatprep.subr.mxu0 0.0
        %2613 = vmatpush1.msra.mxu0 0.0
        %2614 = vmatprep.subr.mxu0 0.0
        %2615 = vmatpush1.msra.mxu0 0.0
        %2616 = vmatprep.subr.mxu0 0.0
        %2617 = vmatpush1.msra.mxu0 0.0
        %2618 = vmatprep.subr.mxu0 0.0
        %2619 = vmatpush1.msra.mxu0 0.0
        %2620 = vmatprep.mubr.f32.mxu0 0.0
        %2621 = vmatmul.mubr.f32.gmra.mrb[0].mxu0 %v2512
        %v2622 = vpop.f32.mrb[0].mxu0
        %v2623 = vadd.f32 %v2554, %v2622
        %v2624 = vpop.f32.mrb[0].mxu0
        %2625 = vmatprep.mubr.f32.mxu0 0.0
        %2626 = vmatmul.mubr.f32.gmra.mrb[0].mxu0 %v2517
        %v2627 = vpop.f32.mrb[0].mxu0
        %v2628 = vadd.f32 %v2554, %v2627
        %v2629 = vpop.f32.mrb[0].mxu0
        %2630 = vmatprep.mubr.f32.mxu0 0.0
        %2631 = vmatmul.mubr.f32.gmra.mrb[0].mxu0 %v2522
        %v2632 = vpop.f32.mrb[0].mxu0
        %v2633 = vadd.f32 %v2554, %v2632
        %v2634 = vpop.f32.mrb[0].mxu0
        %2635 = vmatprep.mubr.f32.mxu0 0.0
        %2636 = vmatmul.mubr.f32.gmra.mrb[0].mxu0 %v2527
        %v2637 = vpop.f32.mrb[0].mxu0
        %v2638 = vadd.f32 %v2554, %v2637
        %v2639 = vpop.f32.mrb[0].mxu0
        %2640 = vmatprep.mubr.f32.mxu0 0.0
        %2641 = vmatmul.mubr.f32.gmra.mrb[0].mxu0 %v2532
        %v2642 = vpop.f32.mrb[0].mxu0
        %v2643 = vadd.f32 %v2554, %v2642
        %v2644 = vpop.f32.mrb[0].mxu0
        %2645 = vmatprep.mubr.f32.mxu0 0.0
        %2646 = vmatmul.mubr.f32.gmra.mrb[0].mxu0 %v2537
        %v2647 = vpop.f32.mrb[0].mxu0
        %v2648 = vadd.f32 %v2554, %v2647
        %v2649 = vpop.f32.mrb[0].mxu0
        %2650 = vmatprep.mubr.f32.mxu0 0.0
        %2651 = vmatmul.mubr.f32.gmra.mrb[0].mxu0 %v2542
        %v2652 = vpop.f32.mrb[0].mxu0
        %v2653 = vadd.f32 %v2554, %v2652
        %v2654 = vpop.f32.mrb[0].mxu0
        %2655 = vmatprep.mubr.f32.mxu0 0.0
        %2656 = vmatmul.mubr.f32.gmra.mrb[0].mxu0 %v2547
        %v2657 = vpop.f32.mrb[0].mxu0
        %v2658 = vadd.f32 %v2554, %v2657
        %v2659 = vpop.f32.mrb[0].mxu0
        %2660 = vdwg.mxu0
        %v2661 = vadd.f32 %v1434, %v2623
        %v2662 = vadd.f32 %v1435, %v2628
        %v2663 = vadd.f32 %v1436, %v2633
        %v2664 = vadd.f32 %v1437, %v2638
        %v2665 = vadd.f32 %v1438, %v2643
        %v2666 = vadd.f32 %v1439, %v2648
        %v2667 = vadd.f32 %v1440, %v2653
        %v2668 = vadd.f32 %v1441, %v2658
        %v2669 = vld [vmem:[#allocation26] sm:$0x1]
        %v2670 = vld [vmem:[#allocation28] sm:$0x1]
        %v2671 = vadd.f32 %v2661, %v2662
        %v2672 = vadd.f32 %v2671, %v2663
        %v2673 = vadd.f32 %v2672, %v2664
        %v2674 = vadd.f32 %v2673, %v2665
        %v2675 = vadd.f32 %v2674, %v2666
        %v2676 = vadd.f32 %v2675, %v2667
        %v2677 = vadd.f32 %v2676, %v2668
        %v2678 = vrot.slane %v2677, 4
        %v2679 = vadd.f32 %v2677, %v2678
        %v2680 = vrot.slane %v2679, 2
        %v2681 = vadd.f32 %v2679, %v2680
        %v2682 = vrot.slane %v2681, 1
        %v2683 = vadd.f32 %v2681, %v2682
        %2684 = vmatprep.subr.mxu0 0.0
        %2685 = vmatpush1.msra.mxu0 %v1417
        %2686 = vmatprep.subr.mxu0 0.0
        %2687 = vmatpush1.msra.mxu0 %v1418
        %2688 = vmatprep.subr.mxu0 0.0
        %2689 = vmatpush1.msra.mxu0 %v1419
        %2690 = vmatprep.subr.mxu0 0.0
        %2691 = vmatpush1.msra.mxu0 %v1420
        %2692 = vmatprep.subr.mxu0 0.0
        %2693 = vmatpush1.msra.mxu0 %v1421
        %2694 = vmatprep.subr.mxu0 0.0
        %2695 = vmatpush1.msra.mxu0 %v1422
        %2696 = vmatprep.subr.mxu0 0.0
        %2697 = vmatpush1.msra.mxu0 %v1423
        %2698 = vmatprep.subr.mxu0 0.0
        %2699 = vmatpush1.msra.mxu0 %v1424
        %2700 = vmatprep.subr.mxu0 0.0
        %2701 = vmatpush1.msra.mxu0 %v1425
        %2702 = vmatprep.subr.mxu0 0.0
        %2703 = vmatpush1.msra.mxu0 %v1426
        %2704 = vmatprep.subr.mxu0 0.0
        %2705 = vmatpush1.msra.mxu0 %v1427
        %2706 = vmatprep.subr.mxu0 0.0
        %2707 = vmatpush1.msra.mxu0 %v1428
        %2708 = vmatprep.subr.mxu0 0.0
        %2709 = vmatpush1.msra.mxu0 %v1429
        %2710 = vmatprep.subr.mxu0 0.0
        %2711 = vmatpush1.msra.mxu0 %v1430
        %2712 = vmatprep.subr.mxu0 0.0
        %2713 = vmatpush1.msra.mxu0 %v1431
        %2714 = vmatprep.subr.mxu0 0.0
        %2715 = vmatpush1.msra.mxu0 %v1432
        %2716 = vmatprep.subr.mxu0 0.0
        %2717 = vmatpush1.msra.mxu0 0.0
        %2718 = vmatprep.subr.mxu0 0.0
        %2719 = vmatpush1.msra.mxu0 0.0
        %2720 = vmatprep.subr.mxu0 0.0
        %2721 = vmatpush1.msra.mxu0 0.0
        %2722 = vmatprep.subr.mxu0 0.0
        %2723 = vmatpush1.msra.mxu0 0.0
        %2724 = vmatprep.subr.mxu0 0.0
        %2725 = vmatpush1.msra.mxu0 0.0
        %2726 = vmatprep.subr.mxu0 0.0
        %2727 = vmatpush1.msra.mxu0 0.0
        %2728 = vmatprep.subr.mxu0 0.0
        %2729 = vmatpush1.msra.mxu0 0.0
        %2730 = vmatprep.subr.mxu0 0.0
        %2731 = vmatpush1.msra.mxu0 0.0
        %2732 = vmatprep.subr.mxu0 0.0
        %2733 = vmatpush1.msra.mxu0 0.0
        %2734 = vmatprep.subr.mxu0 0.0
        %2735 = vmatpush1.msra.mxu0 0.0
        %2736 = vmatprep.subr.mxu0 0.0
        %2737 = vmatpush1.msra.mxu0 0.0
        %2738 = vmatprep.subr.mxu0 0.0
        %2739 = vmatpush1.msra.mxu0 0.0
        %2740 = vmatprep.subr.mxu0 0.0
        %2741 = vmatpush1.msra.mxu0 0.0
        %2742 = vmatprep.subr.mxu0 0.0
        %2743 = vmatpush1.msra.mxu0 0.0
        %2744 = vmatprep.subr.mxu0 0.0
        %2745 = vmatpush1.msra.mxu0 0.0
        %2746 = vmatprep.subr.mxu0 0.0
        %2747 = vmatpush1.msra.mxu0 0.0
        %2748 = vmatprep.mubr.f32.mxu0 0.0
        %2749 = vmatmul.mubr.f32.gmra.mrb[0].mxu0 %v2683
        %v2750 = vpop.f32.mrb[0].mxu0
        %v2751 = vadd.f32 0.0, %v2750
        %v2752 = vpop.f32.mrb[0].mxu0
        %2753 = vdwg.mxu0
        %v2755 = vsel %vm1527, %v2751, 0
        %2757 = vmatprep.subr.mxu0 0.0
        %2758 = vmatpush1.msra.mxu0 %v1433
        %2759 = vmatprep.subr.mxu0 0.0
        %2760 = vmatpush1.msra.mxu0 0.0
        %2761 = vmatprep.subr.mxu0 0.0
        %2762 = vmatpush1.msra.mxu0 0.0
        %2763 = vmatprep.subr.mxu0 0.0
        %2764 = vmatpush1.msra.mxu0 0.0
        %2765 = vmatprep.subr.mxu0 0.0
        %2766 = vmatpush1.msra.mxu0 0.0
        %2767 = vmatprep.subr.mxu0 0.0
        %2768 = vmatpush1.msra.mxu0 0.0
        %2769 = vmatprep.subr.mxu0 0.0
        %2770 = vmatpush1.msra.mxu0 0.0
        %2771 = vmatprep.subr.mxu0 0.0
        %2772 = vmatpush1.msra.mxu0 0.0
        %2773 = vmatprep.subr.mxu0 0.0
        %2774 = vmatpush1.msra.mxu0 0.0
        %2775 = vmatprep.subr.mxu0 0.0
        %2776 = vmatpush1.msra.mxu0 0.0
        %2777 = vmatprep.subr.mxu0 0.0
        %2778 = vmatpush1.msra.mxu0 0.0
        %2779 = vmatprep.subr.mxu0 0.0
        %2780 = vmatpush1.msra.mxu0 0.0
        %2781 = vmatprep.subr.mxu0 0.0
        %2782 = vmatpush1.msra.mxu0 0.0
        %2783 = vmatprep.subr.mxu0 0.0
        %2784 = vmatpush1.msra.mxu0 0.0
        %2785 = vmatprep.subr.mxu0 0.0
        %2786 = vmatpush1.msra.mxu0 0.0
        %2787 = vmatprep.subr.mxu0 0.0
        %2788 = vmatpush1.msra.mxu0 0.0
        %2789 = vmatprep.subr.mxu0 0.0
        %2790 = vmatpush1.msra.mxu0 0.0
        %2791 = vmatprep.subr.mxu0 0.0
        %2792 = vmatpush1.msra.mxu0 0.0
        %2793 = vmatprep.subr.mxu0 0.0
        %2794 = vmatpush1.msra.mxu0 0.0
        %2795 = vmatprep.subr.mxu0 0.0
        %2796 = vmatpush1.msra.mxu0 0.0
        %2797 = vmatprep.subr.mxu0 0.0
        %2798 = vmatpush1.msra.mxu0 0.0
        %2799 = vmatprep.subr.mxu0 0.0
        %2800 = vmatpush1.msra.mxu0 0.0
        %2801 = vmatprep.subr.mxu0 0.0
        %2802 = vmatpush1.msra.mxu0 0.0
        %2803 = vmatprep.subr.mxu0 0.0
        %2804 = vmatpush1.msra.mxu0 0.0
        %2805 = vmatprep.subr.mxu0 0.0
        %2806 = vmatpush1.msra.mxu0 0.0
        %2807 = vmatprep.subr.mxu0 0.0
        %2808 = vmatpush1.msra.mxu0 0.0
        %2809 = vmatprep.subr.mxu0 0.0
        %2810 = vmatpush1.msra.mxu0 0.0
        %2811 = vmatprep.subr.mxu0 0.0
        %2812 = vmatpush1.msra.mxu0 0.0
        %2813 = vmatprep.subr.mxu0 0.0
        %2814 = vmatpush1.msra.mxu0 0.0
        %2815 = vmatprep.subr.mxu0 0.0
        %2816 = vmatpush1.msra.mxu0 0.0
        %2817 = vmatprep.subr.mxu0 0.0
        %2818 = vmatpush1.msra.mxu0 0.0
        %2819 = vmatprep.subr.mxu0 0.0
        %2820 = vmatpush1.msra.mxu0 0.0
        %2821 = vmatprep.mubr.f32.mxu0 0.0
        %2822 = vmatmul.mubr.f32.gmra.mrb[0].mxu0 %v2755
        %v2823 = vpop.f32.mrb[0].mxu0
        %v2824 = vadd.f32 0.0, %v2823
        %v2825 = vpop.f32.mrb[0].mxu0
        %2826 = vdwg.mxu0
        %v2827 = vlaneseq
        %v2828 = vshrl.u32 %v2827, 7
        %v2829 = vsub.s32 0, %v2828
        %v2830 = vrot.slane %v2824, %v2829
        %v2831 = vsub.f32 %v2661, %v2830
        %v2832 = vsub.f32 %v2662, %v2830
        %v2833 = vsub.f32 %v2663, %v2830
        %v2834 = vsub.f32 %v2664, %v2830
        %v2835 = vsub.f32 %v2665, %v2830
        %v2836 = vsub.f32 %v2666, %v2830
        %v2837 = vsub.f32 %v2667, %v2830
        %v2838 = vsub.f32 %v2668, %v2830
        %v2839 = vmul.f32 %v2831, %v2831
        %v2840 = vmul.f32 %v2832, %v2832
        %v2841 = vmul.f32 %v2833, %v2833
        %v2842 = vmul.f32 %v2834, %v2834
        %v2843 = vmul.f32 %v2835, %v2835
        %v2844 = vmul.f32 %v2836, %v2836
        %v2845 = vmul.f32 %v2837, %v2837
        %v2846 = vmul.f32 %v2838, %v2838
        %v2847 = vadd.f32 %v2839, %v2840
        %v2848 = vadd.f32 %v2847, %v2841
        %v2849 = vadd.f32 %v2848, %v2842
        %v2850 = vadd.f32 %v2849, %v2843
        %v2851 = vadd.f32 %v2850, %v2844
        %v2852 = vadd.f32 %v2851, %v2845
        %v2853 = vadd.f32 %v2852, %v2846
        %v2854 = vrot.slane %v2853, 4
        %v2855 = vadd.f32 %v2853, %v2854
        %v2856 = vrot.slane %v2855, 2
        %v2857 = vadd.f32 %v2855, %v2856
        %v2858 = vrot.slane %v2857, 1
        %v2859 = vadd.f32 %v2857, %v2858
        %2860 = vmatprep.subr.mxu0 0.0
        %2861 = vmatpush1.msra.mxu0 %v1417
        %2862 = vmatprep.subr.mxu0 0.0
        %2863 = vmatpush1.msra.mxu0 %v1418
        %2864 = vmatprep.subr.mxu0 0.0
        %2865 = vmatpush1.msra.mxu0 %v1419
        %2866 = vmatprep.subr.mxu0 0.0
        %2867 = vmatpush1.msra.mxu0 %v1420
        %2868 = vmatprep.subr.mxu0 0.0
        %2869 = vmatpush1.msra.mxu0 %v1421
        %2870 = vmatprep.subr.mxu0 0.0
        %2871 = vmatpush1.msra.mxu0 %v1422
        %2872 = vmatprep.subr.mxu0 0.0
        %2873 = vmatpush1.msra.mxu0 %v1423
        %2874 = vmatprep.subr.mxu0 0.0
        %2875 = vmatpush1.msra.mxu0 %v1424
        %2876 = vmatprep.subr.mxu0 0.0
        %2877 = vmatpush1.msra.mxu0 %v1425
        %2878 = vmatprep.subr.mxu0 0.0
        %2879 = vmatpush1.msra.mxu0 %v1426
        %2880 = vmatprep.subr.mxu0 0.0
        %2881 = vmatpush1.msra.mxu0 %v1427
        %2882 = vmatprep.subr.mxu0 0.0
        %2883 = vmatpush1.msra.mxu0 %v1428
        %2884 = vmatprep.subr.mxu0 0.0
        %2885 = vmatpush1.msra.mxu0 %v1429
        %2886 = vmatprep.subr.mxu0 0.0
        %2887 = vmatpush1.msra.mxu0 %v1430
        %2888 = vmatprep.subr.mxu0 0.0
        %2889 = vmatpush1.msra.mxu0 %v1431
        %2890 = vmatprep.subr.mxu0 0.0
        %2891 = vmatpush1.msra.mxu0 %v1432
        %2892 = vmatprep.subr.mxu0 0.0
        %2893 = vmatpush1.msra.mxu0 0.0
        %2894 = vmatprep.subr.mxu0 0.0
        %2895 = vmatpush1.msra.mxu0 0.0
        %2896 = vmatprep.subr.mxu0 0.0
        %2897 = vmatpush1.msra.mxu0 0.0
        %2898 = vmatprep.subr.mxu0 0.0
        %2899 = vmatpush1.msra.mxu0 0.0
        %2900 = vmatprep.subr.mxu0 0.0
        %2901 = vmatpush1.msra.mxu0 0.0
        %2902 = vmatprep.subr.mxu0 0.0
        %2903 = vmatpush1.msra.mxu0 0.0
        %2904 = vmatprep.subr.mxu0 0.0
        %2905 = vmatpush1.msra.mxu0 0.0
        %2906 = vmatprep.subr.mxu0 0.0
        %2907 = vmatpush1.msra.mxu0 0.0
        %2908 = vmatprep.subr.mxu0 0.0
        %2909 = vmatpush1.msra.mxu0 0.0
        %2910 = vmatprep.subr.mxu0 0.0
        %2911 = vmatpush1.msra.mxu0 0.0
        %2912 = vmatprep.subr.mxu0 0.0
        %2913 = vmatpush1.msra.mxu0 0.0
        %2914 = vmatprep.subr.mxu0 0.0
        %2915 = vmatpush1.msra.mxu0 0.0
        %2916 = vmatprep.subr.mxu0 0.0
        %2917 = vmatpush1.msra.mxu0 0.0
        %2918 = vmatprep.subr.mxu0 0.0
        %2919 = vmatpush1.msra.mxu0 0.0
        %2920 = vmatprep.subr.mxu0 0.0
        %2921 = vmatpush1.msra.mxu0 0.0
        %2922 = vmatprep.subr.mxu0 0.0
        %2923 = vmatpush1.msra.mxu0 0.0
        %2924 = vmatprep.mubr.f32.mxu0 0.0
        %2925 = vmatmul.mubr.f32.gmra.mrb[0].mxu0 %v2859
        %v2926 = vpop.f32.mrb[0].mxu0
        %v2927 = vadd.f32 0.0, %v2926
        %v2928 = vpop.f32.mrb[0].mxu0
        %2929 = vdwg.mxu0
        %v2931 = vsel %vm1527, %v2927, 0
        %2933 = vmatprep.subr.mxu0 0.0
        %2934 = vmatpush1.msra.mxu0 %v1433
        %2935 = vmatprep.subr.mxu0 0.0
        %2936 = vmatpush1.msra.mxu0 0.0
        %2937 = vmatprep.subr.mxu0 0.0
        %2938 = vmatpush1.msra.mxu0 0.0
        %2939 = vmatprep.subr.mxu0 0.0
        %2940 = vmatpush1.msra.mxu0 0.0
        %2941 = vmatprep.subr.mxu0 0.0
        %2942 = vmatpush1.msra.mxu0 0.0
        %2943 = vmatprep.subr.mxu0 0.0
        %2944 = vmatpush1.msra.mxu0 0.0
        %2945 = vmatprep.subr.mxu0 0.0
        %2946 = vmatpush1.msra.mxu0 0.0
        %2947 = vmatprep.subr.mxu0 0.0
        %2948 = vmatpush1.msra.mxu0 0.0
        %2949 = vmatprep.subr.mxu0 0.0
        %2950 = vmatpush1.msra.mxu0 0.0
        %2951 = vmatprep.subr.mxu0 0.0
        %2952 = vmatpush1.msra.mxu0 0.0
        %2953 = vmatprep.subr.mxu0 0.0
        %2954 = vmatpush1.msra.mxu0 0.0
        %2955 = vmatprep.subr.mxu0 0.0
        %2956 = vmatpush1.msra.mxu0 0.0
        %2957 = vmatprep.subr.mxu0 0.0
        %2958 = vmatpush1.msra.mxu0 0.0
        %2959 = vmatprep.subr.mxu0 0.0
        %2960 = vmatpush1.msra.mxu0 0.0
        %2961 = vmatprep.subr.mxu0 0.0
        %2962 = vmatpush1.msra.mxu0 0.0
        %2963 = vmatprep.subr.mxu0 0.0
        %2964 = vmatpush1.msra.mxu0 0.0
        %2965 = vmatprep.subr.mxu0 0.0
        %2966 = vmatpush1.msra.mxu0 0.0
        %2967 = vmatprep.subr.mxu0 0.0
        %2968 = vmatpush1.msra.mxu0 0.0
        %2969 = vmatprep.subr.mxu0 0.0
        %2970 = vmatpush1.msra.mxu0 0.0
        %2971 = vmatprep.subr.mxu0 0.0
        %2972 = vmatpush1.msra.mxu0 0.0
        %2973 = vmatprep.subr.mxu0 0.0
        %2974 = vmatpush1.msra.mxu0 0.0
        %2975 = vmatprep.subr.mxu0 0.0
        %2976 = vmatpush1.msra.mxu0 0.0
        %2977 = vmatprep.subr.mxu0 0.0
        %2978 = vmatpush1.msra.mxu0 0.0
        %2979 = vmatprep.subr.mxu0 0.0
        %2980 = vmatpush1.msra.mxu0 0.0
        %2981 = vmatprep.subr.mxu0 0.0
        %2982 = vmatpush1.msra.mxu0 0.0
        %2983 = vmatprep.subr.mxu0 0.0
        %2984 = vmatpush1.msra.mxu0 0.0
        %2985 = vmatprep.subr.mxu0 0.0
        %2986 = vmatpush1.msra.mxu0 0.0
        %2987 = vmatprep.subr.mxu0 0.0
        %2988 = vmatpush1.msra.mxu0 0.0
        %2989 = vmatprep.subr.mxu0 0.0
        %2990 = vmatpush1.msra.mxu0 0.0
        %2991 = vmatprep.subr.mxu0 0.0
        %2992 = vmatpush1.msra.mxu0 0.0
        %2993 = vmatprep.subr.mxu0 0.0
        %2994 = vmatpush1.msra.mxu0 0.0
        %2995 = vmatprep.subr.mxu0 0.0
        %2996 = vmatpush1.msra.mxu0 0.0
        %2997 = vmatprep.mubr.f32.mxu0 0.0
        %2998 = vmatmul.mubr.f32.gmra.mrb[0].mxu0 %v2931
        %v2999 = vpop.f32.mrb[0].mxu0
        %v3000 = vadd.f32 1e-05, %v2999
        %v3001 = vpop.f32.mrb[0].mxu0
        %3002 = vdwg.mxu0
        %v3003 = vrsqrt.pop %v3000
        %v3004 = vlaneseq
        %v3005 = vshrl.u32 %v3004, 7
        %v3006 = vsub.s32 0, %v3005
        %v3007 = vrot.slane %v3003, %v3006
        %v3008 = vmul.f32 %v2831, %v3007
        %v3009 = vmul.f32 %v2832, %v3007
        %v3010 = vmul.f32 %v2833, %v3007
        %v3011 = vmul.f32 %v2834, %v3007
        %v3012 = vmul.f32 %v2835, %v3007
        %v3013 = vmul.f32 %v2836, %v3007
        %v3014 = vmul.f32 %v2837, %v3007
        %v3015 = vmul.f32 %v2838, %v3007
        %v3017 = vlaneseq
        %v3018 = vshrl.u32 %v3017, 7
        %v3019 = vsub.s32 0, %v3018
        %v3020 = vrot.slane %v2669, %v3019
        %v3022 = vmul.f32 %v3008, %v3020
        %v3023 = vmul.f32 %v3009, %v3020
        %v3024 = vmul.f32 %v3010, %v3020
        %v3025 = vmul.f32 %v3011, %v3020
        %v3026 = vmul.f32 %v3012, %v3020
        %v3027 = vmul.f32 %v3013, %v3020
        %v3028 = vmul.f32 %v3014, %v3020
        %v3029 = vmul.f32 %v3015, %v3020
        %v3031 = vlaneseq
        %v3032 = vshrl.u32 %v3031, 7
        %v3033 = vsub.s32 0, %v3032
        %v3034 = vrot.slane %v2670, %v3033
        %v3036 = vadd.f32 %v3022, %v3034
        %v3037 = vadd.f32 %v3023, %v3034
        %v3038 = vadd.f32 %v3024, %v3034
        %v3039 = vadd.f32 %v3025, %v3034
        %v3040 = vadd.f32 %v3026, %v3034
        %v3041 = vadd.f32 %v3027, %v3034
        %v3042 = vadd.f32 %v3028, %v3034
        %v3043 = vadd.f32 %v3029, %v3034
        %v3044 = vld [vmem:[#allocation29] sm:$0xff]
        %v3045 = vld [vmem:[#allocation29 + $0x8] sm:$0xff]
        %v3046 = vld [vmem:[#allocation29 + $0x10] sm:$0xff]
        %v3047 = vld [vmem:[#allocation29 + $0x18] sm:$0xff]
        %v3048 = vld [vmem:[#allocation29 + $0x20] sm:$0xff]
        %v3049 = vld [vmem:[#allocation29 + $0x28] sm:$0xff]
        %v3050 = vld [vmem:[#allocation29 + $0x30] sm:$0xff]
        %v3051 = vld [vmem:[#allocation29 + $0x38] sm:$0xff]
        %v3052 = vld [vmem:[#allocation29 + $0x40] sm:$0xff]
        %v3053 = vld [vmem:[#allocation29 + $0x48] sm:$0xff]
        %v3054 = vld [vmem:[#allocation29 + $0x50] sm:$0xff]
        %v3055 = vld [vmem:[#allocation29 + $0x58] sm:$0xff]
        %v3056 = vld [vmem:[#allocation29 + $0x60] sm:$0xff]
        %v3057 = vld [vmem:[#allocation29 + $0x68] sm:$0xff]
        %v3058 = vld [vmem:[#allocation29 + $0x70] sm:$0xff]
        %v3059 = vld [vmem:[#allocation29 + $0x78] sm:$0xff]
        %v3060 = vld [vmem:[#allocation29 + $0x80] sm:$0xff]
        %v3061 = vld [vmem:[#allocation29 + $0x88] sm:$0xff]
        %v3062 = vld [vmem:[#allocation29 + $0x90] sm:$0xff]
        %v3063 = vld [vmem:[#allocation29 + $0x98] sm:$0xff]
        %v3064 = vld [vmem:[#allocation29 + $0xa0] sm:$0xff]
        %v3065 = vld [vmem:[#allocation29 + $0xa8] sm:$0xff]
        %v3066 = vld [vmem:[#allocation29 + $0xb0] sm:$0xff]
        %v3067 = vld [vmem:[#allocation29 + $0xb8] sm:$0xff]
        %v3068 = vld [vmem:[#allocation29 + $0xc0] sm:$0xff]
        %v3069 = vld [vmem:[#allocation29 + $0xc8] sm:$0xff]
        %v3070 = vld [vmem:[#allocation29 + $0xd0] sm:$0xff]
        %v3071 = vld [vmem:[#allocation29 + $0xd8] sm:$0xff]
        %v3072 = vld [vmem:[#allocation29 + $0xe0] sm:$0xff]
        %v3073 = vld [vmem:[#allocation29 + $0xe8] sm:$0xff]
        %v3074 = vld [vmem:[#allocation29 + $0xf0] sm:$0xff]
        %v3075 = vld [vmem:[#allocation29 + $0xf8] sm:$0xff]
        %v3076 = vld [vmem:[#allocation29 + $0x100] sm:$0xff]
        %v3077 = vld [vmem:[#allocation29 + $0x108] sm:$0xff]
        %v3078 = vld [vmem:[#allocation29 + $0x110] sm:$0xff]
        %v3079 = vld [vmem:[#allocation29 + $0x118] sm:$0xff]
        %v3080 = vld [vmem:[#allocation29 + $0x120] sm:$0xff]
        %v3081 = vld [vmem:[#allocation29 + $0x128] sm:$0xff]
        %v3082 = vld [vmem:[#allocation29 + $0x130] sm:$0xff]
        %v3083 = vld [vmem:[#allocation29 + $0x138] sm:$0xff]
        %v3084 = vld [vmem:[#allocation29 + $0x140] sm:$0xff]
        %v3085 = vld [vmem:[#allocation29 + $0x148] sm:$0xff]
        %v3086 = vld [vmem:[#allocation29 + $0x150] sm:$0xff]
        %v3087 = vld [vmem:[#allocation29 + $0x158] sm:$0xff]
        %v3088 = vld [vmem:[#allocation29 + $0x160] sm:$0xff]
        %v3089 = vld [vmem:[#allocation29 + $0x168] sm:$0xff]
        %v3090 = vld [vmem:[#allocation29 + $0x170] sm:$0xff]
        %v3091 = vld [vmem:[#allocation29 + $0x178] sm:$0xff]
        %v3092 = vld [vmem:[#allocation29 + $0x180] sm:$0xff]
        %v3093 = vld [vmem:[#allocation29 + $0x188] sm:$0xff]
        %v3094 = vld [vmem:[#allocation29 + $0x190] sm:$0xff]
        %v3095 = vld [vmem:[#allocation29 + $0x198] sm:$0xff]
        %v3096 = vld [vmem:[#allocation29 + $0x1a0] sm:$0xff]
        %v3097 = vld [vmem:[#allocation29 + $0x1a8] sm:$0xff]
        %v3098 = vld [vmem:[#allocation29 + $0x1b0] sm:$0xff]
        %v3099 = vld [vmem:[#allocation29 + $0x1b8] sm:$0xff]
        %v3100 = vld [vmem:[#allocation29 + $0x1c0] sm:$0xff]
        %v3101 = vld [vmem:[#allocation29 + $0x1c8] sm:$0xff]
        %v3102 = vld [vmem:[#allocation29 + $0x1d0] sm:$0xff]
        %v3103 = vld [vmem:[#allocation29 + $0x1d8] sm:$0xff]
        %v3104 = vld [vmem:[#allocation29 + $0x1e0] sm:$0xff]
        %v3105 = vld [vmem:[#allocation29 + $0x1e8] sm:$0xff]
        %v3106 = vld [vmem:[#allocation29 + $0x1f0] sm:$0xff]
        %v3107 = vld [vmem:[#allocation29 + $0x1f8] sm:$0xff]
        %v3108 = vld [vmem:[#allocation31] sm:$0xf]
        %v3110 = vlaneseq
        %v3111 = vshrl.u32 %v3110, 7
        %v3112 = vsub.s32 0, %v3111
        %v3113 = vrot.slane %v3108, %v3112
        %v3114 = vlaneseq
        %v3115 = vshrl.u32 %v3114, 7
        %v3116 = vsub.s32 1, %v3115
        %v3117 = vrot.slane %v3108, %v3116
        %v3118 = vlaneseq
        %v3119 = vshrl.u32 %v3118, 7
        %v3120 = vsub.s32 2, %v3119
        %v3121 = vrot.slane %v3108, %v3120
        %v3122 = vlaneseq
        %v3123 = vshrl.u32 %v3122, 7
        %v3124 = vsub.s32 3, %v3123
        %v3125 = vrot.slane %v3108, %v3124
        %3130 = vmatprep.subr.mxu0 %v3045
        %3131 = vmatpush1.msra.mxu0 %v3044
        %3132 = vmatprep.subr.mxu0 %v3049
        %3133 = vmatpush1.msra.mxu0 %v3048
        %3134 = vmatprep.subr.mxu0 %v3053
        %3135 = vmatpush1.msra.mxu0 %v3052
        %3136 = vmatprep.subr.mxu0 %v3057
        %3137 = vmatpush1.msra.mxu0 %v3056
        %3138 = vmatprep.subr.mxu0 %v3061
        %3139 = vmatpush1.msra.mxu0 %v3060
        %3140 = vmatprep.subr.mxu0 %v3065
        %3141 = vmatpush1.msra.mxu0 %v3064
        %3142 = vmatprep.subr.mxu0 %v3069
        %3143 = vmatpush1.msra.mxu0 %v3068
        %3144 = vmatprep.subr.mxu0 %v3073
        %3145 = vmatpush1.msra.mxu0 %v3072
        %3146 = vmatprep.subr.mxu0 %v3077
        %3147 = vmatpush1.msra.mxu0 %v3076
        %3148 = vmatprep.subr.mxu0 %v3081
        %3149 = vmatpush1.msra.mxu0 %v3080
        %3150 = vmatprep.subr.mxu0 %v3085
        %3151 = vmatpush1.msra.mxu0 %v3084
        %3152 = vmatprep.subr.mxu0 %v3089
        %3153 = vmatpush1.msra.mxu0 %v3088
        %3154 = vmatprep.subr.mxu0 %v3093
        %3155 = vmatpush1.msra.mxu0 %v3092
        %3156 = vmatprep.subr.mxu0 %v3097
        %3157 = vmatpush1.msra.mxu0 %v3096
        %3158 = vmatprep.subr.mxu0 %v3101
        %3159 = vmatpush1.msra.mxu0 %v3100
        %3160 = vmatprep.subr.mxu0 %v3105
        %3161 = vmatpush1.msra.mxu0 %v3104
        %3162 = vmatprep.subr.mxu0 0.0
        %3163 = vmatpush1.msra.mxu0 0.0
        %3164 = vmatprep.subr.mxu0 0.0
        %3165 = vmatpush1.msra.mxu0 0.0
        %3166 = vmatprep.subr.mxu0 0.0
        %3167 = vmatpush1.msra.mxu0 0.0
        %3168 = vmatprep.subr.mxu0 0.0
        %3169 = vmatpush1.msra.mxu0 0.0
        %3170 = vmatprep.subr.mxu0 0.0
        %3171 = vmatpush1.msra.mxu0 0.0
        %3172 = vmatprep.subr.mxu0 0.0
        %3173 = vmatpush1.msra.mxu0 0.0
        %3174 = vmatprep.subr.mxu0 0.0
        %3175 = vmatpush1.msra.mxu0 0.0
        %3176 = vmatprep.subr.mxu0 0.0
        %3177 = vmatpush1.msra.mxu0 0.0
        %3178 = vmatprep.subr.mxu0 0.0
        %3179 = vmatpush1.msra.mxu0 0.0
        %3180 = vmatprep.subr.mxu0 0.0
        %3181 = vmatpush1.msra.mxu0 0.0
        %3182 = vmatprep.subr.mxu0 0.0
        %3183 = vmatpush1.msra.mxu0 0.0
        %3184 = vmatprep.subr.mxu0 0.0
        %3185 = vmatpush1.msra.mxu0 0.0
        %3186 = vmatprep.subr.mxu0 0.0
        %3187 = vmatpush1.msra.mxu0 0.0
        %3188 = vmatprep.subr.mxu0 0.0
        %3189 = vmatpush1.msra.mxu0 0.0
        %3190 = vmatprep.subr.mxu0 0.0
        %3191 = vmatpush1.msra.mxu0 0.0
        %3192 = vmatprep.subr.mxu0 0.0
        %3193 = vmatpush1.msra.mxu0 0.0
        %3194 = vmatprep.mubr.f32.mxu0 0.0
        %3195 = vmatmul.mubr.f32.gmra.mrb[0].mxu0 %v3036
        %v3196 = vpop.f32.mrb[0].mxu0
        %v3197 = vadd.f32 %v3113, %v3196
        %v3198 = vpop.f32.mrb[0].mxu0
        %v3199 = vadd.f32 %v3117, %v3198
        %3200 = vmatprep.mubr.f32.mxu0 0.0
        %3201 = vmatmul.mubr.f32.gmra.mrb[0].mxu0 %v3037
        %v3202 = vpop.f32.mrb[0].mxu0
        %v3203 = vadd.f32 %v3113, %v3202
        %v3204 = vpop.f32.mrb[0].mxu0
        %v3205 = vadd.f32 %v3117, %v3204
        %3206 = vmatprep.mubr.f32.mxu0 0.0
        %3207 = vmatmul.mubr.f32.gmra.mrb[0].mxu0 %v3038
        %v3208 = vpop.f32.mrb[0].mxu0
        %v3209 = vadd.f32 %v3113, %v3208
        %v3210 = vpop.f32.mrb[0].mxu0
        %v3211 = vadd.f32 %v3117, %v3210
        %3212 = vmatprep.mubr.f32.mxu0 0.0
        %3213 = vmatmul.mubr.f32.gmra.mrb[0].mxu0 %v3039
        %v3214 = vpop.f32.mrb[0].mxu0
        %v3215 = vadd.f32 %v3113, %v3214
        %v3216 = vpop.f32.mrb[0].mxu0
        %v3217 = vadd.f32 %v3117, %v3216
        %3218 = vmatprep.mubr.f32.mxu0 0.0
        %3219 = vmatmul.mubr.f32.gmra.mrb[0].mxu0 %v3040
        %v3220 = vpop.f32.mrb[0].mxu0
        %v3221 = vadd.f32 %v3113, %v3220
        %v3222 = vpop.f32.mrb[0].mxu0
        %v3223 = vadd.f32 %v3117, %v3222
        %3224 = vmatprep.mubr.f32.mxu0 0.0
        %3225 = vmatmul.mubr.f32.gmra.mrb[0].mxu0 %v3041
        %v3226 = vpop.f32.mrb[0].mxu0
        %v3227 = vadd.f32 %v3113, %v3226
        %v3228 = vpop.f32.mrb[0].mxu0
        %v3229 = vadd.f32 %v3117, %v3228
        %3230 = vmatprep.mubr.f32.mxu0 0.0
        %3231 = vmatmul.mubr.f32.gmra.mrb[0].mxu0 %v3042
        %v3232 = vpop.f32.mrb[0].mxu0
        %v3233 = vadd.f32 %v3113, %v3232
        %v3234 = vpop.f32.mrb[0].mxu0
        %v3235 = vadd.f32 %v3117, %v3234
        %3236 = vmatprep.mubr.f32.mxu0 0.0
        %3237 = vmatmul.mubr.f32.gmra.mrb[0].mxu0 %v3043
        %v3238 = vpop.f32.mrb[0].mxu0
        %v3239 = vadd.f32 %v3113, %v3238
        %v3240 = vpop.f32.mrb[0].mxu0
        %v3241 = vadd.f32 %v3117, %v3240
        %3242 = vdwg.mxu0
        %3243 = vmatprep.subr.mxu0 %v3047
        %3244 = vmatpush1.msra.mxu0 %v3046
        %3245 = vmatprep.subr.mxu0 %v3051
        %3246 = vmatpush1.msra.mxu0 %v3050
        %3247 = vmatprep.subr.mxu0 %v3055
        %3248 = vmatpush1.msra.mxu0 %v3054
        %3249 = vmatprep.subr.mxu0 %v3059
        %3250 = vmatpush1.msra.mxu0 %v3058
        %3251 = vmatprep.subr.mxu0 %v3063
        %3252 = vmatpush1.msra.mxu0 %v3062
        %3253 = vmatprep.subr.mxu0 %v3067
        %3254 = vmatpush1.msra.mxu0 %v3066
        %3255 = vmatprep.subr.mxu0 %v3071
        %3256 = vmatpush1.msra.mxu0 %v3070
        %3257 = vmatprep.subr.mxu0 %v3075
        %3258 = vmatpush1.msra.mxu0 %v3074
        %3259 = vmatprep.subr.mxu0 %v3079
        %3260 = vmatpush1.msra.mxu0 %v3078
        %3261 = vmatprep.subr.mxu0 %v3083
        %3262 = vmatpush1.msra.mxu0 %v3082
        %3263 = vmatprep.subr.mxu0 %v3087
        %3264 = vmatpush1.msra.mxu0 %v3086
        %3265 = vmatprep.subr.mxu0 %v3091
        %3266 = vmatpush1.msra.mxu0 %v3090
        %3267 = vmatprep.subr.mxu0 %v3095
        %3268 = vmatpush1.msra.mxu0 %v3094
        %3269 = vmatprep.subr.mxu0 %v3099
        %3270 = vmatpush1.msra.mxu0 %v3098
        %3271 = vmatprep.subr.mxu0 %v3103
        %3272 = vmatpush1.msra.mxu0 %v3102
        %3273 = vmatprep.subr.mxu0 %v3107
        %3274 = vmatpush1.msra.mxu0 %v3106
        %3275 = vmatprep.subr.mxu0 0.0
        %3276 = vmatpush1.msra.mxu0 0.0
        %3277 = vmatprep.subr.mxu0 0.0
        %3278 = vmatpush1.msra.mxu0 0.0
        %3279 = vmatprep.subr.mxu0 0.0
        %3280 = vmatpush1.msra.mxu0 0.0
        %3281 = vmatprep.subr.mxu0 0.0
        %3282 = vmatpush1.msra.mxu0 0.0
        %3283 = vmatprep.subr.mxu0 0.0
        %3284 = vmatpush1.msra.mxu0 0.0
        %3285 = vmatprep.subr.mxu0 0.0
        %3286 = vmatpush1.msra.mxu0 0.0
        %3287 = vmatprep.subr.mxu0 0.0
        %3288 = vmatpush1.msra.mxu0 0.0
        %3289 = vmatprep.subr.mxu0 0.0
        %3290 = vmatpush1.msra.mxu0 0.0
        %3291 = vmatprep.subr.mxu0 0.0
        %3292 = vmatpush1.msra.mxu0 0.0
        %3293 = vmatprep.subr.mxu0 0.0
        %3294 = vmatpush1.msra.mxu0 0.0
        %3295 = vmatprep.subr.mxu0 0.0
        %3296 = vmatpush1.msra.mxu0 0.0
        %3297 = vmatprep.subr.mxu0 0.0
        %3298 = vmatpush1.msra.mxu0 0.0
        %3299 = vmatprep.subr.mxu0 0.0
        %3300 = vmatpush1.msra.mxu0 0.0
        %3301 = vmatprep.subr.mxu0 0.0
        %3302 = vmatpush1.msra.mxu0 0.0
        %3303 = vmatprep.subr.mxu0 0.0
        %3304 = vmatpush1.msra.mxu0 0.0
        %3305 = vmatprep.subr.mxu0 0.0
        %3306 = vmatpush1.msra.mxu0 0.0
        %3307 = vmatprep.mubr.f32.mxu0 0.0
        %3308 = vmatmul.mubr.f32.gmra.mrb[0].mxu0 %v3036
        %v3309 = vpop.f32.mrb[0].mxu0
        %v3310 = vadd.f32 %v3121, %v3309
        %v3311 = vpop.f32.mrb[0].mxu0
        %v3312 = vadd.f32 %v3125, %v3311
        %3313 = vmatprep.mubr.f32.mxu0 0.0
        %3314 = vmatmul.mubr.f32.gmra.mrb[0].mxu0 %v3037
        %v3315 = vpop.f32.mrb[0].mxu0
        %v3316 = vadd.f32 %v3121, %v3315
        %v3317 = vpop.f32.mrb[0].mxu0
        %v3318 = vadd.f32 %v3125, %v3317
        %3319 = vmatprep.mubr.f32.mxu0 0.0
        %3320 = vmatmul.mubr.f32.gmra.mrb[0].mxu0 %v3038
        %v3321 = vpop.f32.mrb[0].mxu0
        %v3322 = vadd.f32 %v3121, %v3321
        %v3323 = vpop.f32.mrb[0].mxu0
        %v3324 = vadd.f32 %v3125, %v3323
        %3325 = vmatprep.mubr.f32.mxu0 0.0
        %3326 = vmatmul.mubr.f32.gmra.mrb[0].mxu0 %v3039
        %v3327 = vpop.f32.mrb[0].mxu0
        %v3328 = vadd.f32 %v3121, %v3327
        %v3329 = vpop.f32.mrb[0].mxu0
        %v3330 = vadd.f32 %v3125, %v3329
        %3331 = vmatprep.mubr.f32.mxu0 0.0
        %3332 = vmatmul.mubr.f32.gmra.mrb[0].mxu0 %v3040
        %v3333 = vpop.f32.mrb[0].mxu0
        %v3334 = vadd.f32 %v3121, %v3333
        %v3335 = vpop.f32.mrb[0].mxu0
        %v3336 = vadd.f32 %v3125, %v3335
        %3337 = vmatprep.mubr.f32.mxu0 0.0
        %3338 = vmatmul.mubr.f32.gmra.mrb[0].mxu0 %v3041
        %v3339 = vpop.f32.mrb[0].mxu0
        %v3340 = vadd.f32 %v3121, %v3339
        %v3341 = vpop.f32.mrb[0].mxu0
        %v3342 = vadd.f32 %v3125, %v3341
        %3343 = vmatprep.mubr.f32.mxu0 0.0
        %3344 = vmatmul.mubr.f32.gmra.mrb[0].mxu0 %v3042
        %v3345 = vpop.f32.mrb[0].mxu0
        %v3346 = vadd.f32 %v3121, %v3345
        %v3347 = vpop.f32.mrb[0].mxu0
        %v3348 = vadd.f32 %v3125, %v3347
        %3349 = vmatprep.mubr.f32.mxu0 0.0
        %3350 = vmatmul.mubr.f32.gmra.mrb[0].mxu0 %v3043
        %v3351 = vpop.f32.mrb[0].mxu0
        %v3352 = vadd.f32 %v3121, %v3351
        %v3353 = vpop.f32.mrb[0].mxu0
        %v3354 = vadd.f32 %v3125, %v3353
        %3355 = vdwg.mxu0
        %v3356 = vxor.u32 %v3197, 2147483648
        %v3357 = vxor.u32 %v3199, 2147483648
        %v3358 = vxor.u32 %v3310, 2147483648
        %v3359 = vxor.u32 %v3312, 2147483648
        %v3360 = vxor.u32 %v3203, 2147483648
        %v3361 = vxor.u32 %v3205, 2147483648
        %v3362 = vxor.u32 %v3316, 2147483648
        %v3363 = vxor.u32 %v3318, 2147483648
        %v3364 = vxor.u32 %v3209, 2147483648
        %v3365 = vxor.u32 %v3211, 2147483648
        %v3366 = vxor.u32 %v3322, 2147483648
        %v3367 = vxor.u32 %v3324, 2147483648
        %v3368 = vxor.u32 %v3215, 2147483648
        %v3369 = vxor.u32 %v3217, 2147483648
        %v3370 = vxor.u32 %v3328, 2147483648
        %v3371 = vxor.u32 %v3330, 2147483648
        %v3372 = vxor.u32 %v3221, 2147483648
        %v3373 = vxor.u32 %v3223, 2147483648
        %v3374 = vxor.u32 %v3334, 2147483648
        %v3375 = vxor.u32 %v3336, 2147483648
        %v3376 = vxor.u32 %v3227, 2147483648
        %v3377 = vxor.u32 %v3229, 2147483648
        %v3378 = vxor.u32 %v3340, 2147483648
        %v3379 = vxor.u32 %v3342, 2147483648
        %v3380 = vxor.u32 %v3233, 2147483648
        %v3381 = vxor.u32 %v3235, 2147483648
        %v3382 = vxor.u32 %v3346, 2147483648
        %v3383 = vxor.u32 %v3348, 2147483648
        %v3384 = vxor.u32 %v3239, 2147483648
        %v3385 = vxor.u32 %v3241, 2147483648
        %v3386 = vxor.u32 %v3352, 2147483648
        %v3387 = vxor.u32 %v3354, 2147483648
        %v3388 = vmul.f32 %v3356, 1.442695
        %v3389 = vpow.pop %v3388
        %v3390 = vmul.f32 %v3357, 1.442695
        %v3391 = vpow.pop %v3390
        %v3392 = vmul.f32 %v3358, 1.442695
        %v3393 = vpow.pop %v3392
        %v3394 = vmul.f32 %v3359, 1.442695
        %v3395 = vpow.pop %v3394
        %v3396 = vmul.f32 %v3360, 1.442695
        %v3397 = vpow.pop %v3396
        %v3398 = vmul.f32 %v3361, 1.442695
        %v3399 = vpow.pop %v3398
        %v3400 = vmul.f32 %v3362, 1.442695
        %v3401 = vpow.pop %v3400
        %v3402 = vmul.f32 %v3363, 1.442695
        %v3403 = vpow.pop %v3402
        %v3404 = vmul.f32 %v3364, 1.442695
        %v3405 = vpow.pop %v3404
        %v3406 = vmul.f32 %v3365, 1.442695
        %v3407 = vpow.pop %v3406
        %v3408 = vmul.f32 %v3366, 1.442695
        %v3409 = vpow.pop %v3408
        %v3410 = vmul.f32 %v3367, 1.442695
        %v3411 = vpow.pop %v3410
        %v3412 = vmul.f32 %v3368, 1.442695
        %v3413 = vpow.pop %v3412
        %v3414 = vmul.f32 %v3369, 1.442695
        %v3415 = vpow.pop %v3414
        %v3416 = vmul.f32 %v3370, 1.442695
        %v3417 = vpow.pop %v3416
        %v3418 = vmul.f32 %v3371, 1.442695
        %v3419 = vpow.pop %v3418
        %v3420 = vmul.f32 %v3372, 1.442695
        %v3421 = vpow.pop %v3420
        %v3422 = vmul.f32 %v3373, 1.442695
        %v3423 = vpow.pop %v3422
        %v3424 = vmul.f32 %v3374, 1.442695
        %v3425 = vpow.pop %v3424
        %v3426 = vmul.f32 %v3375, 1.442695
        %v3427 = vpow.pop %v3426
        %v3428 = vmul.f32 %v3376, 1.442695
        %v3429 = vpow.pop %v3428
        %v3430 = vmul.f32 %v3377, 1.442695
        %v3431 = vpow.pop %v3430
        %v3432 = vmul.f32 %v3378, 1.442695
        %v3433 = vpow.pop %v3432
        %v3434 = vmul.f32 %v3379, 1.442695
        %v3435 = vpow.pop %v3434
        %v3436 = vmul.f32 %v3380, 1.442695
        %v3437 = vpow.pop %v3436
        %v3438 = vmul.f32 %v3381, 1.442695
        %v3439 = vpow.pop %v3438
        %v3440 = vmul.f32 %v3382, 1.442695
        %v3441 = vpow.pop %v3440
        %v3442 = vmul.f32 %v3383, 1.442695
        %v3443 = vpow.pop %v3442
        %v3444 = vmul.f32 %v3384, 1.442695
        %v3445 = vpow.pop %v3444
        %v3446 = vmul.f32 %v3385, 1.442695
        %v3447 = vpow.pop %v3446
        %v3448 = vmul.f32 %v3386, 1.442695
        %v3449 = vpow.pop %v3448
        %v3450 = vmul.f32 %v3387, 1.442695
        %v3451 = vpow.pop %v3450
        %v3452 = vadd.f32 %v3389, 1.0
        %v3453 = vadd.f32 %v3391, 1.0
        %v3454 = vadd.f32 %v3393, 1.0
        %v3455 = vadd.f32 %v3395, 1.0
        %v3456 = vadd.f32 %v3397, 1.0
        %v3457 = vadd.f32 %v3399, 1.0
        %v3458 = vadd.f32 %v3401, 1.0
        %v3459 = vadd.f32 %v3403, 1.0
        %v3460 = vadd.f32 %v3405, 1.0
        %v3461 = vadd.f32 %v3407, 1.0
        %v3462 = vadd.f32 %v3409, 1.0
        %v3463 = vadd.f32 %v3411, 1.0
        %v3464 = vadd.f32 %v3413, 1.0
        %v3465 = vadd.f32 %v3415, 1.0
        %v3466 = vadd.f32 %v3417, 1.0
        %v3467 = vadd.f32 %v3419, 1.0
        %v3468 = vadd.f32 %v3421, 1.0
        %v3469 = vadd.f32 %v3423, 1.0
        %v3470 = vadd.f32 %v3425, 1.0
        %v3471 = vadd.f32 %v3427, 1.0
        %v3472 = vadd.f32 %v3429, 1.0
        %v3473 = vadd.f32 %v3431, 1.0
        %v3474 = vadd.f32 %v3433, 1.0
        %v3475 = vadd.f32 %v3435, 1.0
        %v3476 = vadd.f32 %v3437, 1.0
        %v3477 = vadd.f32 %v3439, 1.0
        %v3478 = vadd.f32 %v3441, 1.0
        %v3479 = vadd.f32 %v3443, 1.0
        %v3480 = vadd.f32 %v3445, 1.0
        %v3481 = vadd.f32 %v3447, 1.0
        %v3482 = vadd.f32 %v3449, 1.0
        %v3483 = vadd.f32 %v3451, 1.0
        %v3484 = vrcp.pop %v3452
        %v3485 = vmul.f32 1.0, %v3484
        %v3486 = vrcp.pop %v3453
        %v3487 = vmul.f32 1.0, %v3486
        %v3488 = vrcp.pop %v3454
        %v3489 = vmul.f32 1.0, %v3488
        %v3490 = vrcp.pop %v3455
        %v3491 = vmul.f32 1.0, %v3490
        %v3492 = vrcp.pop %v3456
        %v3493 = vmul.f32 1.0, %v3492
        %v3494 = vrcp.pop %v3457
        %v3495 = vmul.f32 1.0, %v3494
        %v3496 = vrcp.pop %v3458
        %v3497 = vmul.f32 1.0, %v3496
        %v3498 = vrcp.pop %v3459
        %v3499 = vmul.f32 1.0, %v3498
        %v3500 = vrcp.pop %v3460
        %v3501 = vmul.f32 1.0, %v3500
        %v3502 = vrcp.pop %v3461
        %v3503 = vmul.f32 1.0, %v3502
        %v3504 = vrcp.pop %v3462
        %v3505 = vmul.f32 1.0, %v3504
        %v3506 = vrcp.pop %v3463
        %v3507 = vmul.f32 1.0, %v3506
        %v3508 = vrcp.pop %v3464
        %v3509 = vmul.f32 1.0, %v3508
        %v3510 = vrcp.pop %v3465
        %v3511 = vmul.f32 1.0, %v3510
        %v3512 = vrcp.pop %v3466
        %v3513 = vmul.f32 1.0, %v3512
        %v3514 = vrcp.pop %v3467
        %v3515 = vmul.f32 1.0, %v3514
        %v3516 = vrcp.pop %v3468
        %v3517 = vmul.f32 1.0, %v3516
        %v3518 = vrcp.pop %v3469
        %v3519 = vmul.f32 1.0, %v3518
        %v3520 = vrcp.pop %v3470
        %v3521 = vmul.f32 1.0, %v3520
        %v3522 = vrcp.pop %v3471
        %v3523 = vmul.f32 1.0, %v3522
        %v3524 = vrcp.pop %v3472
        %v3525 = vmul.f32 1.0, %v3524
        %v3526 = vrcp.pop %v3473
        %v3527 = vmul.f32 1.0, %v3526
        %v3528 = vrcp.pop %v3474
        %v3529 = vmul.f32 1.0, %v3528
        %v3530 = vrcp.pop %v3475
        %v3531 = vmul.f32 1.0, %v3530
        %v3532 = vrcp.pop %v3476
        %v3533 = vmul.f32 1.0, %v3532
        %v3534 = vrcp.pop %v3477
        %v3535 = vmul.f32 1.0, %v3534
        %v3536 = vrcp.pop %v3478
        %v3537 = vmul.f32 1.0, %v3536
        %v3538 = vrcp.pop %v3479
        %v3539 = vmul.f32 1.0, %v3538
        %v3540 = vrcp.pop %v3480
        %v3541 = vmul.f32 1.0, %v3540
        %v3542 = vrcp.pop %v3481
        %v3543 = vmul.f32 1.0, %v3542
        %v3544 = vrcp.pop %v3482
        %v3545 = vmul.f32 1.0, %v3544
        %v3546 = vrcp.pop %v3483
        %v3547 = vmul.f32 1.0, %v3546
        %v3548 = vmul.f32 %v3197, %v3485
        %v3549 = vmul.f32 %v3199, %v3487
        %v3550 = vmul.f32 %v3310, %v3489
        %v3551 = vmul.f32 %v3312, %v3491
        %v3552 = vmul.f32 %v3203, %v3493
        %v3553 = vmul.f32 %v3205, %v3495
        %v3554 = vmul.f32 %v3316, %v3497
        %v3555 = vmul.f32 %v3318, %v3499
        %v3556 = vmul.f32 %v3209, %v3501
        %v3557 = vmul.f32 %v3211, %v3503
        %v3558 = vmul.f32 %v3322, %v3505
        %v3559 = vmul.f32 %v3324, %v3507
        %v3560 = vmul.f32 %v3215, %v3509
        %v3561 = vmul.f32 %v3217, %v3511
        %v3562 = vmul.f32 %v3328, %v3513
        %v3563 = vmul.f32 %v3330, %v3515
        %v3564 = vmul.f32 %v3221, %v3517
        %v3565 = vmul.f32 %v3223, %v3519
        %v3566 = vmul.f32 %v3334, %v3521
        %v3567 = vmul.f32 %v3336, %v3523
        %v3568 = vmul.f32 %v3227, %v3525
        %v3569 = vmul.f32 %v3229, %v3527
        %v3570 = vmul.f32 %v3340, %v3529
        %v3571 = vmul.f32 %v3342, %v3531
        %v3572 = vmul.f32 %v3233, %v3533
        %v3573 = vmul.f32 %v3235, %v3535
        %v3574 = vmul.f32 %v3346, %v3537
        %v3575 = vmul.f32 %v3348, %v3539
        %v3576 = vmul.f32 %v3239, %v3541
        %v3577 = vmul.f32 %v3241, %v3543
        %v3578 = vmul.f32 %v3352, %v3545
        %v3579 = vmul.f32 %v3354, %v3547
        %v3580 = vld [vmem:[#allocation32] sm:$0xff]
        %v3581 = vld [vmem:[#allocation32 + $0x8] sm:$0xff]
        %v3582 = vld [vmem:[#allocation32 + $0x10] sm:$0xff]
        %v3583 = vld [vmem:[#allocation32 + $0x18] sm:$0xff]
        %v3584 = vld [vmem:[#allocation32 + $0x20] sm:$0xff]
        %v3585 = vld [vmem:[#allocation32 + $0x28] sm:$0xff]
        %v3586 = vld [vmem:[#allocation32 + $0x30] sm:$0xff]
        %v3587 = vld [vmem:[#allocation32 + $0x38] sm:$0xff]
        %v3588 = vld [vmem:[#allocation32 + $0x40] sm:$0xff]
        %v3589 = vld [vmem:[#allocation32 + $0x48] sm:$0xff]
        %v3590 = vld [vmem:[#allocation32 + $0x50] sm:$0xff]
        %v3591 = vld [vmem:[#allocation32 + $0x58] sm:$0xff]
        %v3592 = vld [vmem:[#allocation32 + $0x60] sm:$0xff]
        %v3593 = vld [vmem:[#allocation32 + $0x68] sm:$0xff]
        %v3594 = vld [vmem:[#allocation32 + $0x70] sm:$0xff]
        %v3595 = vld [vmem:[#allocation32 + $0x78] sm:$0xff]
        %v3596 = vld [vmem:[#allocation32 + $0x80] sm:$0xff]
        %v3597 = vld [vmem:[#allocation32 + $0x88] sm:$0xff]
        %v3598 = vld [vmem:[#allocation32 + $0x90] sm:$0xff]
        %v3599 = vld [vmem:[#allocation32 + $0x98] sm:$0xff]
        %v3600 = vld [vmem:[#allocation32 + $0xa0] sm:$0xff]
        %v3601 = vld [vmem:[#allocation32 + $0xa8] sm:$0xff]
        %v3602 = vld [vmem:[#allocation32 + $0xb0] sm:$0xff]
        %v3603 = vld [vmem:[#allocation32 + $0xb8] sm:$0xff]
        %v3604 = vld [vmem:[#allocation32 + $0xc0] sm:$0xff]
        %v3605 = vld [vmem:[#allocation32 + $0xc8] sm:$0xff]
        %v3606 = vld [vmem:[#allocation32 + $0xd0] sm:$0xff]
        %v3607 = vld [vmem:[#allocation32 + $0xd8] sm:$0xff]
        %v3608 = vld [vmem:[#allocation32 + $0xe0] sm:$0xff]
        %v3609 = vld [vmem:[#allocation32 + $0xe8] sm:$0xff]
        %v3610 = vld [vmem:[#allocation32 + $0xf0] sm:$0xff]
        %v3611 = vld [vmem:[#allocation32 + $0xf8] sm:$0xff]
        %v3612 = vld [vmem:[#allocation32 + $0x100] sm:$0xff]
        %v3613 = vld [vmem:[#allocation32 + $0x108] sm:$0xff]
        %v3614 = vld [vmem:[#allocation32 + $0x110] sm:$0xff]
        %v3615 = vld [vmem:[#allocation32 + $0x118] sm:$0xff]
        %v3616 = vld [vmem:[#allocation32 + $0x120] sm:$0xff]
        %v3617 = vld [vmem:[#allocation32 + $0x128] sm:$0xff]
        %v3618 = vld [vmem:[#allocation32 + $0x130] sm:$0xff]
        %v3619 = vld [vmem:[#allocation32 + $0x138] sm:$0xff]
        %v3620 = vld [vmem:[#allocation32 + $0x140] sm:$0xff]
        %v3621 = vld [vmem:[#allocation32 + $0x148] sm:$0xff]
        %v3622 = vld [vmem:[#allocation32 + $0x150] sm:$0xff]
        %v3623 = vld [vmem:[#allocation32 + $0x158] sm:$0xff]
        %v3624 = vld [vmem:[#allocation32 + $0x160] sm:$0xff]
        %v3625 = vld [vmem:[#allocation32 + $0x168] sm:$0xff]
        %v3626 = vld [vmem:[#allocation32 + $0x170] sm:$0xff]
        %v3627 = vld [vmem:[#allocation32 + $0x178] sm:$0xff]
        %v3628 = vld [vmem:[#allocation32 + $0x180] sm:$0xff]
        %v3629 = vld [vmem:[#allocation32 + $0x188] sm:$0xff]
        %v3630 = vld [vmem:[#allocation32 + $0x190] sm:$0xff]
        %v3631 = vld [vmem:[#allocation32 + $0x198] sm:$0xff]
        %v3632 = vld [vmem:[#allocation32 + $0x1a0] sm:$0xff]
        %v3633 = vld [vmem:[#allocation32 + $0x1a8] sm:$0xff]
        %v3634 = vld [vmem:[#allocation32 + $0x1b0] sm:$0xff]
        %v3635 = vld [vmem:[#allocation32 + $0x1b8] sm:$0xff]
        %v3636 = vld [vmem:[#allocation32 + $0x1c0] sm:$0xff]
        %v3637 = vld [vmem:[#allocation32 + $0x1c8] sm:$0xff]
        %v3638 = vld [vmem:[#allocation32 + $0x1d0] sm:$0xff]
        %v3639 = vld [vmem:[#allocation32 + $0x1d8] sm:$0xff]
        %v3640 = vld [vmem:[#allocation32 + $0x1e0] sm:$0xff]
        %v3641 = vld [vmem:[#allocation32 + $0x1e8] sm:$0xff]
        %v3642 = vld [vmem:[#allocation32 + $0x1f0] sm:$0xff]
        %v3643 = vld [vmem:[#allocation32 + $0x1f8] sm:$0xff]
        %3644 = vmatprep.subr.mxu0 0.0
        %3645 = vmatpush1.msra.mxu0 %v3580
        %3646 = vmatprep.subr.mxu0 0.0
        %3647 = vmatpush1.msra.mxu0 %v3581
        %3648 = vmatprep.subr.mxu0 0.0
        %3649 = vmatpush1.msra.mxu0 %v3582
        %3650 = vmatprep.subr.mxu0 0.0
        %3651 = vmatpush1.msra.mxu0 %v3583
        %3652 = vmatprep.subr.mxu0 0.0
        %3653 = vmatpush1.msra.mxu0 %v3584
        %3654 = vmatprep.subr.mxu0 0.0
        %3655 = vmatpush1.msra.mxu0 %v3585
        %3656 = vmatprep.subr.mxu0 0.0
        %3657 = vmatpush1.msra.mxu0 %v3586
        %3658 = vmatprep.subr.mxu0 0.0
        %3659 = vmatpush1.msra.mxu0 %v3587
        %3660 = vmatprep.subr.mxu0 0.0
        %3661 = vmatpush1.msra.mxu0 %v3588
        %3662 = vmatprep.subr.mxu0 0.0
        %3663 = vmatpush1.msra.mxu0 %v3589
        %3664 = vmatprep.subr.mxu0 0.0
        %3665 = vmatpush1.msra.mxu0 %v3590
        %3666 = vmatprep.subr.mxu0 0.0
        %3667 = vmatpush1.msra.mxu0 %v3591
        %3668 = vmatprep.subr.mxu0 0.0
        %3669 = vmatpush1.msra.mxu0 %v3592
        %3670 = vmatprep.subr.mxu0 0.0
        %3671 = vmatpush1.msra.mxu0 %v3593
        %3672 = vmatprep.subr.mxu0 0.0
        %3673 = vmatpush1.msra.mxu0 %v3594
        %3674 = vmatprep.subr.mxu0 0.0
        %3675 = vmatpush1.msra.mxu0 %v3595
        %3676 = vmatprep.subr.mxu0 0.0
        %3677 = vmatpush1.msra.mxu0 %v3596
        %3678 = vmatprep.subr.mxu0 0.0
        %3679 = vmatpush1.msra.mxu0 %v3597
        %3680 = vmatprep.subr.mxu0 0.0
        %3681 = vmatpush1.msra.mxu0 %v3598
        %3682 = vmatprep.subr.mxu0 0.0
        %3683 = vmatpush1.msra.mxu0 %v3599
        %3684 = vmatprep.subr.mxu0 0.0
        %3685 = vmatpush1.msra.mxu0 %v3600
        %3686 = vmatprep.subr.mxu0 0.0
        %3687 = vmatpush1.msra.mxu0 %v3601
        %3688 = vmatprep.subr.mxu0 0.0
        %3689 = vmatpush1.msra.mxu0 %v3602
        %3690 = vmatprep.subr.mxu0 0.0
        %3691 = vmatpush1.msra.mxu0 %v3603
        %3692 = vmatprep.subr.mxu0 0.0
        %3693 = vmatpush1.msra.mxu0 %v3604
        %3694 = vmatprep.subr.mxu0 0.0
        %3695 = vmatpush1.msra.mxu0 %v3605
        %3696 = vmatprep.subr.mxu0 0.0
        %3697 = vmatpush1.msra.mxu0 %v3606
        %3698 = vmatprep.subr.mxu0 0.0
        %3699 = vmatpush1.msra.mxu0 %v3607
        %3700 = vmatprep.subr.mxu0 0.0
        %3701 = vmatpush1.msra.mxu0 %v3608
        %3702 = vmatprep.subr.mxu0 0.0
        %3703 = vmatpush1.msra.mxu0 %v3609
        %3704 = vmatprep.subr.mxu0 0.0
        %3705 = vmatpush1.msra.mxu0 %v3610
        %3706 = vmatprep.subr.mxu0 0.0
        %3707 = vmatpush1.msra.mxu0 %v3611
        %3708 = vmatprep.mubr.f32.mxu0 %v3549
        %3709 = vmatmul.mubr.f32.gmra.mrb[0].mxu0 %v3548
        %v3710 = vpop.f32.mrb[0].mxu0
        %v3711 = vadd.f32 0.0, %v3710
        %v3712 = vpop.f32.mrb[0].mxu0
        %3713 = vmatprep.mubr.f32.mxu0 %v3553
        %3714 = vmatmul.mubr.f32.gmra.mrb[0].mxu0 %v3552
        %v3715 = vpop.f32.mrb[0].mxu0
        %v3716 = vadd.f32 0.0, %v3715
        %v3717 = vpop.f32.mrb[0].mxu0
        %3718 = vmatprep.mubr.f32.mxu0 %v3557
        %3719 = vmatmul.mubr.f32.gmra.mrb[0].mxu0 %v3556
        %v3720 = vpop.f32.mrb[0].mxu0
        %v3721 = vadd.f32 0.0, %v3720
        %v3722 = vpop.f32.mrb[0].mxu0
        %3723 = vmatprep.mubr.f32.mxu0 %v3561
        %3724 = vmatmul.mubr.f32.gmra.mrb[0].mxu0 %v3560
        %v3725 = vpop.f32.mrb[0].mxu0
        %v3726 = vadd.f32 0.0, %v3725
        %v3727 = vpop.f32.mrb[0].mxu0
        %3728 = vmatprep.mubr.f32.mxu0 %v3565
        %3729 = vmatmul.mubr.f32.gmra.mrb[0].mxu0 %v3564
        %v3730 = vpop.f32.mrb[0].mxu0
        %v3731 = vadd.f32 0.0, %v3730
        %v3732 = vpop.f32.mrb[0].mxu0
        %3733 = vmatprep.mubr.f32.mxu0 %v3569
        %3734 = vmatmul.mubr.f32.gmra.mrb[0].mxu0 %v3568
        %v3735 = vpop.f32.mrb[0].mxu0
        %v3736 = vadd.f32 0.0, %v3735
        %v3737 = vpop.f32.mrb[0].mxu0
        %3738 = vmatprep.mubr.f32.mxu0 %v3573
        %3739 = vmatmul.mubr.f32.gmra.mrb[0].mxu0 %v3572
        %v3740 = vpop.f32.mrb[0].mxu0
        %v3741 = vadd.f32 0.0, %v3740
        %v3742 = vpop.f32.mrb[0].mxu0
        %3743 = vmatprep.mubr.f32.mxu0 %v3577
        %3744 = vmatmul.mubr.f32.gmra.mrb[0].mxu0 %v3576
        %v3745 = vpop.f32.mrb[0].mxu0
        %v3746 = vadd.f32 0.0, %v3745
        %v3747 = vpop.f32.mrb[0].mxu0
        %3748 = vdwg.mxu0
        %3749 = vmatprep.subr.mxu0 0.0
        %3750 = vmatpush1.msra.mxu0 %v3612
        %3751 = vmatprep.subr.mxu0 0.0
        %3752 = vmatpush1.msra.mxu0 %v3613
        %3753 = vmatprep.subr.mxu0 0.0
        %3754 = vmatpush1.msra.mxu0 %v3614
        %3755 = vmatprep.subr.mxu0 0.0
        %3756 = vmatpush1.msra.mxu0 %v3615
        %3757 = vmatprep.subr.mxu0 0.0
        %3758 = vmatpush1.msra.mxu0 %v3616
        %3759 = vmatprep.subr.mxu0 0.0
        %3760 = vmatpush1.msra.mxu0 %v3617
        %3761 = vmatprep.subr.mxu0 0.0
        %3762 = vmatpush1.msra.mxu0 %v3618
        %3763 = vmatprep.subr.mxu0 0.0
        %3764 = vmatpush1.msra.mxu0 %v3619
        %3765 = vmatprep.subr.mxu0 0.0
        %3766 = vmatpush1.msra.mxu0 %v3620
        %3767 = vmatprep.subr.mxu0 0.0
        %3768 = vmatpush1.msra.mxu0 %v3621
        %3769 = vmatprep.subr.mxu0 0.0
        %3770 = vmatpush1.msra.mxu0 %v3622
        %3771 = vmatprep.subr.mxu0 0.0
        %3772 = vmatpush1.msra.mxu0 %v3623
        %3773 = vmatprep.subr.mxu0 0.0
        %3774 = vmatpush1.msra.mxu0 %v3624
        %3775 = vmatprep.subr.mxu0 0.0
        %3776 = vmatpush1.msra.mxu0 %v3625
        %3777 = vmatprep.subr.mxu0 0.0
        %3778 = vmatpush1.msra.mxu0 %v3626
        %3779 = vmatprep.subr.mxu0 0.0
        %3780 = vmatpush1.msra.mxu0 %v3627
        %3781 = vmatprep.subr.mxu0 0.0
        %3782 = vmatpush1.msra.mxu0 %v3628
        %3783 = vmatprep.subr.mxu0 0.0
        %3784 = vmatpush1.msra.mxu0 %v3629
        %3785 = vmatprep.subr.mxu0 0.0
        %3786 = vmatpush1.msra.mxu0 %v3630
        %3787 = vmatprep.subr.mxu0 0.0
        %3788 = vmatpush1.msra.mxu0 %v3631
        %3789 = vmatprep.subr.mxu0 0.0
        %3790 = vmatpush1.msra.mxu0 %v3632
        %3791 = vmatprep.subr.mxu0 0.0
        %3792 = vmatpush1.msra.mxu0 %v3633
        %3793 = vmatprep.subr.mxu0 0.0
        %3794 = vmatpush1.msra.mxu0 %v3634
        %3795 = vmatprep.subr.mxu0 0.0
        %3796 = vmatpush1.msra.mxu0 %v3635
        %3797 = vmatprep.subr.mxu0 0.0
        %3798 = vmatpush1.msra.mxu0 %v3636
        %3799 = vmatprep.subr.mxu0 0.0
        %3800 = vmatpush1.msra.mxu0 %v3637
        %3801 = vmatprep.subr.mxu0 0.0
        %3802 = vmatpush1.msra.mxu0 %v3638
        %3803 = vmatprep.subr.mxu0 0.0
        %3804 = vmatpush1.msra.mxu0 %v3639
        %3805 = vmatprep.subr.mxu0 0.0
        %3806 = vmatpush1.msra.mxu0 %v3640
        %3807 = vmatprep.subr.mxu0 0.0
        %3808 = vmatpush1.msra.mxu0 %v3641
        %3809 = vmatprep.subr.mxu0 0.0
        %3810 = vmatpush1.msra.mxu0 %v3642
        %3811 = vmatprep.subr.mxu0 0.0
        %3812 = vmatpush1.msra.mxu0 %v3643
        %3813 = vmatprep.mubr.f32.mxu0 %v3551
        %3814 = vmatmul.mubr.f32.gmra.mrb[0].mxu0 %v3550
        %v3815 = vpop.f32.mrb[0].mxu0
        %v3816 = vadd.f32 %v3711, %v3815
        %v3817 = vpop.f32.mrb[0].mxu0
        %3818 = vmatprep.mubr.f32.mxu0 %v3555
        %3819 = vmatmul.mubr.f32.gmra.mrb[0].mxu0 %v3554
        %v3820 = vpop.f32.mrb[0].mxu0
        %v3821 = vadd.f32 %v3716, %v3820
        %v3822 = vpop.f32.mrb[0].mxu0
        %3823 = vmatprep.mubr.f32.mxu0 %v3559
        %3824 = vmatmul.mubr.f32.gmra.mrb[0].mxu0 %v3558
        %v3825 = vpop.f32.mrb[0].mxu0
        %v3826 = vadd.f32 %v3721, %v3825
        %v3827 = vpop.f32.mrb[0].mxu0
        %3828 = vmatprep.mubr.f32.mxu0 %v3563
        %3829 = vmatmul.mubr.f32.gmra.mrb[0].mxu0 %v3562
        %v3830 = vpop.f32.mrb[0].mxu0
        %v3831 = vadd.f32 %v3726, %v3830
        %v3832 = vpop.f32.mrb[0].mxu0
        %3833 = vmatprep.mubr.f32.mxu0 %v3567
        %3834 = vmatmul.mubr.f32.gmra.mrb[0].mxu0 %v3566
        %v3835 = vpop.f32.mrb[0].mxu0
        %v3836 = vadd.f32 %v3731, %v3835
        %v3837 = vpop.f32.mrb[0].mxu0
        %3838 = vmatprep.mubr.f32.mxu0 %v3571
        %3839 = vmatmul.mubr.f32.gmra.mrb[0].mxu0 %v3570
        %v3840 = vpop.f32.mrb[0].mxu0
        %v3841 = vadd.f32 %v3736, %v3840
        %v3842 = vpop.f32.mrb[0].mxu0
        %3843 = vmatprep.mubr.f32.mxu0 %v3575
        %3844 = vmatmul.mubr.f32.gmra.mrb[0].mxu0 %v3574
        %v3845 = vpop.f32.mrb[0].mxu0
        %v3846 = vadd.f32 %v3741, %v3845
        %v3847 = vpop.f32.mrb[0].mxu0
        %3848 = vmatprep.mubr.f32.mxu0 %v3579
        %3849 = vmatmul.mubr.f32.gmra.mrb[0].mxu0 %v3578
        %v3850 = vpop.f32.mrb[0].mxu0
        %v3851 = vadd.f32 %v3746, %v3850
        %v3852 = vpop.f32.mrb[0].mxu0
        %3853 = vdwg.mxu0
        %v3854 = vadd.f32 %v2661, %v3816
        %v3855 = vadd.f32 %v2662, %v3821
        %v3856 = vadd.f32 %v2663, %v3826
        %v3857 = vadd.f32 %v2664, %v3831
        %v3858 = vadd.f32 %v2665, %v3836
        %v3859 = vadd.f32 %v2666, %v3841
        %v3860 = vadd.f32 %v2667, %v3846
        %v3861 = vadd.f32 %v2668, %v3851
        %v3862 = vld [vmem:[#allocation34] sm:$0x1]
        %v3864 = vlaneseq
        %v3865 = vshrl.u32 %v3864, 7
        %v3866 = vsub.s32 0, %v3865
        %v3867 = vrot.slane %v3862, %v3866
        %v3869 = vadd.f32 %v3854, %v3867
        %v3870 = vadd.f32 %v3855, %v3867
        %v3871 = vadd.f32 %v3856, %v3867
        %v3872 = vadd.f32 %v3857, %v3867
        %v3873 = vadd.f32 %v3858, %v3867
        %v3874 = vadd.f32 %v3859, %v3867
        %v3875 = vadd.f32 %v3860, %v3867
        %v3876 = vadd.f32 %v3861, %v3867
        %v3877 = vld [vmem:[#allocation35] sm:$0x1]
        %v3878 = vld [vmem:[#allocation37] sm:$0x1]
        %v3879 = vadd.f32 %v3869, %v3870
        %v3880 = vadd.f32 %v3879, %v3871
        %v3881 = vadd.f32 %v3880, %v3872
        %v3882 = vadd.f32 %v3881, %v3873
        %v3883 = vadd.f32 %v3882, %v3874
        %v3884 = vadd.f32 %v3883, %v3875
        %v3885 = vadd.f32 %v3884, %v3876
        %v3886 = vrot.slane %v3885, 4
        %v3887 = vadd.f32 %v3885, %v3886
        %v3888 = vrot.slane %v3887, 2
        %v3889 = vadd.f32 %v3887, %v3888
        %v3890 = vrot.slane %v3889, 1
        %v3891 = vadd.f32 %v3889, %v3890
        %3892 = vmatprep.subr.mxu0 0.0
        %3893 = vmatpush1.msra.mxu0 %v1417
        %3894 = vmatprep.subr.mxu0 0.0
        %3895 = vmatpush1.msra.mxu0 %v1418
        %3896 = vmatprep.subr.mxu0 0.0
        %3897 = vmatpush1.msra.mxu0 %v1419
        %3898 = vmatprep.subr.mxu0 0.0
        %3899 = vmatpush1.msra.mxu0 %v1420
        %3900 = vmatprep.subr.mxu0 0.0
        %3901 = vmatpush1.msra.mxu0 %v1421
        %3902 = vmatprep.subr.mxu0 0.0
        %3903 = vmatpush1.msra.mxu0 %v1422
        %3904 = vmatprep.subr.mxu0 0.0
        %3905 = vmatpush1.msra.mxu0 %v1423
        %3906 = vmatprep.subr.mxu0 0.0
        %3907 = vmatpush1.msra.mxu0 %v1424
        %3908 = vmatprep.subr.mxu0 0.0
        %3909 = vmatpush1.msra.mxu0 %v1425
        %3910 = vmatprep.subr.mxu0 0.0
        %3911 = vmatpush1.msra.mxu0 %v1426
        %3912 = vmatprep.subr.mxu0 0.0
        %3913 = vmatpush1.msra.mxu0 %v1427
        %3914 = vmatprep.subr.mxu0 0.0
        %3915 = vmatpush1.msra.mxu0 %v1428
        %3916 = vmatprep.subr.mxu0 0.0
        %3917 = vmatpush1.msra.mxu0 %v1429
        %3918 = vmatprep.subr.mxu0 0.0
        %3919 = vmatpush1.msra.mxu0 %v1430
        %3920 = vmatprep.subr.mxu0 0.0
        %3921 = vmatpush1.msra.mxu0 %v1431
        %3922 = vmatprep.subr.mxu0 0.0
        %3923 = vmatpush1.msra.mxu0 %v1432
        %3924 = vmatprep.subr.mxu0 0.0
        %3925 = vmatpush1.msra.mxu0 0.0
        %3926 = vmatprep.subr.mxu0 0.0
        %3927 = vmatpush1.msra.mxu0 0.0
        %3928 = vmatprep.subr.mxu0 0.0
        %3929 = vmatpush1.msra.mxu0 0.0
        %3930 = vmatprep.subr.mxu0 0.0
        %3931 = vmatpush1.msra.mxu0 0.0
        %3932 = vmatprep.subr.mxu0 0.0
        %3933 = vmatpush1.msra.mxu0 0.0
        %3934 = vmatprep.subr.mxu0 0.0
        %3935 = vmatpush1.msra.mxu0 0.0
        %3936 = vmatprep.subr.mxu0 0.0
        %3937 = vmatpush1.msra.mxu0 0.0
        %3938 = vmatprep.subr.mxu0 0.0
        %3939 = vmatpush1.msra.mxu0 0.0
        %3940 = vmatprep.subr.mxu0 0.0
        %3941 = vmatpush1.msra.mxu0 0.0
        %3942 = vmatprep.subr.mxu0 0.0
        %3943 = vmatpush1.msra.mxu0 0.0
        %3944 = vmatprep.subr.mxu0 0.0
        %3945 = vmatpush1.msra.mxu0 0.0
        %3946 = vmatprep.subr.mxu0 0.0
        %3947 = vmatpush1.msra.mxu0 0.0
        %3948 = vmatprep.subr.mxu0 0.0
        %3949 = vmatpush1.msra.mxu0 0.0
        %3950 = vmatprep.subr.mxu0 0.0
        %3951 = vmatpush1.msra.mxu0 0.0
        %3952 = vmatprep.subr.mxu0 0.0
        %3953 = vmatpush1.msra.mxu0 0.0
        %3954 = vmatprep.subr.mxu0 0.0
        %3955 = vmatpush1.msra.mxu0 0.0
        %3956 = vmatprep.mubr.f32.mxu0 0.0
        %3957 = vmatmul.mubr.f32.gmra.mrb[0].mxu0 %v3891
        %v3958 = vpop.f32.mrb[0].mxu0
        %v3959 = vadd.f32 0.0, %v3958
        %v3960 = vpop.f32.mrb[0].mxu0
        %3961 = vdwg.mxu0
        %v3963 = vsel %vm1527, %v3959, 0
        %3965 = vmatprep.subr.mxu0 0.0
        %3966 = vmatpush1.msra.mxu0 %v1433
        %3967 = vmatprep.subr.mxu0 0.0
        %3968 = vmatpush1.msra.mxu0 0.0
        %3969 = vmatprep.subr.mxu0 0.0
        %3970 = vmatpush1.msra.mxu0 0.0
        %3971 = vmatprep.subr.mxu0 0.0
        %3972 = vmatpush1.msra.mxu0 0.0
        %3973 = vmatprep.subr.mxu0 0.0
        %3974 = vmatpush1.msra.mxu0 0.0
        %3975 = vmatprep.subr.mxu0 0.0
        %3976 = vmatpush1.msra.mxu0 0.0
        %3977 = vmatprep.subr.mxu0 0.0
        %3978 = vmatpush1.msra.mxu0 0.0
        %3979 = vmatprep.subr.mxu0 0.0
        %3980 = vmatpush1.msra.mxu0 0.0
        %3981 = vmatprep.subr.mxu0 0.0
        %3982 = vmatpush1.msra.mxu0 0.0
        %3983 = vmatprep.subr.mxu0 0.0
        %3984 = vmatpush1.msra.mxu0 0.0
        %3985 = vmatprep.subr.mxu0 0.0
        %3986 = vmatpush1.msra.mxu0 0.0
        %3987 = vmatprep.subr.mxu0 0.0
        %3988 = vmatpush1.msra.mxu0 0.0
        %3989 = vmatprep.subr.mxu0 0.0
        %3990 = vmatpush1.msra.mxu0 0.0
        %3991 = vmatprep.subr.mxu0 0.0
        %3992 = vmatpush1.msra.mxu0 0.0
        %3993 = vmatprep.subr.mxu0 0.0
        %3994 = vmatpush1.msra.mxu0 0.0
        %3995 = vmatprep.subr.mxu0 0.0
        %3996 = vmatpush1.msra.mxu0 0.0
        %3997 = vmatprep.subr.mxu0 0.0
        %3998 = vmatpush1.msra.mxu0 0.0
        %3999 = vmatprep.subr.mxu0 0.0
        %4000 = vmatpush1.msra.mxu0 0.0
        %4001 = vmatprep.subr.mxu0 0.0
        %4002 = vmatpush1.msra.mxu0 0.0
        %4003 = vmatprep.subr.mxu0 0.0
        %4004 = vmatpush1.msra.mxu0 0.0
        %4005 = vmatprep.subr.mxu0 0.0
        %4006 = vmatpush1.msra.mxu0 0.0
        %4007 = vmatprep.subr.mxu0 0.0
        %4008 = vmatpush1.msra.mxu0 0.0
        %4009 = vmatprep.subr.mxu0 0.0
        %4010 = vmatpush1.msra.mxu0 0.0
        %4011 = vmatprep.subr.mxu0 0.0
        %4012 = vmatpush1.msra.mxu0 0.0
        %4013 = vmatprep.subr.mxu0 0.0
        %4014 = vmatpush1.msra.mxu0 0.0
        %4015 = vmatprep.subr.mxu0 0.0
        %4016 = vmatpush1.msra.mxu0 0.0
        %4017 = vmatprep.subr.mxu0 0.0
        %4018 = vmatpush1.msra.mxu0 0.0
        %4019 = vmatprep.subr.mxu0 0.0
        %4020 = vmatpush1.msra.mxu0 0.0
        %4021 = vmatprep.subr.mxu0 0.0
        %4022 = vmatpush1.msra.mxu0 0.0
        %4023 = vmatprep.subr.mxu0 0.0
        %4024 = vmatpush1.msra.mxu0 0.0
        %4025 = vmatprep.subr.mxu0 0.0
        %4026 = vmatpush1.msra.mxu0 0.0
        %4027 = vmatprep.subr.mxu0 0.0
        %4028 = vmatpush1.msra.mxu0 0.0
        %4029 = vmatprep.mubr.f32.mxu0 0.0
        %4030 = vmatmul.mubr.f32.gmra.mrb[0].mxu0 %v3963
        %v4031 = vpop.f32.mrb[0].mxu0
        %v4032 = vadd.f32 0.0, %v4031
        %v4033 = vpop.f32.mrb[0].mxu0
        %4034 = vdwg.mxu0
        %v4035 = vlaneseq
        %v4036 = vshrl.u32 %v4035, 7
        %v4037 = vsub.s32 0, %v4036
        %v4038 = vrot.slane %v4032, %v4037
        %v4039 = vsub.f32 %v3869, %v4038
        %v4040 = vsub.f32 %v3870, %v4038
        %v4041 = vsub.f32 %v3871, %v4038
        %v4042 = vsub.f32 %v3872, %v4038
        %v4043 = vsub.f32 %v3873, %v4038
        %v4044 = vsub.f32 %v3874, %v4038
        %v4045 = vsub.f32 %v3875, %v4038
        %v4046 = vsub.f32 %v3876, %v4038
        %v4047 = vmul.f32 %v4039, %v4039
        %v4048 = vmul.f32 %v4040, %v4040
        %v4049 = vmul.f32 %v4041, %v4041
        %v4050 = vmul.f32 %v4042, %v4042
        %v4051 = vmul.f32 %v4043, %v4043
        %v4052 = vmul.f32 %v4044, %v4044
        %v4053 = vmul.f32 %v4045, %v4045
        %v4054 = vmul.f32 %v4046, %v4046
        %v4055 = vadd.f32 %v4047, %v4048
        %v4056 = vadd.f32 %v4055, %v4049
        %v4057 = vadd.f32 %v4056, %v4050
        %v4058 = vadd.f32 %v4057, %v4051
        %v4059 = vadd.f32 %v4058, %v4052
        %v4060 = vadd.f32 %v4059, %v4053
        %v4061 = vadd.f32 %v4060, %v4054
        %v4062 = vrot.slane %v4061, 4
        %v4063 = vadd.f32 %v4061, %v4062
        %v4064 = vrot.slane %v4063, 2
        %v4065 = vadd.f32 %v4063, %v4064
        %v4066 = vrot.slane %v4065, 1
        %v4067 = vadd.f32 %v4065, %v4066
        %4068 = vmatprep.subr.mxu0 0.0
        %4069 = vmatpush1.msra.mxu0 %v1417
        %4070 = vmatprep.subr.mxu0 0.0
        %4071 = vmatpush1.msra.mxu0 %v1418
        %4072 = vmatprep.subr.mxu0 0.0
        %4073 = vmatpush1.msra.mxu0 %v1419
        %4074 = vmatprep.subr.mxu0 0.0
        %4075 = vmatpush1.msra.mxu0 %v1420
        %4076 = vmatprep.subr.mxu0 0.0
        %4077 = vmatpush1.msra.mxu0 %v1421
        %4078 = vmatprep.subr.mxu0 0.0
        %4079 = vmatpush1.msra.mxu0 %v1422
        %4080 = vmatprep.subr.mxu0 0.0
        %4081 = vmatpush1.msra.mxu0 %v1423
        %4082 = vmatprep.subr.mxu0 0.0
        %4083 = vmatpush1.msra.mxu0 %v1424
        %4084 = vmatprep.subr.mxu0 0.0
        %4085 = vmatpush1.msra.mxu0 %v1425
        %4086 = vmatprep.subr.mxu0 0.0
        %4087 = vmatpush1.msra.mxu0 %v1426
        %4088 = vmatprep.subr.mxu0 0.0
        %4089 = vmatpush1.msra.mxu0 %v1427
        %4090 = vmatprep.subr.mxu0 0.0
        %4091 = vmatpush1.msra.mxu0 %v1428
        %4092 = vmatprep.subr.mxu0 0.0
        %4093 = vmatpush1.msra.mxu0 %v1429
        %4094 = vmatprep.subr.mxu0 0.0
        %4095 = vmatpush1.msra.mxu0 %v1430
        %4096 = vmatprep.subr.mxu0 0.0
        %4097 = vmatpush1.msra.mxu0 %v1431
        %4098 = vmatprep.subr.mxu0 0.0
        %4099 = vmatpush1.msra.mxu0 %v1432
        %4100 = vmatprep.subr.mxu0 0.0
        %4101 = vmatpush1.msra.mxu0 0.0
        %4102 = vmatprep.subr.mxu0 0.0
        %4103 = vmatpush1.msra.mxu0 0.0
        %4104 = vmatprep.subr.mxu0 0.0
        %4105 = vmatpush1.msra.mxu0 0.0
        %4106 = vmatprep.subr.mxu0 0.0
        %4107 = vmatpush1.msra.mxu0 0.0
        %4108 = vmatprep.subr.mxu0 0.0
        %4109 = vmatpush1.msra.mxu0 0.0
        %4110 = vmatprep.subr.mxu0 0.0
        %4111 = vmatpush1.msra.mxu0 0.0
        %4112 = vmatprep.subr.mxu0 0.0
        %4113 = vmatpush1.msra.mxu0 0.0
        %4114 = vmatprep.subr.mxu0 0.0
        %4115 = vmatpush1.msra.mxu0 0.0
        %4116 = vmatprep.subr.mxu0 0.0
        %4117 = vmatpush1.msra.mxu0 0.0
        %4118 = vmatprep.subr.mxu0 0.0
        %4119 = vmatpush1.msra.mxu0 0.0
        %4120 = vmatprep.subr.mxu0 0.0
        %4121 = vmatpush1.msra.mxu0 0.0
        %4122 = vmatprep.subr.mxu0 0.0
        %4123 = vmatpush1.msra.mxu0 0.0
        %4124 = vmatprep.subr.mxu0 0.0
        %4125 = vmatpush1.msra.mxu0 0.0
        %4126 = vmatprep.subr.mxu0 0.0
        %4127 = vmatpush1.msra.mxu0 0.0
        %4128 = vmatprep.subr.mxu0 0.0
        %4129 = vmatpush1.msra.mxu0 0.0
        %4130 = vmatprep.subr.mxu0 0.0
        %4131 = vmatpush1.msra.mxu0 0.0
        %4132 = vmatprep.mubr.f32.mxu0 0.0
        %4133 = vmatmul.mubr.f32.gmra.mrb[0].mxu0 %v4067
        %v4134 = vpop.f32.mrb[0].mxu0
        %v4135 = vadd.f32 0.0, %v4134
        %v4136 = vpop.f32.mrb[0].mxu0
        %4137 = vdwg.mxu0
        %v4139 = vsel %vm1527, %v4135, 0
        %4141 = vmatprep.subr.mxu0 0.0
        %4142 = vmatpush1.msra.mxu0 %v1433
        %4143 = vmatprep.subr.mxu0 0.0
        %4144 = vmatpush1.msra.mxu0 0.0
        %4145 = vmatprep.subr.mxu0 0.0
        %4146 = vmatpush1.msra.mxu0 0.0
        %4147 = vmatprep.subr.mxu0 0.0
        %4148 = vmatpush1.msra.mxu0 0.0
        %4149 = vmatprep.subr.mxu0 0.0
        %4150 = vmatpush1.msra.mxu0 0.0
        %4151 = vmatprep.subr.mxu0 0.0
        %4152 = vmatpush1.msra.mxu0 0.0
        %4153 = vmatprep.subr.mxu0 0.0
        %4154 = vmatpush1.msra.mxu0 0.0
        %4155 = vmatprep.subr.mxu0 0.0
        %4156 = vmatpush1.msra.mxu0 0.0
        %4157 = vmatprep.subr.mxu0 0.0
        %4158 = vmatpush1.msra.mxu0 0.0
        %4159 = vmatprep.subr.mxu0 0.0
        %4160 = vmatpush1.msra.mxu0 0.0
        %4161 = vmatprep.subr.mxu0 0.0
        %4162 = vmatpush1.msra.mxu0 0.0
        %4163 = vmatprep.subr.mxu0 0.0
        %4164 = vmatpush1.msra.mxu0 0.0
        %4165 = vmatprep.subr.mxu0 0.0
        %4166 = vmatpush1.msra.mxu0 0.0
        %4167 = vmatprep.subr.mxu0 0.0
        %4168 = vmatpush1.msra.mxu0 0.0
        %4169 = vmatprep.subr.mxu0 0.0
        %4170 = vmatpush1.msra.mxu0 0.0
        %4171 = vmatprep.subr.mxu0 0.0
        %4172 = vmatpush1.msra.mxu0 0.0
        %4173 = vmatprep.subr.mxu0 0.0
        %4174 = vmatpush1.msra.mxu0 0.0
        %4175 = vmatprep.subr.mxu0 0.0
        %4176 = vmatpush1.msra.mxu0 0.0
        %4177 = vmatprep.subr.mxu0 0.0
        %4178 = vmatpush1.msra.mxu0 0.0
        %4179 = vmatprep.subr.mxu0 0.0
        %4180 = vmatpush1.msra.mxu0 0.0
        %4181 = vmatprep.subr.mxu0 0.0
        %4182 = vmatpush1.msra.mxu0 0.0
        %4183 = vmatprep.subr.mxu0 0.0
        %4184 = vmatpush1.msra.mxu0 0.0
        %4185 = vmatprep.subr.mxu0 0.0
        %4186 = vmatpush1.msra.mxu0 0.0
        %4187 = vmatprep.subr.mxu0 0.0
        %4188 = vmatpush1.msra.mxu0 0.0
        %4189 = vmatprep.subr.mxu0 0.0
        %4190 = vmatpush1.msra.mxu0 0.0
        %4191 = vmatprep.subr.mxu0 0.0
        %4192 = vmatpush1.msra.mxu0 0.0
        %4193 = vmatprep.subr.mxu0 0.0
        %4194 = vmatpush1.msra.mxu0 0.0
        %4195 = vmatprep.subr.mxu0 0.0
        %4196 = vmatpush1.msra.mxu0 0.0
        %4197 = vmatprep.subr.mxu0 0.0
        %4198 = vmatpush1.msra.mxu0 0.0
        %4199 = vmatprep.subr.mxu0 0.0
        %4200 = vmatpush1.msra.mxu0 0.0
        %4201 = vmatprep.subr.mxu0 0.0
        %4202 = vmatpush1.msra.mxu0 0.0
        %4203 = vmatprep.subr.mxu0 0.0
        %4204 = vmatpush1.msra.mxu0 0.0
        %4205 = vmatprep.mubr.f32.mxu0 0.0
        %4206 = vmatmul.mubr.f32.gmra.mrb[0].mxu0 %v4139
        %v4207 = vpop.f32.mrb[0].mxu0
        %v4208 = vadd.f32 1e-05, %v4207
        %v4209 = vpop.f32.mrb[0].mxu0
        %4210 = vdwg.mxu0
        %v4211 = vrsqrt.pop %v4208
        %v4212 = vlaneseq
        %v4213 = vshrl.u32 %v4212, 7
        %v4214 = vsub.s32 0, %v4213
        %v4215 = vrot.slane %v4211, %v4214
        %v4216 = vmul.f32 %v4039, %v4215
        %v4217 = vmul.f32 %v4040, %v4215
        %v4218 = vmul.f32 %v4041, %v4215
        %v4219 = vmul.f32 %v4042, %v4215
        %v4220 = vmul.f32 %v4043, %v4215
        %v4221 = vmul.f32 %v4044, %v4215
        %v4222 = vmul.f32 %v4045, %v4215
        %v4223 = vmul.f32 %v4046, %v4215
        %v4225 = vlaneseq
        %v4226 = vshrl.u32 %v4225, 7
        %v4227 = vsub.s32 0, %v4226
        %v4228 = vrot.slane %v3877, %v4227
        %v4230 = vmul.f32 %v4216, %v4228
        %v4231 = vmul.f32 %v4217, %v4228
        %v4232 = vmul.f32 %v4218, %v4228
        %v4233 = vmul.f32 %v4219, %v4228
        %v4234 = vmul.f32 %v4220, %v4228
        %v4235 = vmul.f32 %v4221, %v4228
        %v4236 = vmul.f32 %v4222, %v4228
        %v4237 = vmul.f32 %v4223, %v4228
        %v4239 = vlaneseq
        %v4240 = vshrl.u32 %v4239, 7
        %v4241 = vsub.s32 0, %v4240
        %v4242 = vrot.slane %v3878, %v4241
        %v4244 = vadd.f32 %v4230, %v4242
        %v4245 = vadd.f32 %v4231, %v4242
        %v4246 = vadd.f32 %v4232, %v4242
        %v4247 = vadd.f32 %v4233, %v4242
        %v4248 = vadd.f32 %v4234, %v4242
        %v4249 = vadd.f32 %v4235, %v4242
        %v4250 = vadd.f32 %v4236, %v4242
        %v4251 = vadd.f32 %v4237, %v4242
        %v4252 = vld [vmem:[%s1209] sm:$0xff]
        %v4253 = vld [vmem:[#allocation38] sm:$0xff]
        %v4254 = vld [vmem:[#allocation38 + $0x8] sm:$0xff]
        %v4255 = vld [vmem:[#allocation38 + $0x10] sm:$0xff]
        %v4256 = vld [vmem:[#allocation38 + $0x18] sm:$0xff]
        %v4257 = vld [vmem:[#allocation38 + $0x20] sm:$0xff]
        %v4258 = vld [vmem:[#allocation38 + $0x28] sm:$0xff]
        %v4259 = vld [vmem:[#allocation38 + $0x30] sm:$0xff]
        %v4260 = vld [vmem:[#allocation38 + $0x38] sm:$0xff]
        %v4261 = vld [vmem:[#allocation38 + $0x40] sm:$0xff]
        %v4262 = vld [vmem:[#allocation38 + $0x48] sm:$0xff]
        %v4263 = vld [vmem:[#allocation38 + $0x50] sm:$0xff]
        %v4264 = vld [vmem:[#allocation38 + $0x58] sm:$0xff]
        %v4265 = vld [vmem:[#allocation38 + $0x60] sm:$0xff]
        %v4266 = vld [vmem:[#allocation38 + $0x68] sm:$0xff]
        %v4267 = vld [vmem:[#allocation38 + $0x70] sm:$0xff]
        %v4268 = vld [vmem:[#allocation38 + $0x78] sm:$0xff]
        %v4269 = vld [vmem:[#allocation40] sm:$0x1]
        %v4270 = vld [vmem:[#allocation41] sm:$0xff]
        %v4271 = vld [vmem:[#allocation41 + $0x8] sm:$0xff]
        %v4272 = vld [vmem:[#allocation41 + $0x10] sm:$0xff]
        %v4273 = vld [vmem:[#allocation41 + $0x18] sm:$0xff]
        %v4274 = vld [vmem:[#allocation43] sm:$0x1]
        %v4275 = vld [vmem:[#allocation44] sm:$0xff]
        %v4276 = vld [vmem:[#allocation44 + $0x8] sm:$0xff]
        %v4277 = vld [vmem:[#allocation44 + $0x10] sm:$0xff]
        %v4278 = vld [vmem:[#allocation44 + $0x18] sm:$0xff]
        %v4279 = vld [vmem:[#allocation46] sm:$0x1]
        %v4280 = vld [vmem:[#allocation47] sm:$0xff]
        %v4281 = vld [vmem:[#allocation47 + $0x8] sm:$0xff]
        %v4282 = vld [vmem:[#allocation47 + $0x10] sm:$0xff]
        %v4283 = vld [vmem:[#allocation47 + $0x18] sm:$0xff]
        %v4284 = vld [vmem:[#allocation47 + $0x20] sm:$0xff]
        %v4285 = vld [vmem:[#allocation47 + $0x28] sm:$0xff]
        %v4286 = vld [vmem:[#allocation47 + $0x30] sm:$0xff]
        %v4287 = vld [vmem:[#allocation47 + $0x38] sm:$0xff]
        %v4288 = vld [vmem:[#allocation47 + $0x40] sm:$0xff]
        %v4289 = vld [vmem:[#allocation47 + $0x48] sm:$0xff]
        %v4290 = vld [vmem:[#allocation47 + $0x50] sm:$0xff]
        %v4291 = vld [vmem:[#allocation47 + $0x58] sm:$0xff]
        %v4292 = vld [vmem:[#allocation47 + $0x60] sm:$0xff]
        %v4293 = vld [vmem:[#allocation47 + $0x68] sm:$0xff]
        %v4294 = vld [vmem:[#allocation47 + $0x70] sm:$0xff]
        %v4295 = vld [vmem:[#allocation47 + $0x78] sm:$0xff]
        %v4296 = vld [vmem:[#allocation49] sm:$0x1]
        %v4297 = vld [vmem:[%s1217] sm:$0x1]
        %v4299 = vlaneseq
        %v4300 = vshrl.u32 %v4299, 7
        %v4301 = vsub.s32 0, %v4300
        %v4302 = vrot.slane %v4269, %v4301
        %4304 = vmatprep.subr.mxu0 0.0
        %4305 = vmatpush1.msra.mxu0 %v4253
        %4306 = vmatprep.subr.mxu0 0.0
        %4307 = vmatpush1.msra.mxu0 %v4254
        %4308 = vmatprep.subr.mxu0 0.0
        %4309 = vmatpush1.msra.mxu0 %v4255
        %4310 = vmatprep.subr.mxu0 0.0
        %4311 = vmatpush1.msra.mxu0 %v4256
        %4312 = vmatprep.subr.mxu0 0.0
        %4313 = vmatpush1.msra.mxu0 %v4257
        %4314 = vmatprep.subr.mxu0 0.0
        %4315 = vmatpush1.msra.mxu0 %v4258
        %4316 = vmatprep.subr.mxu0 0.0
        %4317 = vmatpush1.msra.mxu0 %v4259
        %4318 = vmatprep.subr.mxu0 0.0
        %4319 = vmatpush1.msra.mxu0 %v4260
        %4320 = vmatprep.subr.mxu0 0.0
        %4321 = vmatpush1.msra.mxu0 %v4261
        %4322 = vmatprep.subr.mxu0 0.0
        %4323 = vmatpush1.msra.mxu0 %v4262
        %4324 = vmatprep.subr.mxu0 0.0
        %4325 = vmatpush1.msra.mxu0 %v4263
        %4326 = vmatprep.subr.mxu0 0.0
        %4327 = vmatpush1.msra.mxu0 %v4264
        %4328 = vmatprep.subr.mxu0 0.0
        %4329 = vmatpush1.msra.mxu0 %v4265
        %4330 = vmatprep.subr.mxu0 0.0
        %4331 = vmatpush1.msra.mxu0 %v4266
        %4332 = vmatprep.subr.mxu0 0.0
        %4333 = vmatpush1.msra.mxu0 %v4267
        %4334 = vmatprep.subr.mxu0 0.0
        %4335 = vmatpush1.msra.mxu0 %v4268
        %4336 = vmatprep.subr.mxu0 0.0
        %4337 = vmatpush1.msra.mxu0 0.0
        %4338 = vmatprep.subr.mxu0 0.0
        %4339 = vmatpush1.msra.mxu0 0.0
        %4340 = vmatprep.subr.mxu0 0.0
        %4341 = vmatpush1.msra.mxu0 0.0
        %4342 = vmatprep.subr.mxu0 0.0
        %4343 = vmatpush1.msra.mxu0 0.0
        %4344 = vmatprep.subr.mxu0 0.0
        %4345 = vmatpush1.msra.mxu0 0.0
        %4346 = vmatprep.subr.mxu0 0.0
        %4347 = vmatpush1.msra.mxu0 0.0
        %4348 = vmatprep.subr.mxu0 0.0
        %4349 = vmatpush1.msra.mxu0 0.0
        %4350 = vmatprep.subr.mxu0 0.0
        %4351 = vmatpush1.msra.mxu0 0.0
        %4352 = vmatprep.subr.mxu0 0.0
        %4353 = vmatpush1.msra.mxu0 0.0
        %4354 = vmatprep.subr.mxu0 0.0
        %4355 = vmatpush1.msra.mxu0 0.0
        %4356 = vmatprep.subr.mxu0 0.0
        %4357 = vmatpush1.msra.mxu0 0.0
        %4358 = vmatprep.subr.mxu0 0.0
        %4359 = vmatpush1.msra.mxu0 0.0
        %4360 = vmatprep.subr.mxu0 0.0
        %4361 = vmatpush1.msra.mxu0 0.0
        %4362 = vmatprep.subr.mxu0 0.0
        %4363 = vmatpush1.msra.mxu0 0.0
        %4364 = vmatprep.subr.mxu0 0.0
        %4365 = vmatpush1.msra.mxu0 0.0
        %4366 = vmatprep.subr.mxu0 0.0
        %4367 = vmatpush1.msra.mxu0 0.0
        %4368 = vmatprep.mubr.f32.mxu0 0.0
        %4369 = vmatmul.mubr.f32.gmra.mrb[0].mxu0 %v4244
        %v4370 = vpop.f32.mrb[0].mxu0
        %v4371 = vadd.f32 %v4302, %v4370
        %v4372 = vpop.f32.mrb[0].mxu0
        %4373 = vmatprep.mubr.f32.mxu0 0.0
        %4374 = vmatmul.mubr.f32.gmra.mrb[0].mxu0 %v4245
        %v4375 = vpop.f32.mrb[0].mxu0
        %v4376 = vadd.f32 %v4302, %v4375
        %v4377 = vpop.f32.mrb[0].mxu0
        %4378 = vmatprep.mubr.f32.mxu0 0.0
        %4379 = vmatmul.mubr.f32.gmra.mrb[0].mxu0 %v4246
        %v4380 = vpop.f32.mrb[0].mxu0
        %v4381 = vadd.f32 %v4302, %v4380
        %v4382 = vpop.f32.mrb[0].mxu0
        %4383 = vmatprep.mubr.f32.mxu0 0.0
        %4384 = vmatmul.mubr.f32.gmra.mrb[0].mxu0 %v4247
        %v4385 = vpop.f32.mrb[0].mxu0
        %v4386 = vadd.f32 %v4302, %v4385
        %v4387 = vpop.f32.mrb[0].mxu0
        %4388 = vmatprep.mubr.f32.mxu0 0.0
        %4389 = vmatmul.mubr.f32.gmra.mrb[0].mxu0 %v4248
        %v4390 = vpop.f32.mrb[0].mxu0
        %v4391 = vadd.f32 %v4302, %v4390
        %v4392 = vpop.f32.mrb[0].mxu0
        %4393 = vmatprep.mubr.f32.mxu0 0.0
        %4394 = vmatmul.mubr.f32.gmra.mrb[0].mxu0 %v4249
        %v4395 = vpop.f32.mrb[0].mxu0
        %v4396 = vadd.f32 %v4302, %v4395
        %v4397 = vpop.f32.mrb[0].mxu0
        %4398 = vmatprep.mubr.f32.mxu0 0.0
        %4399 = vmatmul.mubr.f32.gmra.mrb[0].mxu0 %v4250
        %v4400 = vpop.f32.mrb[0].mxu0
        %v4401 = vadd.f32 %v4302, %v4400
        %v4402 = vpop.f32.mrb[0].mxu0
        %4403 = vmatprep.mubr.f32.mxu0 0.0
        %4404 = vmatmul.mubr.f32.gmra.mrb[0].mxu0 %v4251
        %v4405 = vpop.f32.mrb[0].mxu0
        %v4406 = vadd.f32 %v4302, %v4405
        %v4407 = vpop.f32.mrb[0].mxu0
        %4408 = vdwg.mxu0
        %v4410 = vlaneseq
        %v4411 = vshrl.u32 %v4410, 7
        %v4412 = vsub.s32 0, %v4411
        %v4413 = vrot.slane %v4274, %v4412
        %vm4415 = vcmask 261120
        %v4417 = vsel %vm4415, %v4252, 0
        %4419 = vmatprep.subr.mxu0 0.0
        %4420 = vmatpush1.msra.mxu0 %v4270
        %4421 = vmatprep.subr.mxu0 0.0
        %4422 = vmatpush1.msra.mxu0 %v4271
        %4423 = vmatprep.subr.mxu0 0.0
        %4424 = vmatpush1.msra.mxu0 %v4272
        %4425 = vmatprep.subr.mxu0 0.0
        %4426 = vmatpush1.msra.mxu0 %v4273
        %4427 = vmatprep.subr.mxu0 0.0
        %4428 = vmatpush1.msra.mxu0 0.0
        %4429 = vmatprep.subr.mxu0 0.0
        %4430 = vmatpush1.msra.mxu0 0.0
        %4431 = vmatprep.subr.mxu0 0.0
        %4432 = vmatpush1.msra.mxu0 0.0
        %4433 = vmatprep.subr.mxu0 0.0
        %4434 = vmatpush1.msra.mxu0 0.0
        %4435 = vmatprep.subr.mxu0 0.0
        %4436 = vmatpush1.msra.mxu0 0.0
        %4437 = vmatprep.subr.mxu0 0.0
        %4438 = vmatpush1.msra.mxu0 0.0
        %4439 = vmatprep.subr.mxu0 0.0
        %4440 = vmatpush1.msra.mxu0 0.0
        %4441 = vmatprep.subr.mxu0 0.0
        %4442 = vmatpush1.msra.mxu0 0.0
        %4443 = vmatprep.subr.mxu0 0.0
        %4444 = vmatpush1.msra.mxu0 0.0
        %4445 = vmatprep.subr.mxu0 0.0
        %4446 = vmatpush1.msra.mxu0 0.0
        %4447 = vmatprep.subr.mxu0 0.0
        %4448 = vmatpush1.msra.mxu0 0.0
        %4449 = vmatprep.subr.mxu0 0.0
        %4450 = vmatpush1.msra.mxu0 0.0
        %4451 = vmatprep.subr.mxu0 0.0
        %4452 = vmatpush1.msra.mxu0 0.0
        %4453 = vmatprep.subr.mxu0 0.0
        %4454 = vmatpush1.msra.mxu0 0.0
        %4455 = vmatprep.subr.mxu0 0.0
        %4456 = vmatpush1.msra.mxu0 0.0
        %4457 = vmatprep.subr.mxu0 0.0
        %4458 = vmatpush1.msra.mxu0 0.0
        %4459 = vmatprep.subr.mxu0 0.0
        %4460 = vmatpush1.msra.mxu0 0.0
        %4461 = vmatprep.subr.mxu0 0.0
        %4462 = vmatpush1.msra.mxu0 0.0
        %4463 = vmatprep.subr.mxu0 0.0
        %4464 = vmatpush1.msra.mxu0 0.0
        %4465 = vmatprep.subr.mxu0 0.0
        %4466 = vmatpush1.msra.mxu0 0.0
        %4467 = vmatprep.subr.mxu0 0.0
        %4468 = vmatpush1.msra.mxu0 0.0
        %4469 = vmatprep.subr.mxu0 0.0
        %4470 = vmatpush1.msra.mxu0 0.0
        %4471 = vmatprep.subr.mxu0 0.0
        %4472 = vmatpush1.msra.mxu0 0.0
        %4473 = vmatprep.subr.mxu0 0.0
        %4474 = vmatpush1.msra.mxu0 0.0
        %4475 = vmatprep.subr.mxu0 0.0
        %4476 = vmatpush1.msra.mxu0 0.0
        %4477 = vmatprep.subr.mxu0 0.0
        %4478 = vmatpush1.msra.mxu0 0.0
        %4479 = vmatprep.subr.mxu0 0.0
        %4480 = vmatpush1.msra.mxu0 0.0
        %4481 = vmatprep.subr.mxu0 0.0
        %4482 = vmatpush1.msra.mxu0 0.0
        %4483 = vmatprep.mubr.f32.mxu0 0.0
        %4484 = vmatmul.mubr.f32.gmra.mrb[0].mxu0 %v4417
        %v4485 = vpop.f32.mrb[0].mxu0
        %v4486 = vadd.f32 %v4413, %v4485
        %v4487 = vpop.f32.mrb[0].mxu0
        %4488 = vdwg.mxu0
        %v4490 = vlaneseq
        %v4491 = vshrl.u32 %v4490, 7
        %v4492 = vsub.s32 0, %v4491
        %v4493 = vrot.slane %v4279, %v4492
        %4495 = vmatprep.subr.mxu0 0.0
        %4496 = vmatpush1.msra.mxu0 %v4275
        %4497 = vmatprep.subr.mxu0 0.0
        %4498 = vmatpush1.msra.mxu0 %v4276
        %4499 = vmatprep.subr.mxu0 0.0
        %4500 = vmatpush1.msra.mxu0 %v4277
        %4501 = vmatprep.subr.mxu0 0.0
        %4502 = vmatpush1.msra.mxu0 %v4278
        %4503 = vmatprep.subr.mxu0 0.0
        %4504 = vmatpush1.msra.mxu0 0.0
        %4505 = vmatprep.subr.mxu0 0.0
        %4506 = vmatpush1.msra.mxu0 0.0
        %4507 = vmatprep.subr.mxu0 0.0
        %4508 = vmatpush1.msra.mxu0 0.0
        %4509 = vmatprep.subr.mxu0 0.0
        %4510 = vmatpush1.msra.mxu0 0.0
        %4511 = vmatprep.subr.mxu0 0.0
        %4512 = vmatpush1.msra.mxu0 0.0
        %4513 = vmatprep.subr.mxu0 0.0
        %4514 = vmatpush1.msra.mxu0 0.0
        %4515 = vmatprep.subr.mxu0 0.0
        %4516 = vmatpush1.msra.mxu0 0.0
        %4517 = vmatprep.subr.mxu0 0.0
        %4518 = vmatpush1.msra.mxu0 0.0
        %4519 = vmatprep.subr.mxu0 0.0
        %4520 = vmatpush1.msra.mxu0 0.0
        %4521 = vmatprep.subr.mxu0 0.0
        %4522 = vmatpush1.msra.mxu0 0.0
        %4523 = vmatprep.subr.mxu0 0.0
        %4524 = vmatpush1.msra.mxu0 0.0
        %4525 = vmatprep.subr.mxu0 0.0
        %4526 = vmatpush1.msra.mxu0 0.0
        %4527 = vmatprep.subr.mxu0 0.0
        %4528 = vmatpush1.msra.mxu0 0.0
        %4529 = vmatprep.subr.mxu0 0.0
        %4530 = vmatpush1.msra.mxu0 0.0
        %4531 = vmatprep.subr.mxu0 0.0
        %4532 = vmatpush1.msra.mxu0 0.0
        %4533 = vmatprep.subr.mxu0 0.0
        %4534 = vmatpush1.msra.mxu0 0.0
        %4535 = vmatprep.subr.mxu0 0.0
        %4536 = vmatpush1.msra.mxu0 0.0
        %4537 = vmatprep.subr.mxu0 0.0
        %4538 = vmatpush1.msra.mxu0 0.0
        %4539 = vmatprep.subr.mxu0 0.0
        %4540 = vmatpush1.msra.mxu0 0.0
        %4541 = vmatprep.subr.mxu0 0.0
        %4542 = vmatpush1.msra.mxu0 0.0
        %4543 = vmatprep.subr.mxu0 0.0
        %4544 = vmatpush1.msra.mxu0 0.0
        %4545 = vmatprep.subr.mxu0 0.0
        %4546 = vmatpush1.msra.mxu0 0.0
        %4547 = vmatprep.subr.mxu0 0.0
        %4548 = vmatpush1.msra.mxu0 0.0
        %4549 = vmatprep.subr.mxu0 0.0
        %4550 = vmatpush1.msra.mxu0 0.0
        %4551 = vmatprep.subr.mxu0 0.0
        %4552 = vmatpush1.msra.mxu0 0.0
        %4553 = vmatprep.subr.mxu0 0.0
        %4554 = vmatpush1.msra.mxu0 0.0
        %4555 = vmatprep.subr.mxu0 0.0
        %4556 = vmatpush1.msra.mxu0 0.0
        %4557 = vmatprep.subr.mxu0 0.0
        %4558 = vmatpush1.msra.mxu0 0.0
        %4559 = vmatprep.mubr.f32.mxu0 0.0
        %4560 = vmatmul.mubr.f32.gmra.mrb[0].mxu0 %v4417
        %v4561 = vpop.f32.mrb[0].mxu0
        %v4562 = vadd.f32 %v4493, %v4561
        %v4563 = vpop.f32.mrb[0].mxu0
        %4564 = vdwg.mxu0
        %v4566 = vlaneseq
        %v4567 = vshrl.u32 %v4566, 7
        %v4568 = vsub.s32 0, %v4567
        %v4569 = vrot.slane %v4297, %v4568
        %4571 = vmatprep.subr.mxu0 0.0
        %4572 = vmatpush1.xpose.msra.mxu0 %v4486
        %4573 = vmatprep.subr.mxu0 0.0
        %4574 = vmatpush1.xpose.msra.mxu0 0.0
        %4575 = vmatprep.subr.mxu0 0.0
        %4576 = vmatpush1.xpose.msra.mxu0 0.0
        %4577 = vmatprep.subr.mxu0 0.0
        %4578 = vmatpush1.xpose.msra.mxu0 0.0
        %4579 = vmatprep.subr.mxu0 0.0
        %4580 = vmatpush1.xpose.msra.mxu0 0.0
        %4581 = vmatprep.subr.mxu0 0.0
        %4582 = vmatpush1.xpose.msra.mxu0 0.0
        %4583 = vmatprep.subr.mxu0 0.0
        %4584 = vmatpush1.xpose.msra.mxu0 0.0
        %4585 = vmatprep.subr.mxu0 0.0
        %4586 = vmatpush1.xpose.msra.mxu0 0.0
        %4587 = vmatprep.subr.mxu0 0.0
        %4588 = vmatpush1.xpose.msra.mxu0 0.0
        %4589 = vmatprep.subr.mxu0 0.0
        %4590 = vmatpush1.xpose.msra.mxu0 0.0
        %4591 = vmatprep.subr.mxu0 0.0
        %4592 = vmatpush1.xpose.msra.mxu0 0.0
        %4593 = vmatprep.subr.mxu0 0.0
        %4594 = vmatpush1.xpose.msra.mxu0 0.0
        %4595 = vmatprep.subr.mxu0 0.0
        %4596 = vmatpush1.xpose.msra.mxu0 0.0
        %4597 = vmatprep.subr.mxu0 0.0
        %4598 = vmatpush1.xpose.msra.mxu0 0.0
        %4599 = vmatprep.subr.mxu0 0.0
        %4600 = vmatpush1.xpose.msra.mxu0 0.0
        %4601 = vmatprep.subr.mxu0 0.0
        %4602 = vmatpush1.xpose.msra.mxu0 0.0
        %4603 = vmatprep.subr.mxu0 0.0
        %4604 = vmatpush1.xpose.msra.mxu0 0.0
        %4605 = vmatprep.subr.mxu0 0.0
        %4606 = vmatpush1.xpose.msra.mxu0 0.0
        %4607 = vmatprep.subr.mxu0 0.0
        %4608 = vmatpush1.xpose.msra.mxu0 0.0
        %4609 = vmatprep.subr.mxu0 0.0
        %4610 = vmatpush1.xpose.msra.mxu0 0.0
        %4611 = vmatprep.subr.mxu0 0.0
        %4612 = vmatpush1.xpose.msra.mxu0 0.0
        %4613 = vmatprep.subr.mxu0 0.0
        %4614 = vmatpush1.xpose.msra.mxu0 0.0
        %4615 = vmatprep.subr.mxu0 0.0
        %4616 = vmatpush1.xpose.msra.mxu0 0.0
        %4617 = vmatprep.subr.mxu0 0.0
        %4618 = vmatpush1.xpose.msra.mxu0 0.0
        %4619 = vmatprep.subr.mxu0 0.0
        %4620 = vmatpush1.xpose.msra.mxu0 0.0
        %4621 = vmatprep.subr.mxu0 0.0
        %4622 = vmatpush1.xpose.msra.mxu0 0.0
        %4623 = vmatprep.subr.mxu0 0.0
        %4624 = vmatpush1.xpose.msra.mxu0 0.0
        %4625 = vmatprep.subr.mxu0 0.0
        %4626 = vmatpush1.xpose.msra.mxu0 0.0
        %4627 = vmatprep.subr.mxu0 0.0
        %4628 = vmatpush1.xpose.msra.mxu0 0.0
        %4629 = vmatprep.subr.mxu0 0.0
        %4630 = vmatpush1.xpose.msra.mxu0 0.0
        %4631 = vmatprep.subr.mxu0 0.0
        %4632 = vmatpush1.xpose.msra.mxu0 0.0
        %4633 = vmatprep.subr.mxu0 0.0
        %4634 = vmatpush1.xpose.msra.mxu0 0.0
        %4635 = vmatprep.mubr.f32.mxu0 0.0
        %4636 = vmatmul.mubr.f32.gmra.mrb[0].mxu0 %v4371
        %v4637 = vpop.f32.mrb[0].mxu0
        %v4638 = vadd.f32 %v4569, %v4637
        %v4639 = vpop.f32.mrb[0].mxu0
        %4640 = vmatprep.mubr.f32.mxu0 0.0
        %4641 = vmatmul.mubr.f32.gmra.mrb[0].mxu0 %v4376
        %v4642 = vpop.f32.mrb[0].mxu0
        %v4643 = vadd.f32 %v4569, %v4642
        %v4644 = vpop.f32.mrb[0].mxu0
        %4645 = vmatprep.mubr.f32.mxu0 0.0
        %4646 = vmatmul.mubr.f32.gmra.mrb[0].mxu0 %v4381
        %v4647 = vpop.f32.mrb[0].mxu0
        %v4648 = vadd.f32 %v4569, %v4647
        %v4649 = vpop.f32.mrb[0].mxu0
        %4650 = vmatprep.mubr.f32.mxu0 0.0
        %4651 = vmatmul.mubr.f32.gmra.mrb[0].mxu0 %v4386
        %v4652 = vpop.f32.mrb[0].mxu0
        %v4653 = vadd.f32 %v4569, %v4652
        %v4654 = vpop.f32.mrb[0].mxu0
        %4655 = vmatprep.mubr.f32.mxu0 0.0
        %4656 = vmatmul.mubr.f32.gmra.mrb[0].mxu0 %v4391
        %v4657 = vpop.f32.mrb[0].mxu0
        %v4658 = vadd.f32 %v4569, %v4657
        %v4659 = vpop.f32.mrb[0].mxu0
        %4660 = vmatprep.mubr.f32.mxu0 0.0
        %4661 = vmatmul.mubr.f32.gmra.mrb[0].mxu0 %v4396
        %v4662 = vpop.f32.mrb[0].mxu0
        %v4663 = vadd.f32 %v4569, %v4662
        %v4664 = vpop.f32.mrb[0].mxu0
        %4665 = vmatprep.mubr.f32.mxu0 0.0
        %4666 = vmatmul.mubr.f32.gmra.mrb[0].mxu0 %v4401
        %v4667 = vpop.f32.mrb[0].mxu0
        %v4668 = vadd.f32 %v4569, %v4667
        %v4669 = vpop.f32.mrb[0].mxu0
        %4670 = vmatprep.mubr.f32.mxu0 0.0
        %4671 = vmatmul.mubr.f32.gmra.mrb[0].mxu0 %v4406
        %v4672 = vpop.f32.mrb[0].mxu0
        %v4673 = vadd.f32 %v4569, %v4672
        %v4674 = vpop.f32.mrb[0].mxu0
        %4675 = vdwg.mxu0
        %v4676 = vsel %vm1527, %v4638, -inf
        %4677 = vmax.xlane.f32.xlu0 %v4676
        %v4678 = vpop.xlane.xlu0 %4677
        %v4679 = vsel %vm1527, %v4643, -inf
        %4680 = vmax.xlane.f32.xlu0 %v4679
        %v4681 = vpop.xlane.xlu0 %4680
        %v4682 = vsel %vm1527, %v4648, -inf
        %4683 = vmax.xlane.f32.xlu0 %v4682
        %v4684 = vpop.xlane.xlu0 %4683
        %v4685 = vsel %vm1527, %v4653, -inf
        %4686 = vmax.xlane.f32.xlu0 %v4685
        %v4687 = vpop.xlane.xlu0 %4686
        %v4688 = vsel %vm1527, %v4658, -inf
        %4689 = vmax.xlane.f32.xlu0 %v4688
        %v4690 = vpop.xlane.xlu0 %4689
        %v4691 = vsel %vm1527, %v4663, -inf
        %4692 = vmax.xlane.f32.xlu0 %v4691
        %v4693 = vpop.xlane.xlu0 %4692
        %v4694 = vsel %vm1527, %v4668, -inf
        %4695 = vmax.xlane.f32.xlu0 %v4694
        %v4696 = vpop.xlane.xlu0 %4695
        %v4697 = vsel %vm1527, %v4673, -inf
        %4698 = vmax.xlane.f32.xlu0 %v4697
        %v4699 = vpop.xlane.xlu0 %4698
        %v4700 = vsub.f32 %v4638, %v4678
        %v4701 = vsub.f32 %v4643, %v4681
        %v4702 = vsub.f32 %v4648, %v4684
        %v4703 = vsub.f32 %v4653, %v4687
        %v4704 = vsub.f32 %v4658, %v4690
        %v4705 = vsub.f32 %v4663, %v4693
        %v4706 = vsub.f32 %v4668, %v4696
        %v4707 = vsub.f32 %v4673, %v4699
        %v4708 = vmul.f32 %v4700, 1.442695
        %v4709 = vpow.pop %v4708
        %v4710 = vmul.f32 %v4701, 1.442695
        %v4711 = vpow.pop %v4710
        %v4712 = vmul.f32 %v4702, 1.442695
        %v4713 = vpow.pop %v4712
        %v4714 = vmul.f32 %v4703, 1.442695
        %v4715 = vpow.pop %v4714
        %v4716 = vmul.f32 %v4704, 1.442695
        %v4717 = vpow.pop %v4716
        %v4718 = vmul.f32 %v4705, 1.442695
        %v4719 = vpow.pop %v4718
        %v4720 = vmul.f32 %v4706, 1.442695
        %v4721 = vpow.pop %v4720
        %v4722 = vmul.f32 %v4707, 1.442695
        %v4723 = vpow.pop %v4722
        %v4724 = vsel %vm1527, %v4709, 0.0
        %4725 = vadd.xlane.f32.xlu0 %v4724
        %v4726 = vpop.xlane.xlu0 %4725
        %v4727 = vsel %vm1527, %v4711, 0.0
        %4728 = vadd.xlane.f32.xlu0 %v4727
        %v4729 = vpop.xlane.xlu0 %4728
        %v4730 = vsel %vm1527, %v4713, 0.0
        %4731 = vadd.xlane.f32.xlu0 %v4730
        %v4732 = vpop.xlane.xlu0 %4731
        %v4733 = vsel %vm1527, %v4715, 0.0
        %4734 = vadd.xlane.f32.xlu0 %v4733
        %v4735 = vpop.xlane.xlu0 %4734
        %v4736 = vsel %vm1527, %v4717, 0.0
        %4737 = vadd.xlane.f32.xlu0 %v4736
        %v4738 = vpop.xlane.xlu0 %4737
        %v4739 = vsel %vm1527, %v4719, 0.0
        %4740 = vadd.xlane.f32.xlu0 %v4739
        %v4741 = vpop.xlane.xlu0 %4740
        %v4742 = vsel %vm1527, %v4721, 0.0
        %4743 = vadd.xlane.f32.xlu0 %v4742
        %v4744 = vpop.xlane.xlu0 %4743
        %v4745 = vsel %vm1527, %v4723, 0.0
        %4746 = vadd.xlane.f32.xlu0 %v4745
        %v4747 = vpop.xlane.xlu0 %4746
        %v4748 = vrcp.pop %v4726
        %v4749 = vmul.f32 1.0, %v4748
        %v4750 = vrcp.pop %v4729
        %v4751 = vmul.f32 1.0, %v4750
        %v4752 = vrcp.pop %v4732
        %v4753 = vmul.f32 1.0, %v4752
        %v4754 = vrcp.pop %v4735
        %v4755 = vmul.f32 1.0, %v4754
        %v4756 = vrcp.pop %v4738
        %v4757 = vmul.f32 1.0, %v4756
        %v4758 = vrcp.pop %v4741
        %v4759 = vmul.f32 1.0, %v4758
        %v4760 = vrcp.pop %v4744
        %v4761 = vmul.f32 1.0, %v4760
        %v4762 = vrcp.pop %v4747
        %v4763 = vmul.f32 1.0, %v4762
        %v4764 = vmul.f32 %v4709, %v4749
        %v4765 = vmul.f32 %v4711, %v4751
        %v4766 = vmul.f32 %v4713, %v4753
        %v4767 = vmul.f32 %v4715, %v4755
        %v4768 = vmul.f32 %v4717, %v4757
        %v4769 = vmul.f32 %v4719, %v4759
        %v4770 = vmul.f32 %v4721, %v4761
        %v4771 = vmul.f32 %v4723, %v4763
        %v4773 = vsel %vm1527, %v4764, 0
        %v4776 = vsel %vm1527, %v4765, 0
        %v4779 = vsel %vm1527, %v4766, 0
        %v4782 = vsel %vm1527, %v4767, 0
        %v4785 = vsel %vm1527, %v4768, 0
        %v4788 = vsel %vm1527, %v4769, 0
        %v4791 = vsel %vm1527, %v4770, 0
        %v4794 = vsel %vm1527, %v4771, 0
        %4796 = vmatprep.subr.mxu0 0.0
        %4797 = vmatpush1.msra.mxu0 %v4562
        %4798 = vmatprep.subr.mxu0 0.0
        %4799 = vmatpush1.msra.mxu0 0.0
        %4800 = vmatprep.subr.mxu0 0.0
        %4801 = vmatpush1.msra.mxu0 0.0
        %4802 = vmatprep.subr.mxu0 0.0
        %4803 = vmatpush1.msra.mxu0 0.0
        %4804 = vmatprep.subr.mxu0 0.0
        %4805 = vmatpush1.msra.mxu0 0.0
        %4806 = vmatprep.subr.mxu0 0.0
        %4807 = vmatpush1.msra.mxu0 0.0
        %4808 = vmatprep.subr.mxu0 0.0
        %4809 = vmatpush1.msra.mxu0 0.0
        %4810 = vmatprep.subr.mxu0 0.0
        %4811 = vmatpush1.msra.mxu0 0.0
        %4812 = vmatprep.subr.mxu0 0.0
        %4813 = vmatpush1.msra.mxu0 0.0
        %4814 = vmatprep.subr.mxu0 0.0
        %4815 = vmatpush1.msra.mxu0 0.0
        %4816 = vmatprep.subr.mxu0 0.0
        %4817 = vmatpush1.msra.mxu0 0.0
        %4818 = vmatprep.subr.mxu0 0.0
        %4819 = vmatpush1.msra.mxu0 0.0
        %4820 = vmatprep.subr.mxu0 0.0
        %4821 = vmatpush1.msra.mxu0 0.0
        %4822 = vmatprep.subr.mxu0 0.0
        %4823 = vmatpush1.msra.mxu0 0.0
        %4824 = vmatprep.subr.mxu0 0.0
        %4825 = vmatpush1.msra.mxu0 0.0
        %4826 = vmatprep.subr.mxu0 0.0
        %4827 = vmatpush1.msra.mxu0 0.0
        %4828 = vmatprep.subr.mxu0 0.0
        %4829 = vmatpush1.msra.mxu0 0.0
        %4830 = vmatprep.subr.mxu0 0.0
        %4831 = vmatpush1.msra.mxu0 0.0
        %4832 = vmatprep.subr.mxu0 0.0
        %4833 = vmatpush1.msra.mxu0 0.0
        %4834 = vmatprep.subr.mxu0 0.0
        %4835 = vmatpush1.msra.mxu0 0.0
        %4836 = vmatprep.subr.mxu0 0.0
        %4837 = vmatpush1.msra.mxu0 0.0
        %4838 = vmatprep.subr.mxu0 0.0
        %4839 = vmatpush1.msra.mxu0 0.0
        %4840 = vmatprep.subr.mxu0 0.0
        %4841 = vmatpush1.msra.mxu0 0.0
        %4842 = vmatprep.subr.mxu0 0.0
        %4843 = vmatpush1.msra.mxu0 0.0
        %4844 = vmatprep.subr.mxu0 0.0
        %4845 = vmatpush1.msra.mxu0 0.0
        %4846 = vmatprep.subr.mxu0 0.0
        %4847 = vmatpush1.msra.mxu0 0.0
        %4848 = vmatprep.subr.mxu0 0.0
        %4849 = vmatpush1.msra.mxu0 0.0
        %4850 = vmatprep.subr.mxu0 0.0
        %4851 = vmatpush1.msra.mxu0 0.0
        %4852 = vmatprep.subr.mxu0 0.0
        %4853 = vmatpush1.msra.mxu0 0.0
        %4854 = vmatprep.subr.mxu0 0.0
        %4855 = vmatpush1.msra.mxu0 0.0
        %4856 = vmatprep.subr.mxu0 0.0
        %4857 = vmatpush1.msra.mxu0 0.0
        %4858 = vmatprep.subr.mxu0 0.0
        %4859 = vmatpush1.msra.mxu0 0.0
        %4860 = vmatprep.mubr.f32.mxu0 0.0
        %4861 = vmatmul.mubr.f32.gmra.mrb[0].mxu0 %v4773
        %v4862 = vpop.f32.mrb[0].mxu0
        %v4863 = vadd.f32 0.0, %v4862
        %v4864 = vpop.f32.mrb[0].mxu0
        %4865 = vmatprep.mubr.f32.mxu0 0.0
        %4866 = vmatmul.mubr.f32.gmra.mrb[0].mxu0 %v4776
        %v4867 = vpop.f32.mrb[0].mxu0
        %v4868 = vadd.f32 0.0, %v4867
        %v4869 = vpop.f32.mrb[0].mxu0
        %4870 = vmatprep.mubr.f32.mxu0 0.0
        %4871 = vmatmul.mubr.f32.gmra.mrb[0].mxu0 %v4779
        %v4872 = vpop.f32.mrb[0].mxu0
        %v4873 = vadd.f32 0.0, %v4872
        %v4874 = vpop.f32.mrb[0].mxu0
        %4875 = vmatprep.mubr.f32.mxu0 0.0
        %4876 = vmatmul.mubr.f32.gmra.mrb[0].mxu0 %v4782
        %v4877 = vpop.f32.mrb[0].mxu0
        %v4878 = vadd.f32 0.0, %v4877
        %v4879 = vpop.f32.mrb[0].mxu0
        %4880 = vmatprep.mubr.f32.mxu0 0.0
        %4881 = vmatmul.mubr.f32.gmra.mrb[0].mxu0 %v4785
        %v4882 = vpop.f32.mrb[0].mxu0
        %v4883 = vadd.f32 0.0, %v4882
        %v4884 = vpop.f32.mrb[0].mxu0
        %4885 = vmatprep.mubr.f32.mxu0 0.0
        %4886 = vmatmul.mubr.f32.gmra.mrb[0].mxu0 %v4788
        %v4887 = vpop.f32.mrb[0].mxu0
        %v4888 = vadd.f32 0.0, %v4887
        %v4889 = vpop.f32.mrb[0].mxu0
        %4890 = vmatprep.mubr.f32.mxu0 0.0
        %4891 = vmatmul.mubr.f32.gmra.mrb[0].mxu0 %v4791
        %v4892 = vpop.f32.mrb[0].mxu0
        %v4893 = vadd.f32 0.0, %v4892
        %v4894 = vpop.f32.mrb[0].mxu0
        %4895 = vmatprep.mubr.f32.mxu0 0.0
        %4896 = vmatmul.mubr.f32.gmra.mrb[0].mxu0 %v4794
        %v4897 = vpop.f32.mrb[0].mxu0
        %v4898 = vadd.f32 0.0, %v4897
        %v4899 = vpop.f32.mrb[0].mxu0
        %4900 = vdwg.mxu0
        %v4902 = vlaneseq
        %v4903 = vshrl.u32 %v4902, 7
        %v4904 = vsub.s32 0, %v4903
        %v4905 = vrot.slane %v4296, %v4904
        %4907 = vmatprep.subr.mxu0 0.0
        %4908 = vmatpush1.msra.mxu0 %v4280
        %4909 = vmatprep.subr.mxu0 0.0
        %4910 = vmatpush1.msra.mxu0 %v4281
        %4911 = vmatprep.subr.mxu0 0.0
        %4912 = vmatpush1.msra.mxu0 %v4282
        %4913 = vmatprep.subr.mxu0 0.0
        %4914 = vmatpush1.msra.mxu0 %v4283
        %4915 = vmatprep.subr.mxu0 0.0
        %4916 = vmatpush1.msra.mxu0 %v4284
        %4917 = vmatprep.subr.mxu0 0.0
        %4918 = vmatpush1.msra.mxu0 %v4285
        %4919 = vmatprep.subr.mxu0 0.0
        %4920 = vmatpush1.msra.mxu0 %v4286
        %4921 = vmatprep.subr.mxu0 0.0
        %4922 = vmatpush1.msra.mxu0 %v4287
        %4923 = vmatprep.subr.mxu0 0.0
        %4924 = vmatpush1.msra.mxu0 %v4288
        %4925 = vmatprep.subr.mxu0 0.0
        %4926 = vmatpush1.msra.mxu0 %v4289
        %4927 = vmatprep.subr.mxu0 0.0
        %4928 = vmatpush1.msra.mxu0 %v4290
        %4929 = vmatprep.subr.mxu0 0.0
        %4930 = vmatpush1.msra.mxu0 %v4291
        %4931 = vmatprep.subr.mxu0 0.0
        %4932 = vmatpush1.msra.mxu0 %v4292
        %4933 = vmatprep.subr.mxu0 0.0
        %4934 = vmatpush1.msra.mxu0 %v4293
        %4935 = vmatprep.subr.mxu0 0.0
        %4936 = vmatpush1.msra.mxu0 %v4294
        %4937 = vmatprep.subr.mxu0 0.0
        %4938 = vmatpush1.msra.mxu0 %v4295
        %4939 = vmatprep.subr.mxu0 0.0
        %4940 = vmatpush1.msra.mxu0 0.0
        %4941 = vmatprep.subr.mxu0 0.0
        %4942 = vmatpush1.msra.mxu0 0.0
        %4943 = vmatprep.subr.mxu0 0.0
        %4944 = vmatpush1.msra.mxu0 0.0
        %4945 = vmatprep.subr.mxu0 0.0
        %4946 = vmatpush1.msra.mxu0 0.0
        %4947 = vmatprep.subr.mxu0 0.0
        %4948 = vmatpush1.msra.mxu0 0.0
        %4949 = vmatprep.subr.mxu0 0.0
        %4950 = vmatpush1.msra.mxu0 0.0
        %4951 = vmatprep.subr.mxu0 0.0
        %4952 = vmatpush1.msra.mxu0 0.0
        %4953 = vmatprep.subr.mxu0 0.0
        %4954 = vmatpush1.msra.mxu0 0.0
        %4955 = vmatprep.subr.mxu0 0.0
        %4956 = vmatpush1.msra.mxu0 0.0
        %4957 = vmatprep.subr.mxu0 0.0
        %4958 = vmatpush1.msra.mxu0 0.0
        %4959 = vmatprep.subr.mxu0 0.0
        %4960 = vmatpush1.msra.mxu0 0.0
        %4961 = vmatprep.subr.mxu0 0.0
        %4962 = vmatpush1.msra.mxu0 0.0
        %4963 = vmatprep.subr.mxu0 0.0
        %4964 = vmatpush1.msra.mxu0 0.0
        %4965 = vmatprep.subr.mxu0 0.0
        %4966 = vmatpush1.msra.mxu0 0.0
        %4967 = vmatprep.subr.mxu0 0.0
        %4968 = vmatpush1.msra.mxu0 0.0
        %4969 = vmatprep.subr.mxu0 0.0
        %4970 = vmatpush1.msra.mxu0 0.0
        %4971 = vmatprep.mubr.f32.mxu0 0.0
        %4972 = vmatmul.mubr.f32.gmra.mrb[0].mxu0 %v4863
        %v4973 = vpop.f32.mrb[0].mxu0
        %v4974 = vadd.f32 %v4905, %v4973
        %v4975 = vpop.f32.mrb[0].mxu0
        %4976 = vmatprep.mubr.f32.mxu0 0.0
        %4977 = vmatmul.mubr.f32.gmra.mrb[0].mxu0 %v4868
        %v4978 = vpop.f32.mrb[0].mxu0
        %v4979 = vadd.f32 %v4905, %v4978
        %v4980 = vpop.f32.mrb[0].mxu0
        %4981 = vmatprep.mubr.f32.mxu0 0.0
        %4982 = vmatmul.mubr.f32.gmra.mrb[0].mxu0 %v4873
        %v4983 = vpop.f32.mrb[0].mxu0
        %v4984 = vadd.f32 %v4905, %v4983
        %v4985 = vpop.f32.mrb[0].mxu0
        %4986 = vmatprep.mubr.f32.mxu0 0.0
        %4987 = vmatmul.mubr.f32.gmra.mrb[0].mxu0 %v4878
        %v4988 = vpop.f32.mrb[0].mxu0
        %v4989 = vadd.f32 %v4905, %v4988
        %v4990 = vpop.f32.mrb[0].mxu0
        %4991 = vmatprep.mubr.f32.mxu0 0.0
        %4992 = vmatmul.mubr.f32.gmra.mrb[0].mxu0 %v4883
        %v4993 = vpop.f32.mrb[0].mxu0
        %v4994 = vadd.f32 %v4905, %v4993
        %v4995 = vpop.f32.mrb[0].mxu0
        %4996 = vmatprep.mubr.f32.mxu0 0.0
        %4997 = vmatmul.mubr.f32.gmra.mrb[0].mxu0 %v4888
        %v4998 = vpop.f32.mrb[0].mxu0
        %v4999 = vadd.f32 %v4905, %v4998
        %v5000 = vpop.f32.mrb[0].mxu0
        %5001 = vmatprep.mubr.f32.mxu0 0.0
        %5002 = vmatmul.mubr.f32.gmra.mrb[0].mxu0 %v4893
        %v5003 = vpop.f32.mrb[0].mxu0
        %v5004 = vadd.f32 %v4905, %v5003
        %v5005 = vpop.f32.mrb[0].mxu0
        %5006 = vmatprep.mubr.f32.mxu0 0.0
        %5007 = vmatmul.mubr.f32.gmra.mrb[0].mxu0 %v4898
        %v5008 = vpop.f32.mrb[0].mxu0
        %v5009 = vadd.f32 %v4905, %v5008
        %v5010 = vpop.f32.mrb[0].mxu0
        %5011 = vdwg.mxu0
        %v5012 = vadd.f32 %v3869, %v4974
        %v5013 = vadd.f32 %v3870, %v4979
        %v5014 = vadd.f32 %v3871, %v4984
        %v5015 = vadd.f32 %v3872, %v4989
        %v5016 = vadd.f32 %v3873, %v4994
        %v5017 = vadd.f32 %v3874, %v4999
        %v5018 = vadd.f32 %v3875, %v5004
        %v5019 = vadd.f32 %v3876, %v5009
        %5020 = vst [vmem:[%s1416] sm:$0xff] %v5012
        %5021 = vst [vmem:[%s1416 + $0x8] sm:$0xff] %v5013
        %5022 = vst [vmem:[%s1416 + $0x10] sm:$0xff] %v5014
        %5023 = vst [vmem:[%s1416 + $0x18] sm:$0xff] %v5015
        %5024 = vst [vmem:[%s1416 + $0x20] sm:$0xff] %v5016
        %5025 = vst [vmem:[%s1416 + $0x28] sm:$0xff] %v5017
        %5026 = vst [vmem:[%s1416 + $0x30] sm:$0xff] %v5018
        %5027 = vst [vmem:[%s1416 + $0x38] sm:$0xff] %v5019
        %s5028 = sand.u32 %s771, 1
        %s5029 = scalar_lea.sflag [#allocation4], %s5028
        %s5030 = sand.u32 %s771, 1
        %s5031 = smul.addr %s5030, 64
        %s5032 = scalar_lea.vmem [#allocation50], %s5031
        // Predicated region
        $region269: #{basic_spatial_transformer_block.1} parent=143 // pred_check
          %p5033 = pneg %p781
        $region270: #{basic_spatial_transformer_block.1} parent=143 // pred_check_branch
          %5035 = sbr.rel (%p5033) target = $region272
        $region271: #{basic_spatial_transformer_block.1} parent=143 // pred_region
          %s5037 = ssub.s32 1024, 1024
          %5038 = vsyncadd %s5029, %s5037
          %s5039 = smul.addr %s97, 8
          %s5040 = smul.addr %s5039, 128
          %s5041 = scalar_lea.hbm %s63, %s5040
          %s5042 = sshll.u32 %s5032, 4
          %s5043 = int_to_ptr.vmem [resolvable:$true] %s5042
          %5048 = dma.vmem_to_hbm [thread:$0]  %s5043, 1024, %s5041, %s5029, 128, 128, 8
        $region272: #{basic_spatial_transformer_block.1} parent=143 // pred_fallthru
          _
      $region144: #{basic_spatial_transformer_block.1} parent=5 // pred_fallthru
        _
      %p5049 = scmp.le.s32.totalorder 2, %s92
      // Predicated region
      $region273: #{basic_spatial_transformer_block.1} parent=5 // pred_check
        %p5050 = pneg %p5049
      $region274: #{basic_spatial_transformer_block.1} parent=5 // pred_check_branch
        %5052 = sbr.rel (%p5050) target = $region276
      $region275: #{basic_spatial_transformer_block.1} parent=5 // pred_region
        %s5053 = ssub.s32 %s92, 2
        // Predicated region
        $region277: #{basic_spatial_transformer_block.1} parent=275 // pred_check
          %p5054 = pneg %p787
        $region278: #{basic_spatial_transformer_block.1} parent=275 // pred_check_branch
          %5056 = sbr.rel (%p5054) target = $region280
        $region279: #{basic_spatial_transformer_block.1} parent=275 // pred_region
          %s5057 = sand.u32 %s772, 1
          %s5058 = scalar_lea.sflag [#allocation4], %s5057
          %s5059 = sand.u32 %s772, 1
          %s5060 = smul.addr %s5059, 64
          %s5061 = scalar_lea.vmem [#allocation50], %s5060
          %5062 = dma.done %s5058, 1024
        $region280: #{basic_spatial_transformer_block.1} parent=275 // pred_fallthru
          _
      $region276: #{basic_spatial_transformer_block.1} parent=5 // pred_fallthru
        _
    $region6: #{basic_spatial_transformer_block.1} parent=1 // loop_footer
      %s96 = sadd.s32 1, %s92
    $region7: #{basic_spatial_transformer_block.1} parent=1 // loop_footer_branch
      %91 = sbr.rel target = $region3
    $region8: #{basic_spatial_transformer_block.1} parent=1 // loop_exit
      _
    %5063 = vsyncpa [#allocation3], 1
    %s5064 = scalar_lea.sflag [#allocation3], 1
    %5065 = vsyncpa %s5064, 1
    %5066 = vsyncpa [#allocation6], 1
    %s5067 = scalar_lea.sflag [#allocation6], 1
    %5068 = vsyncpa %s5067, 1
    %5069 = vsyncpa [#allocation9], 1
    %5070 = vsyncpa [#allocation12], 1
    %5071 = vsyncpa [#allocation15], 1
    %5072 = vsyncpa [#allocation18], 1
    %5073 = vsyncpa [#allocation21], 1
    %5074 = vsyncpa [#allocation24], 1
    %5075 = vsyncpa [#allocation27], 1
    %5076 = vsyncpa [#allocation30], 1
    %5077 = vsyncpa [#allocation33], 1
    %5078 = vsyncpa [#allocation36], 1
    %5079 = vsyncpa [#allocation39], 1
    %5080 = vsyncpa [#allocation42], 1
    %5081 = vsyncpa [#allocation45], 1
    %5082 = vsyncpa [#allocation48], 1
    %5083 = vsyncpa [#allocation4], 1
    %s5084 = scalar_lea.sflag [#allocation4], 1
    %5085 = vsyncpa %s5084, 1

</llo_original>
